<compile_context>
chip_gen: v5e
topology: v5e:2x2
jax: 0.10.0
libtpu: 0.0.40
codegen_flags: <defaults>
</compile_context>

<pallas_src>
import functools

import jax
import jax.numpy as jnp
from jax.experimental import pallas as pl
from jax.experimental.pallas import tpu as pltpu


# ----------------------------- Pallas kernel --------------------------------
def _baseline_kernel(x_ref, w_ref, bn_ref, out_ref, *, h, w):
    # x_ref  : (nb, h+2, w+2, cin)  bf16  zero-padded NHWC image block
    # w_ref  : (9, cin, cout)       bf16  conv taps, tap index = di*3 + dj
    # bn_ref : (4, cout)            f32   rows = [bn1 scale, bn1 bias, neck scale, neck bias]
    # out_ref: (nb, cout)           f32   per-image embedding
    nb = x_ref.shape[0]
    cin = x_ref.shape[3]
    cout = out_ref.shape[1]
    hw = h * w

    # 3x3 conv as 9 shifted matmuls accumulated in f32 (MXU).  The activation is
    # read from HBM exactly once; the tap shifts are cheap VMEM slices.
    acc = jnp.zeros((nb * hw, cout), jnp.float32)
    for di in range(3):
        for dj in range(3):
            xs = x_ref[:, di:di + h, dj:dj + w, :].reshape(nb * hw, cin)
            acc = acc + jnp.dot(xs, w_ref[di * 3 + dj],
                                preferred_element_type=jnp.float32)

    s1 = bn_ref[0:1, :]
    b1 = bn_ref[1:2, :]
    s2 = bn_ref[2:3, :]
    b2 = bn_ref[3:4, :]

    y = jnp.maximum(acc * s1 + b1, 0.0)                         # BN2d + ReLU (f32, VPU)
    gap = jnp.sum(y.reshape(nb, hw, cout), axis=1) * (1.0 / hw)  # global avg pool
    out_ref[...] = gap * s2 + b2                                 # neck BatchNorm1d


# ------------------------------- wrapper -------------------------------------
def baseline_forward(images, conv_w, bn1, neck_bn, *, block_n=8,
                     mxu_dtype=jnp.bfloat16):
    """images: (N, Cin, H, W) float32 (PyTorch NCHW).  Returns (N, Cout) embeddings."""
    N, Cin, H, W = images.shape
    Cout = conv_w.shape[0]
    eps = 1e-5

    # ---- glue: fold the two inference-mode BatchNorms into scale/bias (f32) ----
    g1, be1, m1, v1 = bn1
    s1 = g1 / jnp.sqrt(v1 + eps)
    b1 = be1 - m1 * s1
    g2, be2, m2, v2 = neck_bn
    s2 = g2 / jnp.sqrt(v2 + eps)
    b2 = be2 - m2 * s2
    bn_packed = jnp.stack([s1, b1, s2, b2], axis=0).astype(jnp.float32)  # (4, Cout)

    # ---- glue: NCHW -> NHWC, zero pad (SAME for 3x3/s1), cast MXU operand to bf16
    # (single pass over the activations; ~9x less HBM traffic than host im2col,
    #  half-width DMA bytes thanks to bf16).
    x = jnp.transpose(images, (0, 2, 3, 1))
    x = jnp.pad(x, ((0, 0), (1, 1), (1, 1), (0, 0))).astype(mxu_dtype)   # (N,H+2,W+2,Cin)

    # conv weight (Cout, Cin, kh, kw) -> (9, Cin, Cout), tap-major (di, dj)
    w_taps = jnp.transpose(conv_w, (2, 3, 1, 0)).reshape(9, Cin, Cout).astype(mxu_dtype)

    # ---- image blocking: several images per grid step -> denser output tile ----
    nb = min(block_n, N)
    n_pad = (-N) % nb
    if n_pad:
        x = jnp.pad(x, ((0, n_pad), (0, 0), (0, 0), (0, 0)))
    Np = N + n_pad

    kernel = functools.partial(_baseline_kernel, h=H, w=W)
    out = pl.pallas_call(
        kernel,
        out_shape=jax.ShapeDtypeStruct((Np, Cout), jnp.float32),
        grid_spec=pltpu.PrefetchScalarGridSpec(
            num_scalar_prefetch=0,
            grid=(Np // nb,),
            in_specs=[
                pl.BlockSpec((nb, H + 2, W + 2, Cin), lambda n: (n, 0, 0, 0)),  # image block
                pl.BlockSpec((9, Cin, Cout), lambda n: (0, 0, 0)),              # conv taps (resident)
                pl.BlockSpec((4, Cout), lambda n: (0, 0)),                      # packed BN (resident)
            ],
            out_specs=pl.BlockSpec((nb, Cout), lambda n: (n, 0)),
        ),
        compiler_params=pltpu.CompilerParams(
            dimension_semantics=("parallel",),
            vmem_limit_bytes=32 * 1024 * 1024),
    )(x, w_taps, bn_packed)
    return out[:N]


# ------------------------------- reference ----------------------------------
def baseline_reference(images, conv_w, bn1, neck_bn, *, cast_dtype=None):
    eps = 1e-5
    lhs, rhs = images, conv_w
    if cast_dtype is not None:
        lhs = lhs.astype(cast_dtype)
        rhs = rhs.astype(cast_dtype)
    y = jax.lax.conv_general_dilated(
        lhs, rhs, window_strides=(1, 1), padding="SAME",
        dimension_numbers=("NCHW", "OIHW", "NCHW"),
        preferred_element_type=jnp.float32)
    g1, be1, m1, v1 = bn1
    y = (y - m1.reshape(1, -1, 1, 1)) / jnp.sqrt(v1.reshape(1, -1, 1, 1) + eps)
    y = y * g1.reshape(1, -1, 1, 1) + be1.reshape(1, -1, 1, 1)
    y = jnp.maximum(y, 0.0)
    gap = jnp.mean(y, axis=(2, 3))
    g2, be2, m2, v2 = neck_bn
    feat = (gap - m2) / jnp.sqrt(v2 + eps) * g2 + be2
    return feat


# --------------------------------- main --------------------------------------
if __name__ == "__main__":
    key = jax.random.PRNGKey(0)
    k_img, k_w, k_bn = jax.random.split(key, 3)

    N, Cin, H, W = 2, 4, 16, 16
    Cout = 32                      # backbone output / embedding dim
    num_classes = 10               # heads.classifier exists but is unused at eval
    # TODO(synk): classifier weight (num_classes, Cout) + margin-softmax / reid_losses
    # belong to the training branch only; inference forward returns neck features.

    images = jax.random.normal(k_img, (N, Cin, H, W), dtype=jnp.float32)
    conv_w = 0.1 * jax.random.normal(k_w, (Cout, Cin, 3, 3), dtype=jnp.float32)

    kb = jax.random.split(k_bn, 8)
    bn1 = (1.0 + 0.1 * jax.random.normal(kb[0], (Cout,)),           # gamma
           0.1 * jax.random.normal(kb[1], (Cout,)),                 # beta
           0.1 * jax.random.normal(kb[2], (Cout,)),                 # running_mean
           jnp.abs(1.0 + 0.1 * jax.random.normal(kb[3], (Cout,))))  # running_var
    neck_bn = (1.0 + 0.1 * jax.random.normal(kb[4], (Cout,)),
               jnp.zeros((Cout,)),                                  # bias_freeze neck
               0.1 * jax.random.normal(kb[6], (Cout,)),
               jnp.abs(1.0 + 0.1 * jax.random.normal(kb[7], (Cout,))))

    out = baseline_forward(images, conv_w, bn1, neck_bn)
    out = jax.block_until_ready(out)
    assert out.shape == (N, Cout)

    # tight check against a reference fed the same bf16 MXU operands (f32 accumulation)
    ref_bf16 = baseline_reference(images, conv_w, bn1, neck_bn, cast_dtype=jnp.bfloat16)
    err_tight = float(jnp.max(jnp.abs(out - ref_bf16)))
    assert jnp.allclose(out, ref_bf16, atol=5e-4, rtol=5e-4), err_tight

    # loose sanity check against the pure f32 reference (bf16 quantization bound)
    ref_f32 = baseline_reference(images, conv_w, bn1, neck_bn)
    err_loose = float(jnp.max(jnp.abs(out - ref_f32)))
    assert jnp.allclose(out, ref_f32, atol=2e-2, rtol=2e-2), err_loose

    print("KERNEL_OK")
</pallas_src>

<mosaic_0001>
module attributes {stable_mosaic.version = 11 : i64} {
  func.func @_baseline_kernel(%arg0: i32, %arg1: memref<2x18x18x4xbf16, #tpu.memory_space<vmem>>, %arg2: memref<9x4x32xbf16, #tpu.memory_space<vmem>>, %arg3: memref<4x32xf32, #tpu.memory_space<vmem>>, %arg4: memref<2x32xf32, #tpu.memory_space<vmem>>) attributes {dimension_semantics = [#tpu.dimension_semantics<parallel>], iteration_bounds = array<i64: 1>, scalar_prefetch = 0 : i64, scratch_operands = 0 : i64, tpu.core_type = #tpu.core_type<tc>, window_params = [{transform_indices = @transform_0, window_bounds = array<i64: 2, 18, 18, 4>}, {pipeline_mode = #tpu.pipeline_mode<synchronous>, transform_indices = @transform_1, window_bounds = array<i64: 9, 4, 32>}, {pipeline_mode = #tpu.pipeline_mode<synchronous>, transform_indices = @transform_2, window_bounds = array<i64: 4, 32>}, {transform_indices = @transform_3, window_bounds = array<i64: 2, 32>}]} {
    %cst = arith.constant 0.000000e+00 : f32
    %0 = vector.broadcast %cst : f32 to vector<512x32xf32>
    %c0 = arith.constant 0 : index
    %c0_0 = arith.constant 0 : index
    %c0_1 = arith.constant 0 : index
    %c0_2 = arith.constant 0 : index
    %1 = vector.load %arg1[%c0, %c0_0, %c0_1, %c0_2] : memref<2x18x18x4xbf16, #tpu.memory_space<vmem>>, vector<2x16x16x4xbf16>
    %2 = vector.shape_cast %1 : vector<2x16x16x4xbf16> to vector<512x4xbf16>
    %c0_3 = arith.constant 0 : index
    %c0_4 = arith.constant 0 : index
    %c0_5 = arith.constant 0 : index
    %3 = vector.load %arg2[%c0_3, %c0_4, %c0_5] : memref<9x4x32xbf16, #tpu.memory_space<vmem>>, vector<1x4x32xbf16>
    %4 = vector.shape_cast %3 : vector<1x4x32xbf16> to vector<4x32xbf16>
    %cst_6 = arith.constant dense<0.000000e+00> : vector<512x32xf32>
    %5 = tpu.matmul %2, %4, %cst_6 {dimension_numbers = #tpu.dot_dimension_numbers<[1], [0], [0], [1], [0, 0, 1, 1], [], []>} : vector<512x4xbf16>, vector<4x32xbf16>, vector<512x32xf32> -> vector<512x32xf32>
    %6 = arith.addf %0, %5 : vector<512x32xf32>
    %c0_7 = arith.constant 0 : index
    %c0_8 = arith.constant 0 : index
    %c1 = arith.constant 1 : index
    %c0_9 = arith.constant 0 : index
    %7 = vector.load %arg1[%c0_7, %c0_8, %c1, %c0_9] : memref<2x18x18x4xbf16, #tpu.memory_space<vmem>>, vector<2x16x16x4xbf16>
    %8 = vector.shape_cast %7 : vector<2x16x16x4xbf16> to vector<512x4xbf16>
    %c1_10 = arith.constant 1 : index
    %c0_11 = arith.constant 0 : index
    %c0_12 = arith.constant 0 : index
    %9 = vector.load %arg2[%c1_10, %c0_11, %c0_12] : memref<9x4x32xbf16, #tpu.memory_space<vmem>>, vector<1x4x32xbf16>
    %10 = vector.shape_cast %9 : vector<1x4x32xbf16> to vector<4x32xbf16>
    %cst_13 = arith.constant dense<0.000000e+00> : vector<512x32xf32>
    %11 = tpu.matmul %8, %10, %cst_13 {dimension_numbers = #tpu.dot_dimension_numbers<[1], [0], [0], [1], [0, 0, 1, 1], [], []>} : vector<512x4xbf16>, vector<4x32xbf16>, vector<512x32xf32> -> vector<512x32xf32>
    %12 = arith.addf %6, %11 : vector<512x32xf32>
    %c0_14 = arith.constant 0 : index
    %c0_15 = arith.constant 0 : index
    %c2 = arith.constant 2 : index
    %c0_16 = arith.constant 0 : index
    %13 = vector.load %arg1[%c0_14, %c0_15, %c2, %c0_16] : memref<2x18x18x4xbf16, #tpu.memory_space<vmem>>, vector<2x16x16x4xbf16>
    %14 = vector.shape_cast %13 : vector<2x16x16x4xbf16> to vector<512x4xbf16>
    %c2_17 = arith.constant 2 : index
    %c0_18 = arith.constant 0 : index
    %c0_19 = arith.constant 0 : index
    %15 = vector.load %arg2[%c2_17, %c0_18, %c0_19] : memref<9x4x32xbf16, #tpu.memory_space<vmem>>, vector<1x4x32xbf16>
    %16 = vector.shape_cast %15 : vector<1x4x32xbf16> to vector<4x32xbf16>
    %cst_20 = arith.constant dense<0.000000e+00> : vector<512x32xf32>
    %17 = tpu.matmul %14, %16, %cst_20 {dimension_numbers = #tpu.dot_dimension_numbers<[1], [0], [0], [1], [0, 0, 1, 1], [], []>} : vector<512x4xbf16>, vector<4x32xbf16>, vector<512x32xf32> -> vector<512x32xf32>
    %18 = arith.addf %12, %17 : vector<512x32xf32>
    %c0_21 = arith.constant 0 : index
    %c1_22 = arith.constant 1 : index
    %c0_23 = arith.constant 0 : index
    %c0_24 = arith.constant 0 : index
    %19 = vector.load %arg1[%c0_21, %c1_22, %c0_23, %c0_24] : memref<2x18x18x4xbf16, #tpu.memory_space<vmem>>, vector<2x16x16x4xbf16>
    %20 = vector.shape_cast %19 : vector<2x16x16x4xbf16> to vector<512x4xbf16>
    %c3 = arith.constant 3 : index
    %c0_25 = arith.constant 0 : index
    %c0_26 = arith.constant 0 : index
    %21 = vector.load %arg2[%c3, %c0_25, %c0_26] : memref<9x4x32xbf16, #tpu.memory_space<vmem>>, vector<1x4x32xbf16>
    %22 = vector.shape_cast %21 : vector<1x4x32xbf16> to vector<4x32xbf16>
    %cst_27 = arith.constant dense<0.000000e+00> : vector<512x32xf32>
    %23 = tpu.matmul %20, %22, %cst_27 {dimension_numbers = #tpu.dot_dimension_numbers<[1], [0], [0], [1], [0, 0, 1, 1], [], []>} : vector<512x4xbf16>, vector<4x32xbf16>, vector<512x32xf32> -> vector<512x32xf32>
    %24 = arith.addf %18, %23 : vector<512x32xf32>
    %c0_28 = arith.constant 0 : index
    %c1_29 = arith.constant 1 : index
    %c1_30 = arith.constant 1 : index
    %c0_31 = arith.constant 0 : index
    %25 = vector.load %arg1[%c0_28, %c1_29, %c1_30, %c0_31] : memref<2x18x18x4xbf16, #tpu.memory_space<vmem>>, vector<2x16x16x4xbf16>
    %26 = vector.shape_cast %25 : vector<2x16x16x4xbf16> to vector<512x4xbf16>
    %c4 = arith.constant 4 : index
    %c0_32 = arith.constant 0 : index
    %c0_33 = arith.constant 0 : index
    %27 = vector.load %arg2[%c4, %c0_32, %c0_33] : memref<9x4x32xbf16, #tpu.memory_space<vmem>>, vector<1x4x32xbf16>
    %28 = vector.shape_cast %27 : vector<1x4x32xbf16> to vector<4x32xbf16>
    %cst_34 = arith.constant dense<0.000000e+00> : vector<512x32xf32>
    %29 = tpu.matmul %26, %28, %cst_34 {dimension_numbers = #tpu.dot_dimension_numbers<[1], [0], [0], [1], [0, 0, 1, 1], [], []>} : vector<512x4xbf16>, vector<4x32xbf16>, vector<512x32xf32> -> vector<512x32xf32>
    %30 = arith.addf %24, %29 : vector<512x32xf32>
    %c0_35 = arith.constant 0 : index
    %c1_36 = arith.constant 1 : index
    %c2_37 = arith.constant 2 : index
    %c0_38 = arith.constant 0 : index
    %31 = vector.load %arg1[%c0_35, %c1_36, %c2_37, %c0_38] : memref<2x18x18x4xbf16, #tpu.memory_space<vmem>>, vector<2x16x16x4xbf16>
    %32 = vector.shape_cast %31 : vector<2x16x16x4xbf16> to vector<512x4xbf16>
    %c5 = arith.constant 5 : index
    %c0_39 = arith.constant 0 : index
    %c0_40 = arith.constant 0 : index
    %33 = vector.load %arg2[%c5, %c0_39, %c0_40] : memref<9x4x32xbf16, #tpu.memory_space<vmem>>, vector<1x4x32xbf16>
    %34 = vector.shape_cast %33 : vector<1x4x32xbf16> to vector<4x32xbf16>
    %cst_41 = arith.constant dense<0.000000e+00> : vector<512x32xf32>
    %35 = tpu.matmul %32, %34, %cst_41 {dimension_numbers = #tpu.dot_dimension_numbers<[1], [0], [0], [1], [0, 0, 1, 1], [], []>} : vector<512x4xbf16>, vector<4x32xbf16>, vector<512x32xf32> -> vector<512x32xf32>
    %36 = arith.addf %30, %35 : vector<512x32xf32>
    %c0_42 = arith.constant 0 : index
    %c2_43 = arith.constant 2 : index
    %c0_44 = arith.constant 0 : index
    %c0_45 = arith.constant 0 : index
    %37 = vector.load %arg1[%c0_42, %c2_43, %c0_44, %c0_45] : memref<2x18x18x4xbf16, #tpu.memory_space<vmem>>, vector<2x16x16x4xbf16>
    %38 = vector.shape_cast %37 : vector<2x16x16x4xbf16> to vector<512x4xbf16>
    %c6 = arith.constant 6 : index
    %c0_46 = arith.constant 0 : index
    %c0_47 = arith.constant 0 : index
    %39 = vector.load %arg2[%c6, %c0_46, %c0_47] : memref<9x4x32xbf16, #tpu.memory_space<vmem>>, vector<1x4x32xbf16>
    %40 = vector.shape_cast %39 : vector<1x4x32xbf16> to vector<4x32xbf16>
    %cst_48 = arith.constant dense<0.000000e+00> : vector<512x32xf32>
    %41 = tpu.matmul %38, %40, %cst_48 {dimension_numbers = #tpu.dot_dimension_numbers<[1], [0], [0], [1], [0, 0, 1, 1], [], []>} : vector<512x4xbf16>, vector<4x32xbf16>, vector<512x32xf32> -> vector<512x32xf32>
    %42 = arith.addf %36, %41 : vector<512x32xf32>
    %c0_49 = arith.constant 0 : index
    %c2_50 = arith.constant 2 : index
    %c1_51 = arith.constant 1 : index
    %c0_52 = arith.constant 0 : index
    %43 = vector.load %arg1[%c0_49, %c2_50, %c1_51, %c0_52] : memref<2x18x18x4xbf16, #tpu.memory_space<vmem>>, vector<2x16x16x4xbf16>
    %44 = vector.shape_cast %43 : vector<2x16x16x4xbf16> to vector<512x4xbf16>
    %c7 = arith.constant 7 : index
    %c0_53 = arith.constant 0 : index
    %c0_54 = arith.constant 0 : index
    %45 = vector.load %arg2[%c7, %c0_53, %c0_54] : memref<9x4x32xbf16, #tpu.memory_space<vmem>>, vector<1x4x32xbf16>
    %46 = vector.shape_cast %45 : vector<1x4x32xbf16> to vector<4x32xbf16>
    %cst_55 = arith.constant dense<0.000000e+00> : vector<512x32xf32>
    %47 = tpu.matmul %44, %46, %cst_55 {dimension_numbers = #tpu.dot_dimension_numbers<[1], [0], [0], [1], [0, 0, 1, 1], [], []>} : vector<512x4xbf16>, vector<4x32xbf16>, vector<512x32xf32> -> vector<512x32xf32>
    %48 = arith.addf %42, %47 : vector<512x32xf32>
    %c0_56 = arith.constant 0 : index
    %c2_57 = arith.constant 2 : index
    %c2_58 = arith.constant 2 : index
    %c0_59 = arith.constant 0 : index
    %49 = vector.load %arg1[%c0_56, %c2_57, %c2_58, %c0_59] : memref<2x18x18x4xbf16, #tpu.memory_space<vmem>>, vector<2x16x16x4xbf16>
    %50 = vector.shape_cast %49 : vector<2x16x16x4xbf16> to vector<512x4xbf16>
    %c8 = arith.constant 8 : index
    %c0_60 = arith.constant 0 : index
    %c0_61 = arith.constant 0 : index
    %51 = vector.load %arg2[%c8, %c0_60, %c0_61] : memref<9x4x32xbf16, #tpu.memory_space<vmem>>, vector<1x4x32xbf16>
    %52 = vector.shape_cast %51 : vector<1x4x32xbf16> to vector<4x32xbf16>
    %cst_62 = arith.constant dense<0.000000e+00> : vector<512x32xf32>
    %53 = tpu.matmul %50, %52, %cst_62 {dimension_numbers = #tpu.dot_dimension_numbers<[1], [0], [0], [1], [0, 0, 1, 1], [], []>} : vector<512x4xbf16>, vector<4x32xbf16>, vector<512x32xf32> -> vector<512x32xf32>
    %54 = arith.addf %48, %53 : vector<512x32xf32>
    %c0_63 = arith.constant 0 : index
    %c0_64 = arith.constant 0 : index
    %55 = vector.load %arg3[%c0_63, %c0_64] : memref<4x32xf32, #tpu.memory_space<vmem>>, vector<1x32xf32>
    %c1_65 = arith.constant 1 : index
    %c0_66 = arith.constant 0 : index
    %56 = vector.load %arg3[%c1_65, %c0_66] : memref<4x32xf32, #tpu.memory_space<vmem>>, vector<1x32xf32>
    %c2_67 = arith.constant 2 : index
    %c0_68 = arith.constant 0 : index
    %57 = vector.load %arg3[%c2_67, %c0_68] : memref<4x32xf32, #tpu.memory_space<vmem>>, vector<1x32xf32>
    %c3_69 = arith.constant 3 : index
    %c0_70 = arith.constant 0 : index
    %58 = vector.load %arg3[%c3_69, %c0_70] : memref<4x32xf32, #tpu.memory_space<vmem>>, vector<1x32xf32>
    %59 = vector.broadcast %55 : vector<1x32xf32> to vector<512x32xf32>
    %60 = arith.mulf %54, %59 : vector<512x32xf32>
    %61 = vector.broadcast %56 : vector<1x32xf32> to vector<512x32xf32>
    %62 = arith.addf %60, %61 : vector<512x32xf32>
    %cst_71 = arith.constant 0.000000e+00 : f32
    %63 = vector.broadcast %cst_71 : f32 to vector<512x32xf32>
    %64 = arith.maximumf %62, %63 : vector<512x32xf32>
    %65 = vector.shape_cast %64 : vector<512x32xf32> to vector<2x256x32xf32>
    %cst_72 = arith.constant dense<0.000000e+00> : vector<2x32xf32>
    %66 = vector.multi_reduction <add>, %65, %cst_72 [1] : vector<2x256x32xf32> to vector<2x32xf32>
    %cst_73 = arith.constant 3.906250e-03 : f32
    %67 = vector.broadcast %cst_73 : f32 to vector<2x32xf32>
    %68 = arith.mulf %66, %67 : vector<2x32xf32>
    %69 = vector.broadcast %57 : vector<1x32xf32> to vector<2x32xf32>
    %70 = arith.mulf %68, %69 : vector<2x32xf32>
    %71 = vector.broadcast %58 : vector<1x32xf32> to vector<2x32xf32>
    %72 = arith.addf %70, %71 : vector<2x32xf32>
    %c0_74 = arith.constant 0 : index
    %c0_75 = arith.constant 0 : index
    %73 = vector.load %arg4[%c0_74, %c0_75] : memref<2x32xf32, #tpu.memory_space<vmem>>, vector<2x32xf32>
    tpu.vector_store %arg4[%c0_74, %c0_75], %72 {strides = array<i32>} : memref<2x32xf32, #tpu.memory_space<vmem>>, vector<2x32xf32>,
    return
  }
  func.func @transform_0(%arg0: i32) -> (i32, i32, i32, i32) {
    %c0_i32 = arith.constant 0 : i32
    %c0_i32_0 = arith.constant 0 : i32
    %c0_i32_1 = arith.constant 0 : i32
    %c0_i32_2 = arith.constant 0 : i32
    return %arg0, %c0_i32, %c0_i32_0, %c0_i32_1 : i32, i32, i32, i32
  }
  func.func @transform_1(%arg0: i32) -> (i32, i32, i32) {
    %c0_i32 = arith.constant 0 : i32
    %c0_i32_0 = arith.constant 0 : i32
    %c0_i32_1 = arith.constant 0 : i32
    %c0_i32_2 = arith.constant 0 : i32
    return %c0_i32, %c0_i32_0, %c0_i32_1 : i32, i32, i32
  }
  func.func @transform_2(%arg0: i32) -> (i32, i32) {
    %c0_i32 = arith.constant 0 : i32
    %c0_i32_0 = arith.constant 0 : i32
    %c0_i32_1 = arith.constant 0 : i32
    return %c0_i32, %c0_i32_0 : i32, i32
  }
  func.func @transform_3(%arg0: i32) -> (i32, i32) {
    %c0_i32 = arith.constant 0 : i32
    %c0_i32_0 = arith.constant 0 : i32
    return %arg0, %c0_i32 : i32, i32
  }
}

</mosaic_0001>

<llo_original>
// kernel: tpu_custom_call.1
$region0: #{tpu_custom_call.1}
  #allocation0 [shape = 'u32[]', space=smem, size = 0x4, offset = 0x4, fixed_abs, tag = 'smem constant byte address 0x4 - core index']
  #allocation1 [shape = 'u32[72,128]{1,0:T(1,128)}', space=vmem, size = 0x9000, scoped, tag = 'internal scratch']
  %s0 = inlined_call_operand.vmem [shape: bf16[2,18,18,4], index: 0, kind: input, shape index: {}]
  %s1 = inlined_call_operand.vmem [shape: bf16[9,4,32], index: 1, kind: input, shape index: {}]
  %s2 = inlined_call_operand.vmem [shape: f32[4,32], index: 2, kind: input, shape index: {}]
  %s3 = inlined_call_operand.hbm [shape: f32[2,32], index: 3, kind: output, shape index: {}]
  %s4 = sld [smem:[#allocation0]]
  $region22: #{tpu_custom_call.1} parent=0
    _
  %s6 = ssub.s32 1, %s4
  %s7 = scalar_select 0, %s6, %s4
  $region1: #{tpu_custom_call.1} parent=0
    #allocation2 [shape = 'u8[1024]{0}', space=vmem, size = 0x400, scoped, tag = 'output window, operand 0, single buffered']
    #allocation3 [shape = 's32[1]{0}', space=sflag, size = 0x4, scoped, tag = 'scoped memory for tpu_custom_call.1']
    %8 = vsyncpa [#allocation3], 0
    // Predicated region
    $region2: #{tpu_custom_call.1} parent=1 // pred_check
      _
    $region3: #{tpu_custom_call.1} parent=1 // pred_check_branch
      %10 = sbr.rel (0) target = $region5
    $region4: #{tpu_custom_call.1} parent=1 // pred_region
      _
    $region5: #{tpu_custom_call.1} parent=1 // pred_fallthru
      _
    // Predicated region
    $region6: #{tpu_custom_call.1} parent=1 // pred_check
      _
    $region7: #{tpu_custom_call.1} parent=1 // pred_check_branch
      %12 = sbr.rel (0) target = $region9
    $region8: #{tpu_custom_call.1} parent=1 // pred_region
      _
    $region9: #{tpu_custom_call.1} parent=1 // pred_fallthru
      _
    // Predicated region
    $region10: #{tpu_custom_call.1} parent=1 // pred_check
      _
    $region11: #{tpu_custom_call.1} parent=1 // pred_check_branch
      %14 = sbr.rel (0) target = $region13
    $region12: #{tpu_custom_call.1} parent=1 // pred_region
      _
    $region13: #{tpu_custom_call.1} parent=1 // pred_fallthru
      _
    %v16 = vld [vmem:[%s0] sm:$0xf]
    %v17 = vld [vmem:[%s0 + $0x4] sm:$0xf]
    %v18 = vld [vmem:[%s0 + $0xc] sm:$0xf]
    %v19 = vld [vmem:[%s0 + $0x10] sm:$0xf]
    %v20 = vld [vmem:[%s0 + $0x18] sm:$0xf]
    %v21 = vld [vmem:[%s0 + $0x1c] sm:$0xf]
    %v22 = vld [vmem:[%s0 + $0x24] sm:$0xf]
    %v23 = vld [vmem:[%s0 + $0x28] sm:$0xf]
    %v24 = vld [vmem:[%s0 + $0x30] sm:$0xf]
    %v25 = vld [vmem:[%s0 + $0x34] sm:$0xf]
    %v26 = vld [vmem:[%s0 + $0x3c] sm:$0xf]
    %v27 = vld [vmem:[%s0 + $0x40] sm:$0xf]
    %v28 = vld [vmem:[%s0 + $0x48] sm:$0xf]
    %v29 = vld [vmem:[%s0 + $0x4c] sm:$0xf]
    %v30 = vld [vmem:[%s0 + $0x54] sm:$0xf]
    %v31 = vld [vmem:[%s0 + $0x58] sm:$0xf]
    %v32 = vld [vmem:[%s0 + $0x60] sm:$0xf]
    %v33 = vld [vmem:[%s0 + $0x64] sm:$0xf]
    %v34 = vld [vmem:[%s0 + $0x6c] sm:$0xf]
    %v35 = vld [vmem:[%s0 + $0x70] sm:$0xf]
    %v36 = vld [vmem:[%s0 + $0x78] sm:$0xf]
    %v37 = vld [vmem:[%s0 + $0x7c] sm:$0xf]
    %v38 = vld [vmem:[%s0 + $0x84] sm:$0xf]
    %v39 = vld [vmem:[%s0 + $0x88] sm:$0xf]
    %v40 = vld [vmem:[%s0 + $0x90] sm:$0xf]
    %v41 = vld [vmem:[%s0 + $0x94] sm:$0xf]
    %v42 = vld [vmem:[%s0 + $0x9c] sm:$0xf]
    %v43 = vld [vmem:[%s0 + $0xa0] sm:$0xf]
    %v44 = vld [vmem:[%s0 + $0xa8] sm:$0xf]
    %v45 = vld [vmem:[%s0 + $0xac] sm:$0xf]
    %v46 = vld [vmem:[%s0 + $0xb4] sm:$0xf]
    %v47 = vld [vmem:[%s0 + $0xb8] sm:$0xf]
    %v48 = vld [vmem:[%s0 + $0xd8] sm:$0xf]
    %v49 = vld [vmem:[%s0 + $0xdc] sm:$0xf]
    %v50 = vld [vmem:[%s0 + $0xe4] sm:$0xf]
    %v51 = vld [vmem:[%s0 + $0xe8] sm:$0xf]
    %v52 = vld [vmem:[%s0 + $0xf0] sm:$0xf]
    %v53 = vld [vmem:[%s0 + $0xf4] sm:$0xf]
    %v54 = vld [vmem:[%s0 + $0xfc] sm:$0xf]
    %v55 = vld [vmem:[%s0 + $0x100] sm:$0xf]
    %v56 = vld [vmem:[%s0 + $0x108] sm:$0xf]
    %v57 = vld [vmem:[%s0 + $0x10c] sm:$0xf]
    %v58 = vld [vmem:[%s0 + $0x114] sm:$0xf]
    %v59 = vld [vmem:[%s0 + $0x118] sm:$0xf]
    %v60 = vld [vmem:[%s0 + $0x120] sm:$0xf]
    %v61 = vld [vmem:[%s0 + $0x124] sm:$0xf]
    %v62 = vld [vmem:[%s0 + $0x12c] sm:$0xf]
    %v63 = vld [vmem:[%s0 + $0x130] sm:$0xf]
    %v64 = vld [vmem:[%s0 + $0x138] sm:$0xf]
    %v65 = vld [vmem:[%s0 + $0x13c] sm:$0xf]
    %v66 = vld [vmem:[%s0 + $0x144] sm:$0xf]
    %v67 = vld [vmem:[%s0 + $0x148] sm:$0xf]
    %v68 = vld [vmem:[%s0 + $0x150] sm:$0xf]
    %v69 = vld [vmem:[%s0 + $0x154] sm:$0xf]
    %v70 = vld [vmem:[%s0 + $0x15c] sm:$0xf]
    %v71 = vld [vmem:[%s0 + $0x160] sm:$0xf]
    %v72 = vld [vmem:[%s0 + $0x168] sm:$0xf]
    %v73 = vld [vmem:[%s0 + $0x16c] sm:$0xf]
    %v74 = vld [vmem:[%s0 + $0x174] sm:$0xf]
    %v75 = vld [vmem:[%s0 + $0x178] sm:$0xf]
    %v76 = vld [vmem:[%s0 + $0x180] sm:$0xf]
    %v77 = vld [vmem:[%s0 + $0x184] sm:$0xf]
    %v78 = vld [vmem:[%s0 + $0x18c] sm:$0xf]
    %v79 = vld [vmem:[%s0 + $0x190] sm:$0xf]
    %v80 = vld [vmem:[%s1] sm:$0x3]
    %v81 = vld [vmem:[%s0 + $0x8] sm:$0x1]
    %v82 = vld [vmem:[%s0 + $0x14] sm:$0x1]
    %v83 = vld [vmem:[%s0 + $0x20] sm:$0x1]
    %v84 = vld [vmem:[%s0 + $0x2c] sm:$0x1]
    %v85 = vld [vmem:[%s0 + $0x38] sm:$0x1]
    %v86 = vld [vmem:[%s0 + $0x44] sm:$0x1]
    %v87 = vld [vmem:[%s0 + $0x50] sm:$0x1]
    %v88 = vld [vmem:[%s0 + $0x5c] sm:$0x1]
    %v89 = vld [vmem:[%s0 + $0x68] sm:$0x1]
    %v90 = vld [vmem:[%s0 + $0x74] sm:$0x1]
    %v91 = vld [vmem:[%s0 + $0x80] sm:$0x1]
    %v92 = vld [vmem:[%s0 + $0x8c] sm:$0x1]
    %v93 = vld [vmem:[%s0 + $0x98] sm:$0x1]
    %v94 = vld [vmem:[%s0 + $0xa4] sm:$0x1]
    %v95 = vld [vmem:[%s0 + $0xb0] sm:$0x1]
    %v96 = vld [vmem:[%s0 + $0xbc] sm:$0x1]
    %v97 = vld [vmem:[%s0 + $0xe0] sm:$0x1]
    %v98 = vld [vmem:[%s0 + $0xec] sm:$0x1]
    %v99 = vld [vmem:[%s0 + $0xf8] sm:$0x1]
    %v100 = vld [vmem:[%s0 + $0x104] sm:$0x1]
    %v101 = vld [vmem:[%s0 + $0x110] sm:$0x1]
    %v102 = vld [vmem:[%s0 + $0x11c] sm:$0x1]
    %v103 = vld [vmem:[%s0 + $0x128] sm:$0x1]
    %v104 = vld [vmem:[%s0 + $0x134] sm:$0x1]
    %v105 = vld [vmem:[%s0 + $0x140] sm:$0x1]
    %v106 = vld [vmem:[%s0 + $0x14c] sm:$0x1]
    %v107 = vld [vmem:[%s0 + $0x158] sm:$0x1]
    %v108 = vld [vmem:[%s0 + $0x164] sm:$0x1]
    %v109 = vld [vmem:[%s0 + $0x170] sm:$0x1]
    %v110 = vld [vmem:[%s0 + $0x17c] sm:$0x1]
    %v111 = vld [vmem:[%s0 + $0x188] sm:$0x1]
    %v112 = vld [vmem:[%s0 + $0x194] sm:$0x1]
    %vm113 = vsmask.f32 3328
    %vm114 = vsmask.f32 7440
    %vm115 = vmor %vm113, %vm114
    %v117 = vshrl.u32 %v16, 16
    %v119 = vrot.slane %v117, 4
    %v120 = vshll.u32 %v16, 16
    %v122 = vrot.slane %v120, 5
    %v123 = vor.u32 %v119, %v122
    %v124 = vrot.slane %v123, 4
    %v126 = vshll.u32 %v17, 16
    %v128 = vrot.slane %v126, 5
    %v129 = vsel %vm115, %v124, %v128
    %v130 = vshrl.u32 %v17, 16
    %v132 = vrot.slane %v130, 4
    %v133 = vor.u32 %v132, %v128
    %v134 = vrot.slane %v133, 4
    %v136 = vshll.u32 %v81, 16
    %v138 = vrot.slane %v136, 5
    %v139 = vsel %vm115, %v134, %v138
    %v141 = vshrl.u32 %v18, 16
    %v143 = vrot.slane %v141, 4
    %v144 = vshll.u32 %v18, 16
    %v146 = vrot.slane %v144, 5
    %v147 = vor.u32 %v143, %v146
    %v148 = vrot.slane %v147, 4
    %v150 = vshll.u32 %v19, 16
    %v152 = vrot.slane %v150, 5
    %v153 = vsel %vm115, %v148, %v152
    %v154 = vshrl.u32 %v19, 16
    %v156 = vrot.slane %v154, 4
    %v157 = vor.u32 %v156, %v152
    %v158 = vrot.slane %v157, 4
    %v160 = vshll.u32 %v82, 16
    %v162 = vrot.slane %v160, 5
    %v163 = vsel %vm115, %v158, %v162
    %v165 = vshrl.u32 %v20, 16
    %v167 = vrot.slane %v165, 4
    %v168 = vshll.u32 %v20, 16
    %v170 = vrot.slane %v168, 5
    %v171 = vor.u32 %v167, %v170
    %v172 = vrot.slane %v171, 4
    %v174 = vshll.u32 %v21, 16
    %v176 = vrot.slane %v174, 5
    %v177 = vsel %vm115, %v172, %v176
    %v178 = vshrl.u32 %v21, 16
    %v180 = vrot.slane %v178, 4
    %v181 = vor.u32 %v180, %v176
    %v182 = vrot.slane %v181, 4
    %v184 = vshll.u32 %v83, 16
    %v186 = vrot.slane %v184, 5
    %v187 = vsel %vm115, %v182, %v186
    %v189 = vshrl.u32 %v22, 16
    %v191 = vrot.slane %v189, 4
    %v192 = vshll.u32 %v22, 16
    %v194 = vrot.slane %v192, 5
    %v195 = vor.u32 %v191, %v194
    %v196 = vrot.slane %v195, 4
    %v198 = vshll.u32 %v23, 16
    %v200 = vrot.slane %v198, 5
    %v201 = vsel %vm115, %v196, %v200
    %v202 = vshrl.u32 %v23, 16
    %v204 = vrot.slane %v202, 4
    %v205 = vor.u32 %v204, %v200
    %v206 = vrot.slane %v205, 4
    %v208 = vshll.u32 %v84, 16
    %v210 = vrot.slane %v208, 5
    %v211 = vsel %vm115, %v206, %v210
    %v213 = vshrl.u32 %v24, 16
    %v215 = vrot.slane %v213, 4
    %v216 = vshll.u32 %v24, 16
    %v218 = vrot.slane %v216, 5
    %v219 = vor.u32 %v215, %v218
    %v220 = vrot.slane %v219, 4
    %v222 = vshll.u32 %v25, 16
    %v224 = vrot.slane %v222, 5
    %v225 = vsel %vm115, %v220, %v224
    %v226 = vshrl.u32 %v25, 16
    %v228 = vrot.slane %v226, 4
    %v229 = vor.u32 %v228, %v224
    %v230 = vrot.slane %v229, 4
    %v232 = vshll.u32 %v85, 16
    %v234 = vrot.slane %v232, 5
    %v235 = vsel %vm115, %v230, %v234
    %v237 = vshrl.u32 %v26, 16
    %v239 = vrot.slane %v237, 4
    %v240 = vshll.u32 %v26, 16
    %v242 = vrot.slane %v240, 5
    %v243 = vor.u32 %v239, %v242
    %v244 = vrot.slane %v243, 4
    %v246 = vshll.u32 %v27, 16
    %v248 = vrot.slane %v246, 5
    %v249 = vsel %vm115, %v244, %v248
    %v250 = vshrl.u32 %v27, 16
    %v252 = vrot.slane %v250, 4
    %v253 = vor.u32 %v252, %v248
    %v254 = vrot.slane %v253, 4
    %v256 = vshll.u32 %v86, 16
    %v258 = vrot.slane %v256, 5
    %v259 = vsel %vm115, %v254, %v258
    %v261 = vshrl.u32 %v28, 16
    %v263 = vrot.slane %v261, 4
    %v264 = vshll.u32 %v28, 16
    %v266 = vrot.slane %v264, 5
    %v267 = vor.u32 %v263, %v266
    %v268 = vrot.slane %v267, 4
    %v270 = vshll.u32 %v29, 16
    %v272 = vrot.slane %v270, 5
    %v273 = vsel %vm115, %v268, %v272
    %v274 = vshrl.u32 %v29, 16
    %v276 = vrot.slane %v274, 4
    %v277 = vor.u32 %v276, %v272
    %v278 = vrot.slane %v277, 4
    %v280 = vshll.u32 %v87, 16
    %v282 = vrot.slane %v280, 5
    %v283 = vsel %vm115, %v278, %v282
    %v285 = vshrl.u32 %v30, 16
    %v287 = vrot.slane %v285, 4
    %v288 = vshll.u32 %v30, 16
    %v290 = vrot.slane %v288, 5
    %v291 = vor.u32 %v287, %v290
    %v292 = vrot.slane %v291, 4
    %v294 = vshll.u32 %v31, 16
    %v296 = vrot.slane %v294, 5
    %v297 = vsel %vm115, %v292, %v296
    %v298 = vshrl.u32 %v31, 16
    %v300 = vrot.slane %v298, 4
    %v301 = vor.u32 %v300, %v296
    %v302 = vrot.slane %v301, 4
    %v304 = vshll.u32 %v88, 16
    %v306 = vrot.slane %v304, 5
    %v307 = vsel %vm115, %v302, %v306
    %v309 = vshrl.u32 %v32, 16
    %v311 = vrot.slane %v309, 4
    %v312 = vshll.u32 %v32, 16
    %v314 = vrot.slane %v312, 5
    %v315 = vor.u32 %v311, %v314
    %v316 = vrot.slane %v315, 4
    %v318 = vshll.u32 %v33, 16
    %v320 = vrot.slane %v318, 5
    %v321 = vsel %vm115, %v316, %v320
    %v322 = vshrl.u32 %v33, 16
    %v324 = vrot.slane %v322, 4
    %v325 = vor.u32 %v324, %v320
    %v326 = vrot.slane %v325, 4
    %v328 = vshll.u32 %v89, 16
    %v330 = vrot.slane %v328, 5
    %v331 = vsel %vm115, %v326, %v330
    %v333 = vshrl.u32 %v34, 16
    %v335 = vrot.slane %v333, 4
    %v336 = vshll.u32 %v34, 16
    %v338 = vrot.slane %v336, 5
    %v339 = vor.u32 %v335, %v338
    %v340 = vrot.slane %v339, 4
    %v342 = vshll.u32 %v35, 16
    %v344 = vrot.slane %v342, 5
    %v345 = vsel %vm115, %v340, %v344
    %v346 = vshrl.u32 %v35, 16
    %v348 = vrot.slane %v346, 4
    %v349 = vor.u32 %v348, %v344
    %v350 = vrot.slane %v349, 4
    %v352 = vshll.u32 %v90, 16
    %v354 = vrot.slane %v352, 5
    %v355 = vsel %vm115, %v350, %v354
    %v357 = vshrl.u32 %v36, 16
    %v359 = vrot.slane %v357, 4
    %v360 = vshll.u32 %v36, 16
    %v362 = vrot.slane %v360, 5
    %v363 = vor.u32 %v359, %v362
    %v364 = vrot.slane %v363, 4
    %v366 = vshll.u32 %v37, 16
    %v368 = vrot.slane %v366, 5
    %v369 = vsel %vm115, %v364, %v368
    %v370 = vshrl.u32 %v37, 16
    %v372 = vrot.slane %v370, 4
    %v373 = vor.u32 %v372, %v368
    %v374 = vrot.slane %v373, 4
    %v376 = vshll.u32 %v91, 16
    %v378 = vrot.slane %v376, 5
    %v379 = vsel %vm115, %v374, %v378
    %v381 = vshrl.u32 %v38, 16
    %v383 = vrot.slane %v381, 4
    %v384 = vshll.u32 %v38, 16
    %v386 = vrot.slane %v384, 5
    %v387 = vor.u32 %v383, %v386
    %v388 = vrot.slane %v387, 4
    %v390 = vshll.u32 %v39, 16
    %v392 = vrot.slane %v390, 5
    %v393 = vsel %vm115, %v388, %v392
    %v394 = vshrl.u32 %v39, 16
    %v396 = vrot.slane %v394, 4
    %v397 = vor.u32 %v396, %v392
    %v398 = vrot.slane %v397, 4
    %v400 = vshll.u32 %v92, 16
    %v402 = vrot.slane %v400, 5
    %v403 = vsel %vm115, %v398, %v402
    %v405 = vshrl.u32 %v40, 16
    %v407 = vrot.slane %v405, 4
    %v408 = vshll.u32 %v40, 16
    %v410 = vrot.slane %v408, 5
    %v411 = vor.u32 %v407, %v410
    %v412 = vrot.slane %v411, 4
    %v414 = vshll.u32 %v41, 16
    %v416 = vrot.slane %v414, 5
    %v417 = vsel %vm115, %v412, %v416
    %v418 = vshrl.u32 %v41, 16
    %v420 = vrot.slane %v418, 4
    %v421 = vor.u32 %v420, %v416
    %v422 = vrot.slane %v421, 4
    %v424 = vshll.u32 %v93, 16
    %v426 = vrot.slane %v424, 5
    %v427 = vsel %vm115, %v422, %v426
    %v429 = vshrl.u32 %v42, 16
    %v431 = vrot.slane %v429, 4
    %v432 = vshll.u32 %v42, 16
    %v434 = vrot.slane %v432, 5
    %v435 = vor.u32 %v431, %v434
    %v436 = vrot.slane %v435, 4
    %v438 = vshll.u32 %v43, 16
    %v440 = vrot.slane %v438, 5
    %v441 = vsel %vm115, %v436, %v440
    %v442 = vshrl.u32 %v43, 16
    %v444 = vrot.slane %v442, 4
    %v445 = vor.u32 %v444, %v440
    %v446 = vrot.slane %v445, 4
    %v448 = vshll.u32 %v94, 16
    %v450 = vrot.slane %v448, 5
    %v451 = vsel %vm115, %v446, %v450
    %v453 = vshrl.u32 %v44, 16
    %v455 = vrot.slane %v453, 4
    %v456 = vshll.u32 %v44, 16
    %v458 = vrot.slane %v456, 5
    %v459 = vor.u32 %v455, %v458
    %v460 = vrot.slane %v459, 4
    %v462 = vshll.u32 %v45, 16
    %v464 = vrot.slane %v462, 5
    %v465 = vsel %vm115, %v460, %v464
    %v466 = vshrl.u32 %v45, 16
    %v468 = vrot.slane %v466, 4
    %v469 = vor.u32 %v468, %v464
    %v470 = vrot.slane %v469, 4
    %v472 = vshll.u32 %v95, 16
    %v474 = vrot.slane %v472, 5
    %v475 = vsel %vm115, %v470, %v474
    %v477 = vshrl.u32 %v46, 16
    %v479 = vrot.slane %v477, 4
    %v480 = vshll.u32 %v46, 16
    %v482 = vrot.slane %v480, 5
    %v483 = vor.u32 %v479, %v482
    %v484 = vrot.slane %v483, 4
    %v486 = vshll.u32 %v47, 16
    %v488 = vrot.slane %v486, 5
    %v489 = vsel %vm115, %v484, %v488
    %v490 = vshrl.u32 %v47, 16
    %v492 = vrot.slane %v490, 4
    %v493 = vor.u32 %v492, %v488
    %v494 = vrot.slane %v493, 4
    %v496 = vshll.u32 %v96, 16
    %v498 = vrot.slane %v496, 5
    %v499 = vsel %vm115, %v494, %v498
    %v501 = vshrl.u32 %v48, 16
    %v503 = vrot.slane %v501, 4
    %v504 = vshll.u32 %v48, 16
    %v506 = vrot.slane %v504, 5
    %v507 = vor.u32 %v503, %v506
    %v508 = vrot.slane %v507, 4
    %v510 = vshll.u32 %v49, 16
    %v512 = vrot.slane %v510, 5
    %v513 = vsel %vm115, %v508, %v512
    %v514 = vshrl.u32 %v49, 16
    %v516 = vrot.slane %v514, 4
    %v517 = vor.u32 %v516, %v512
    %v518 = vrot.slane %v517, 4
    %v520 = vshll.u32 %v97, 16
    %v522 = vrot.slane %v520, 5
    %v523 = vsel %vm115, %v518, %v522
    %v525 = vshrl.u32 %v50, 16
    %v527 = vrot.slane %v525, 4
    %v528 = vshll.u32 %v50, 16
    %v530 = vrot.slane %v528, 5
    %v531 = vor.u32 %v527, %v530
    %v532 = vrot.slane %v531, 4
    %v534 = vshll.u32 %v51, 16
    %v536 = vrot.slane %v534, 5
    %v537 = vsel %vm115, %v532, %v536
    %v538 = vshrl.u32 %v51, 16
    %v540 = vrot.slane %v538, 4
    %v541 = vor.u32 %v540, %v536
    %v542 = vrot.slane %v541, 4
    %v544 = vshll.u32 %v98, 16
    %v546 = vrot.slane %v544, 5
    %v547 = vsel %vm115, %v542, %v546
    %v549 = vshrl.u32 %v52, 16
    %v551 = vrot.slane %v549, 4
    %v552 = vshll.u32 %v52, 16
    %v554 = vrot.slane %v552, 5
    %v555 = vor.u32 %v551, %v554
    %v556 = vrot.slane %v555, 4
    %v558 = vshll.u32 %v53, 16
    %v560 = vrot.slane %v558, 5
    %v561 = vsel %vm115, %v556, %v560
    %v562 = vshrl.u32 %v53, 16
    %v564 = vrot.slane %v562, 4
    %v565 = vor.u32 %v564, %v560
    %v566 = vrot.slane %v565, 4
    %v568 = vshll.u32 %v99, 16
    %v570 = vrot.slane %v568, 5
    %v571 = vsel %vm115, %v566, %v570
    %v573 = vshrl.u32 %v54, 16
    %v575 = vrot.slane %v573, 4
    %v576 = vshll.u32 %v54, 16
    %v578 = vrot.slane %v576, 5
    %v579 = vor.u32 %v575, %v578
    %v580 = vrot.slane %v579, 4
    %v582 = vshll.u32 %v55, 16
    %v584 = vrot.slane %v582, 5
    %v585 = vsel %vm115, %v580, %v584
    %v586 = vshrl.u32 %v55, 16
    %v588 = vrot.slane %v586, 4
    %v589 = vor.u32 %v588, %v584
    %v590 = vrot.slane %v589, 4
    %v592 = vshll.u32 %v100, 16
    %v594 = vrot.slane %v592, 5
    %v595 = vsel %vm115, %v590, %v594
    %v597 = vshrl.u32 %v56, 16
    %v599 = vrot.slane %v597, 4
    %v600 = vshll.u32 %v56, 16
    %v602 = vrot.slane %v600, 5
    %v603 = vor.u32 %v599, %v602
    %v604 = vrot.slane %v603, 4
    %v606 = vshll.u32 %v57, 16
    %v608 = vrot.slane %v606, 5
    %v609 = vsel %vm115, %v604, %v608
    %v610 = vshrl.u32 %v57, 16
    %v612 = vrot.slane %v610, 4
    %v613 = vor.u32 %v612, %v608
    %v614 = vrot.slane %v613, 4
    %v616 = vshll.u32 %v101, 16
    %v618 = vrot.slane %v616, 5
    %v619 = vsel %vm115, %v614, %v618
    %v621 = vshrl.u32 %v58, 16
    %v623 = vrot.slane %v621, 4
    %v624 = vshll.u32 %v58, 16
    %v626 = vrot.slane %v624, 5
    %v627 = vor.u32 %v623, %v626
    %v628 = vrot.slane %v627, 4
    %v630 = vshll.u32 %v59, 16
    %v632 = vrot.slane %v630, 5
    %v633 = vsel %vm115, %v628, %v632
    %v634 = vshrl.u32 %v59, 16
    %v636 = vrot.slane %v634, 4
    %v637 = vor.u32 %v636, %v632
    %v638 = vrot.slane %v637, 4
    %v640 = vshll.u32 %v102, 16
    %v642 = vrot.slane %v640, 5
    %v643 = vsel %vm115, %v638, %v642
    %v645 = vshrl.u32 %v60, 16
    %v647 = vrot.slane %v645, 4
    %v648 = vshll.u32 %v60, 16
    %v650 = vrot.slane %v648, 5
    %v651 = vor.u32 %v647, %v650
    %v652 = vrot.slane %v651, 4
    %v654 = vshll.u32 %v61, 16
    %v656 = vrot.slane %v654, 5
    %v657 = vsel %vm115, %v652, %v656
    %v658 = vshrl.u32 %v61, 16
    %v660 = vrot.slane %v658, 4
    %v661 = vor.u32 %v660, %v656
    %v662 = vrot.slane %v661, 4
    %v664 = vshll.u32 %v103, 16
    %v666 = vrot.slane %v664, 5
    %v667 = vsel %vm115, %v662, %v666
    %v669 = vshrl.u32 %v62, 16
    %v671 = vrot.slane %v669, 4
    %v672 = vshll.u32 %v62, 16
    %v674 = vrot.slane %v672, 5
    %v675 = vor.u32 %v671, %v674
    %v676 = vrot.slane %v675, 4
    %v678 = vshll.u32 %v63, 16
    %v680 = vrot.slane %v678, 5
    %v681 = vsel %vm115, %v676, %v680
    %v682 = vshrl.u32 %v63, 16
    %v684 = vrot.slane %v682, 4
    %v685 = vor.u32 %v684, %v680
    %v686 = vrot.slane %v685, 4
    %v688 = vshll.u32 %v104, 16
    %v690 = vrot.slane %v688, 5
    %v691 = vsel %vm115, %v686, %v690
    %v693 = vshrl.u32 %v64, 16
    %v695 = vrot.slane %v693, 4
    %v696 = vshll.u32 %v64, 16
    %v698 = vrot.slane %v696, 5
    %v699 = vor.u32 %v695, %v698
    %v700 = vrot.slane %v699, 4
    %v702 = vshll.u32 %v65, 16
    %v704 = vrot.slane %v702, 5
    %v705 = vsel %vm115, %v700, %v704
    %v706 = vshrl.u32 %v65, 16
    %v708 = vrot.slane %v706, 4
    %v709 = vor.u32 %v708, %v704
    %v710 = vrot.slane %v709, 4
    %v712 = vshll.u32 %v105, 16
    %v714 = vrot.slane %v712, 5
    %v715 = vsel %vm115, %v710, %v714
    %v717 = vshrl.u32 %v66, 16
    %v719 = vrot.slane %v717, 4
    %v720 = vshll.u32 %v66, 16
    %v722 = vrot.slane %v720, 5
    %v723 = vor.u32 %v719, %v722
    %v724 = vrot.slane %v723, 4
    %v726 = vshll.u32 %v67, 16
    %v728 = vrot.slane %v726, 5
    %v729 = vsel %vm115, %v724, %v728
    %v730 = vshrl.u32 %v67, 16
    %v732 = vrot.slane %v730, 4
    %v733 = vor.u32 %v732, %v728
    %v734 = vrot.slane %v733, 4
    %v736 = vshll.u32 %v106, 16
    %v738 = vrot.slane %v736, 5
    %v739 = vsel %vm115, %v734, %v738
    %v741 = vshrl.u32 %v68, 16
    %v743 = vrot.slane %v741, 4
    %v744 = vshll.u32 %v68, 16
    %v746 = vrot.slane %v744, 5
    %v747 = vor.u32 %v743, %v746
    %v748 = vrot.slane %v747, 4
    %v750 = vshll.u32 %v69, 16
    %v752 = vrot.slane %v750, 5
    %v753 = vsel %vm115, %v748, %v752
    %v754 = vshrl.u32 %v69, 16
    %v756 = vrot.slane %v754, 4
    %v757 = vor.u32 %v756, %v752
    %v758 = vrot.slane %v757, 4
    %v760 = vshll.u32 %v107, 16
    %v762 = vrot.slane %v760, 5
    %v763 = vsel %vm115, %v758, %v762
    %v765 = vshrl.u32 %v70, 16
    %v767 = vrot.slane %v765, 4
    %v768 = vshll.u32 %v70, 16
    %v770 = vrot.slane %v768, 5
    %v771 = vor.u32 %v767, %v770
    %v772 = vrot.slane %v771, 4
    %v774 = vshll.u32 %v71, 16
    %v776 = vrot.slane %v774, 5
    %v777 = vsel %vm115, %v772, %v776
    %v778 = vshrl.u32 %v71, 16
    %v780 = vrot.slane %v778, 4
    %v781 = vor.u32 %v780, %v776
    %v782 = vrot.slane %v781, 4
    %v784 = vshll.u32 %v108, 16
    %v786 = vrot.slane %v784, 5
    %v787 = vsel %vm115, %v782, %v786
    %v789 = vshrl.u32 %v72, 16
    %v791 = vrot.slane %v789, 4
    %v792 = vshll.u32 %v72, 16
    %v794 = vrot.slane %v792, 5
    %v795 = vor.u32 %v791, %v794
    %v796 = vrot.slane %v795, 4
    %v798 = vshll.u32 %v73, 16
    %v800 = vrot.slane %v798, 5
    %v801 = vsel %vm115, %v796, %v800
    %v802 = vshrl.u32 %v73, 16
    %v804 = vrot.slane %v802, 4
    %v805 = vor.u32 %v804, %v800
    %v806 = vrot.slane %v805, 4
    %v808 = vshll.u32 %v109, 16
    %v810 = vrot.slane %v808, 5
    %v811 = vsel %vm115, %v806, %v810
    %v813 = vshrl.u32 %v74, 16
    %v815 = vrot.slane %v813, 4
    %v816 = vshll.u32 %v74, 16
    %v818 = vrot.slane %v816, 5
    %v819 = vor.u32 %v815, %v818
    %v820 = vrot.slane %v819, 4
    %v822 = vshll.u32 %v75, 16
    %v824 = vrot.slane %v822, 5
    %v825 = vsel %vm115, %v820, %v824
    %v826 = vshrl.u32 %v75, 16
    %v828 = vrot.slane %v826, 4
    %v829 = vor.u32 %v828, %v824
    %v830 = vrot.slane %v829, 4
    %v832 = vshll.u32 %v110, 16
    %v834 = vrot.slane %v832, 5
    %v835 = vsel %vm115, %v830, %v834
    %v837 = vshrl.u32 %v76, 16
    %v839 = vrot.slane %v837, 4
    %v840 = vshll.u32 %v76, 16
    %v842 = vrot.slane %v840, 5
    %v843 = vor.u32 %v839, %v842
    %v844 = vrot.slane %v843, 4
    %v846 = vshll.u32 %v77, 16
    %v848 = vrot.slane %v846, 5
    %v849 = vsel %vm115, %v844, %v848
    %v850 = vshrl.u32 %v77, 16
    %v852 = vrot.slane %v850, 4
    %v853 = vor.u32 %v852, %v848
    %v854 = vrot.slane %v853, 4
    %v856 = vshll.u32 %v111, 16
    %v858 = vrot.slane %v856, 5
    %v859 = vsel %vm115, %v854, %v858
    %v861 = vshrl.u32 %v78, 16
    %v863 = vrot.slane %v861, 4
    %v864 = vshll.u32 %v78, 16
    %v866 = vrot.slane %v864, 5
    %v867 = vor.u32 %v863, %v866
    %v868 = vrot.slane %v867, 4
    %v870 = vshll.u32 %v79, 16
    %v872 = vrot.slane %v870, 5
    %v873 = vsel %vm115, %v868, %v872
    %v874 = vshrl.u32 %v79, 16
    %v876 = vrot.slane %v874, 4
    %v877 = vor.u32 %v876, %v872
    %v878 = vrot.slane %v877, 4
    %v880 = vshll.u32 %v112, 16
    %v882 = vrot.slane %v880, 5
    %v883 = vsel %vm115, %v878, %v882
    %s884 = scalar_lea.vmem %s1, 2
    %v885 = vld [vmem:[%s884] sm:$0x3]
    %v886 = vunpack.c.l.b16 %v129
    %v887 = vunpack.c.l.b16 %v139
    %v888 = vunpack.c.l.b16 %v153
    %v889 = vunpack.c.l.b16 %v163
    %v890 = vunpack.c.l.b16 %v177
    %v891 = vunpack.c.l.b16 %v187
    %v892 = vunpack.c.l.b16 %v201
    %v893 = vunpack.c.l.b16 %v211
    %v894 = vunpack.c.l.b16 %v225
    %v895 = vunpack.c.l.b16 %v235
    %v896 = vunpack.c.l.b16 %v249
    %v897 = vunpack.c.l.b16 %v259
    %v898 = vunpack.c.l.b16 %v273
    %v899 = vunpack.c.l.b16 %v283
    %v900 = vunpack.c.l.b16 %v297
    %v901 = vunpack.c.l.b16 %v307
    %v902 = vunpack.c.l.b16 %v321
    %v903 = vunpack.c.l.b16 %v331
    %v904 = vunpack.c.l.b16 %v345
    %v905 = vunpack.c.l.b16 %v355
    %v906 = vunpack.c.l.b16 %v369
    %v907 = vunpack.c.l.b16 %v379
    %v908 = vunpack.c.l.b16 %v393
    %v909 = vunpack.c.l.b16 %v403
    %v910 = vunpack.c.l.b16 %v417
    %v911 = vunpack.c.l.b16 %v427
    %v912 = vunpack.c.l.b16 %v441
    %v913 = vunpack.c.l.b16 %v451
    %v914 = vunpack.c.l.b16 %v465
    %v915 = vunpack.c.l.b16 %v475
    %v916 = vunpack.c.l.b16 %v489
    %v917 = vunpack.c.l.b16 %v499
    %v918 = vunpack.c.l.b16 %v513
    %v919 = vunpack.c.l.b16 %v523
    %v920 = vunpack.c.l.b16 %v537
    %v921 = vunpack.c.l.b16 %v547
    %v922 = vunpack.c.l.b16 %v561
    %v923 = vunpack.c.l.b16 %v571
    %v924 = vunpack.c.l.b16 %v585
    %v925 = vunpack.c.l.b16 %v595
    %v926 = vunpack.c.l.b16 %v609
    %v927 = vunpack.c.l.b16 %v619
    %v928 = vunpack.c.l.b16 %v633
    %v929 = vunpack.c.l.b16 %v643
    %v930 = vunpack.c.l.b16 %v657
    %v931 = vunpack.c.l.b16 %v667
    %v932 = vunpack.c.l.b16 %v681
    %v933 = vunpack.c.l.b16 %v691
    %v934 = vunpack.c.l.b16 %v705
    %v935 = vunpack.c.l.b16 %v715
    %v936 = vunpack.c.l.b16 %v729
    %v937 = vunpack.c.l.b16 %v739
    %v938 = vunpack.c.l.b16 %v753
    %v939 = vunpack.c.l.b16 %v763
    %v940 = vunpack.c.l.b16 %v777
    %v941 = vunpack.c.l.b16 %v787
    %v942 = vunpack.c.l.b16 %v801
    %v943 = vunpack.c.l.b16 %v811
    %v944 = vunpack.c.l.b16 %v825
    %v945 = vunpack.c.l.b16 %v835
    %v946 = vunpack.c.l.b16 %v849
    %v947 = vunpack.c.l.b16 %v859
    %v948 = vunpack.c.l.b16 %v873
    %v949 = vunpack.c.l.b16 %v883
    %v950 = vpack.c.b16 %v887, %v886
    %v951 = vpack.c.b16 %v889, %v888
    %v952 = vpack.c.b16 %v891, %v890
    %v953 = vpack.c.b16 %v893, %v892
    %v954 = vpack.c.b16 %v895, %v894
    %v955 = vpack.c.b16 %v897, %v896
    %v956 = vpack.c.b16 %v899, %v898
    %v957 = vpack.c.b16 %v901, %v900
    %v958 = vpack.c.b16 %v903, %v902
    %v959 = vpack.c.b16 %v905, %v904
    %v960 = vpack.c.b16 %v907, %v906
    %v961 = vpack.c.b16 %v909, %v908
    %v962 = vpack.c.b16 %v911, %v910
    %v963 = vpack.c.b16 %v913, %v912
    %v964 = vpack.c.b16 %v915, %v914
    %v965 = vpack.c.b16 %v917, %v916
    %v966 = vpack.c.b16 %v919, %v918
    %v967 = vpack.c.b16 %v921, %v920
    %v968 = vpack.c.b16 %v923, %v922
    %v969 = vpack.c.b16 %v925, %v924
    %v970 = vpack.c.b16 %v927, %v926
    %v971 = vpack.c.b16 %v929, %v928
    %v972 = vpack.c.b16 %v931, %v930
    %v973 = vpack.c.b16 %v933, %v932
    %v974 = vpack.c.b16 %v935, %v934
    %v975 = vpack.c.b16 %v937, %v936
    %v976 = vpack.c.b16 %v939, %v938
    %v977 = vpack.c.b16 %v941, %v940
    %v978 = vpack.c.b16 %v943, %v942
    %v979 = vpack.c.b16 %v945, %v944
    %v980 = vpack.c.b16 %v947, %v946
    %v981 = vpack.c.b16 %v949, %v948
    %vm982 = vcmask 31744
    %v984 = vsel %vm982, %v950, 0
    %v987 = vsel %vm982, %v951, 0
    %v990 = vsel %vm982, %v952, 0
    %v993 = vsel %vm982, %v953, 0
    %v996 = vsel %vm982, %v954, 0
    %v999 = vsel %vm982, %v955, 0
    %v1002 = vsel %vm982, %v956, 0
    %v1005 = vsel %vm982, %v957, 0
    %v1008 = vsel %vm982, %v958, 0
    %v1011 = vsel %vm982, %v959, 0
    %v1014 = vsel %vm982, %v960, 0
    %v1017 = vsel %vm982, %v961, 0
    %v1020 = vsel %vm982, %v962, 0
    %v1023 = vsel %vm982, %v963, 0
    %v1026 = vsel %vm982, %v964, 0
    %v1029 = vsel %vm982, %v965, 0
    %v1032 = vsel %vm982, %v966, 0
    %v1035 = vsel %vm982, %v967, 0
    %v1038 = vsel %vm982, %v968, 0
    %v1041 = vsel %vm982, %v969, 0
    %v1044 = vsel %vm982, %v970, 0
    %v1047 = vsel %vm982, %v971, 0
    %v1050 = vsel %vm982, %v972, 0
    %v1053 = vsel %vm982, %v973, 0
    %v1056 = vsel %vm982, %v974, 0
    %v1059 = vsel %vm982, %v975, 0
    %v1062 = vsel %vm982, %v976, 0
    %v1065 = vsel %vm982, %v977, 0
    %v1068 = vsel %vm982, %v978, 0
    %v1071 = vsel %vm982, %v979, 0
    %v1074 = vsel %vm982, %v980, 0
    %v1077 = vsel %vm982, %v981, 0
    %vm1079 = vcmask 1041408
    %v1081 = vsel %vm1079, %v885, 0
    %1083 = vmatpush.bf16.msra.mxu0 0
    %1084 = vmatpush.bf16.msra.mxu0 0
    %1085 = vmatpush.bf16.msra.mxu0 0
    %1086 = vmatpush.bf16.msra.mxu0 0
    %1087 = vmatpush.bf16.msra.mxu0 0
    %1088 = vmatpush.bf16.msra.mxu0 0
    %1089 = vmatpush.bf16.msra.mxu0 0
    %1090 = vmatpush.bf16.msra.mxu0 %v1081
    %1091 = vmatmul.bf16.gmra.mxu0 %v984
    %v1092 = vpop.f32.mrf.mxu0
    %v1093 = vadd.f32 0.0, %v1092
    %v1094 = vpop.f32.mrf.mxu0
    %v1095 = vadd.f32 0.0, %v1094
    %1096 = vmatmul.bf16.gmra.mxu0 %v987
    %v1097 = vpop.f32.mrf.mxu0
    %v1098 = vadd.f32 0.0, %v1097
    %v1099 = vpop.f32.mrf.mxu0
    %v1100 = vadd.f32 0.0, %v1099
    %1101 = vmatmul.bf16.gmra.mxu0 %v990
    %v1102 = vpop.f32.mrf.mxu0
    %v1103 = vadd.f32 0.0, %v1102
    %v1104 = vpop.f32.mrf.mxu0
    %v1105 = vadd.f32 0.0, %v1104
    %1106 = vmatmul.bf16.gmra.mxu0 %v993
    %v1107 = vpop.f32.mrf.mxu0
    %v1108 = vadd.f32 0.0, %v1107
    %v1109 = vpop.f32.mrf.mxu0
    %v1110 = vadd.f32 0.0, %v1109
    %1111 = vmatmul.bf16.gmra.mxu0 %v996
    %v1112 = vpop.f32.mrf.mxu0
    %v1113 = vadd.f32 0.0, %v1112
    %v1114 = vpop.f32.mrf.mxu0
    %v1115 = vadd.f32 0.0, %v1114
    %1116 = vmatmul.bf16.gmra.mxu0 %v999
    %v1117 = vpop.f32.mrf.mxu0
    %v1118 = vadd.f32 0.0, %v1117
    %v1119 = vpop.f32.mrf.mxu0
    %v1120 = vadd.f32 0.0, %v1119
    %1121 = vmatmul.bf16.gmra.mxu0 %v1002
    %v1122 = vpop.f32.mrf.mxu0
    %v1123 = vadd.f32 0.0, %v1122
    %v1124 = vpop.f32.mrf.mxu0
    %v1125 = vadd.f32 0.0, %v1124
    %1126 = vmatmul.bf16.gmra.mxu0 %v1005
    %v1127 = vpop.f32.mrf.mxu0
    %v1128 = vadd.f32 0.0, %v1127
    %v1129 = vpop.f32.mrf.mxu0
    %v1130 = vadd.f32 0.0, %v1129
    %1131 = vmatmul.bf16.gmra.mxu0 %v1008
    %v1132 = vpop.f32.mrf.mxu0
    %v1133 = vadd.f32 0.0, %v1132
    %v1134 = vpop.f32.mrf.mxu0
    %v1135 = vadd.f32 0.0, %v1134
    %1136 = vmatmul.bf16.gmra.mxu0 %v1011
    %v1137 = vpop.f32.mrf.mxu0
    %v1138 = vadd.f32 0.0, %v1137
    %v1139 = vpop.f32.mrf.mxu0
    %v1140 = vadd.f32 0.0, %v1139
    %1141 = vmatmul.bf16.gmra.mxu0 %v1014
    %v1142 = vpop.f32.mrf.mxu0
    %v1143 = vadd.f32 0.0, %v1142
    %v1144 = vpop.f32.mrf.mxu0
    %v1145 = vadd.f32 0.0, %v1144
    %1146 = vmatmul.bf16.gmra.mxu0 %v1017
    %v1147 = vpop.f32.mrf.mxu0
    %v1148 = vadd.f32 0.0, %v1147
    %v1149 = vpop.f32.mrf.mxu0
    %v1150 = vadd.f32 0.0, %v1149
    %1151 = vmatmul.bf16.gmra.mxu0 %v1020
    %v1152 = vpop.f32.mrf.mxu0
    %v1153 = vadd.f32 0.0, %v1152
    %v1154 = vpop.f32.mrf.mxu0
    %v1155 = vadd.f32 0.0, %v1154
    %1156 = vmatmul.bf16.gmra.mxu0 %v1023
    %v1157 = vpop.f32.mrf.mxu0
    %v1158 = vadd.f32 0.0, %v1157
    %v1159 = vpop.f32.mrf.mxu0
    %v1160 = vadd.f32 0.0, %v1159
    %1161 = vmatmul.bf16.gmra.mxu0 %v1026
    %v1162 = vpop.f32.mrf.mxu0
    %v1163 = vadd.f32 0.0, %v1162
    %v1164 = vpop.f32.mrf.mxu0
    %v1165 = vadd.f32 0.0, %v1164
    %1166 = vmatmul.bf16.gmra.mxu0 %v1029
    %v1167 = vpop.f32.mrf.mxu0
    %v1168 = vadd.f32 0.0, %v1167
    %v1169 = vpop.f32.mrf.mxu0
    %v1170 = vadd.f32 0.0, %v1169
    %1171 = vmatmul.bf16.gmra.mxu0 %v1032
    %v1172 = vpop.f32.mrf.mxu0
    %v1173 = vadd.f32 0.0, %v1172
    %v1174 = vpop.f32.mrf.mxu0
    %v1175 = vadd.f32 0.0, %v1174
    %1176 = vmatmul.bf16.gmra.mxu0 %v1035
    %v1177 = vpop.f32.mrf.mxu0
    %v1178 = vadd.f32 0.0, %v1177
    %v1179 = vpop.f32.mrf.mxu0
    %v1180 = vadd.f32 0.0, %v1179
    %1181 = vmatmul.bf16.gmra.mxu0 %v1038
    %v1182 = vpop.f32.mrf.mxu0
    %v1183 = vadd.f32 0.0, %v1182
    %v1184 = vpop.f32.mrf.mxu0
    %v1185 = vadd.f32 0.0, %v1184
    %1186 = vmatmul.bf16.gmra.mxu0 %v1041
    %v1187 = vpop.f32.mrf.mxu0
    %v1188 = vadd.f32 0.0, %v1187
    %v1189 = vpop.f32.mrf.mxu0
    %v1190 = vadd.f32 0.0, %v1189
    %1191 = vmatmul.bf16.gmra.mxu0 %v1044
    %v1192 = vpop.f32.mrf.mxu0
    %v1193 = vadd.f32 0.0, %v1192
    %v1194 = vpop.f32.mrf.mxu0
    %v1195 = vadd.f32 0.0, %v1194
    %1196 = vmatmul.bf16.gmra.mxu0 %v1047
    %v1197 = vpop.f32.mrf.mxu0
    %v1198 = vadd.f32 0.0, %v1197
    %v1199 = vpop.f32.mrf.mxu0
    %v1200 = vadd.f32 0.0, %v1199
    %1201 = vmatmul.bf16.gmra.mxu0 %v1050
    %v1202 = vpop.f32.mrf.mxu0
    %v1203 = vadd.f32 0.0, %v1202
    %v1204 = vpop.f32.mrf.mxu0
    %v1205 = vadd.f32 0.0, %v1204
    %1206 = vmatmul.bf16.gmra.mxu0 %v1053
    %v1207 = vpop.f32.mrf.mxu0
    %v1208 = vadd.f32 0.0, %v1207
    %v1209 = vpop.f32.mrf.mxu0
    %v1210 = vadd.f32 0.0, %v1209
    %1211 = vmatmul.bf16.gmra.mxu0 %v1056
    %v1212 = vpop.f32.mrf.mxu0
    %v1213 = vadd.f32 0.0, %v1212
    %v1214 = vpop.f32.mrf.mxu0
    %v1215 = vadd.f32 0.0, %v1214
    %1216 = vmatmul.bf16.gmra.mxu0 %v1059
    %v1217 = vpop.f32.mrf.mxu0
    %v1218 = vadd.f32 0.0, %v1217
    %v1219 = vpop.f32.mrf.mxu0
    %v1220 = vadd.f32 0.0, %v1219
    %1221 = vmatmul.bf16.gmra.mxu0 %v1062
    %v1222 = vpop.f32.mrf.mxu0
    %v1223 = vadd.f32 0.0, %v1222
    %v1224 = vpop.f32.mrf.mxu0
    %v1225 = vadd.f32 0.0, %v1224
    %1226 = vmatmul.bf16.gmra.mxu0 %v1065
    %v1227 = vpop.f32.mrf.mxu0
    %v1228 = vadd.f32 0.0, %v1227
    %v1229 = vpop.f32.mrf.mxu0
    %v1230 = vadd.f32 0.0, %v1229
    %1231 = vmatmul.bf16.gmra.mxu0 %v1068
    %v1232 = vpop.f32.mrf.mxu0
    %v1233 = vadd.f32 0.0, %v1232
    %v1234 = vpop.f32.mrf.mxu0
    %v1235 = vadd.f32 0.0, %v1234
    %1236 = vmatmul.bf16.gmra.mxu0 %v1071
    %v1237 = vpop.f32.mrf.mxu0
    %v1238 = vadd.f32 0.0, %v1237
    %v1239 = vpop.f32.mrf.mxu0
    %v1240 = vadd.f32 0.0, %v1239
    %1241 = vmatmul.bf16.gmra.mxu0 %v1074
    %v1242 = vpop.f32.mrf.mxu0
    %v1243 = vadd.f32 0.0, %v1242
    %v1244 = vpop.f32.mrf.mxu0
    %v1245 = vadd.f32 0.0, %v1244
    %1246 = vmatmul.bf16.gmra.mxu0 %v1077
    %v1247 = vpop.f32.mrf.mxu0
    %v1248 = vadd.f32 0.0, %v1247
    %v1249 = vpop.f32.mrf.mxu0
    %v1250 = vadd.f32 0.0, %v1249
    %1251 = vdwg.mxu0
    %v1316 = vunpack.c.l.b16 %v16
    %v1317 = vunpack.c.l.b16 %v17
    %v1318 = vunpack.c.l.b16 %v18
    %v1319 = vunpack.c.l.b16 %v19
    %v1320 = vunpack.c.l.b16 %v20
    %v1321 = vunpack.c.l.b16 %v21
    %v1322 = vunpack.c.l.b16 %v22
    %v1323 = vunpack.c.l.b16 %v23
    %v1324 = vunpack.c.l.b16 %v24
    %v1325 = vunpack.c.l.b16 %v25
    %v1326 = vunpack.c.l.b16 %v26
    %v1327 = vunpack.c.l.b16 %v27
    %v1328 = vunpack.c.l.b16 %v28
    %v1329 = vunpack.c.l.b16 %v29
    %v1330 = vunpack.c.l.b16 %v30
    %v1331 = vunpack.c.l.b16 %v31
    %v1332 = vunpack.c.l.b16 %v32
    %v1333 = vunpack.c.l.b16 %v33
    %v1334 = vunpack.c.l.b16 %v34
    %v1335 = vunpack.c.l.b16 %v35
    %v1336 = vunpack.c.l.b16 %v36
    %v1337 = vunpack.c.l.b16 %v37
    %v1338 = vunpack.c.l.b16 %v38
    %v1339 = vunpack.c.l.b16 %v39
    %v1340 = vunpack.c.l.b16 %v40
    %v1341 = vunpack.c.l.b16 %v41
    %v1342 = vunpack.c.l.b16 %v42
    %v1343 = vunpack.c.l.b16 %v43
    %v1344 = vunpack.c.l.b16 %v44
    %v1345 = vunpack.c.l.b16 %v45
    %v1346 = vunpack.c.l.b16 %v46
    %v1347 = vunpack.c.l.b16 %v47
    %v1348 = vunpack.c.l.b16 %v48
    %v1349 = vunpack.c.l.b16 %v49
    %v1350 = vunpack.c.l.b16 %v50
    %v1351 = vunpack.c.l.b16 %v51
    %v1352 = vunpack.c.l.b16 %v52
    %v1353 = vunpack.c.l.b16 %v53
    %v1354 = vunpack.c.l.b16 %v54
    %v1355 = vunpack.c.l.b16 %v55
    %v1356 = vunpack.c.l.b16 %v56
    %v1357 = vunpack.c.l.b16 %v57
    %v1358 = vunpack.c.l.b16 %v58
    %v1359 = vunpack.c.l.b16 %v59
    %v1360 = vunpack.c.l.b16 %v60
    %v1361 = vunpack.c.l.b16 %v61
    %v1362 = vunpack.c.l.b16 %v62
    %v1363 = vunpack.c.l.b16 %v63
    %v1364 = vunpack.c.l.b16 %v64
    %v1365 = vunpack.c.l.b16 %v65
    %v1366 = vunpack.c.l.b16 %v66
    %v1367 = vunpack.c.l.b16 %v67
    %v1368 = vunpack.c.l.b16 %v68
    %v1369 = vunpack.c.l.b16 %v69
    %v1370 = vunpack.c.l.b16 %v70
    %v1371 = vunpack.c.l.b16 %v71
    %v1372 = vunpack.c.l.b16 %v72
    %v1373 = vunpack.c.l.b16 %v73
    %v1374 = vunpack.c.l.b16 %v74
    %v1375 = vunpack.c.l.b16 %v75
    %v1376 = vunpack.c.l.b16 %v76
    %v1377 = vunpack.c.l.b16 %v77
    %v1378 = vunpack.c.l.b16 %v78
    %v1379 = vunpack.c.l.b16 %v79
    %v1380 = vpack.c.b16 %v1317, %v1316
    %v1381 = vpack.c.b16 %v1319, %v1318
    %v1382 = vpack.c.b16 %v1321, %v1320
    %v1383 = vpack.c.b16 %v1323, %v1322
    %v1384 = vpack.c.b16 %v1325, %v1324
    %v1385 = vpack.c.b16 %v1327, %v1326
    %v1386 = vpack.c.b16 %v1329, %v1328
    %v1387 = vpack.c.b16 %v1331, %v1330
    %v1388 = vpack.c.b16 %v1333, %v1332
    %v1389 = vpack.c.b16 %v1335, %v1334
    %v1390 = vpack.c.b16 %v1337, %v1336
    %v1391 = vpack.c.b16 %v1339, %v1338
    %v1392 = vpack.c.b16 %v1341, %v1340
    %v1393 = vpack.c.b16 %v1343, %v1342
    %v1394 = vpack.c.b16 %v1345, %v1344
    %v1395 = vpack.c.b16 %v1347, %v1346
    %v1396 = vpack.c.b16 %v1349, %v1348
    %v1397 = vpack.c.b16 %v1351, %v1350
    %v1398 = vpack.c.b16 %v1353, %v1352
    %v1399 = vpack.c.b16 %v1355, %v1354
    %v1400 = vpack.c.b16 %v1357, %v1356
    %v1401 = vpack.c.b16 %v1359, %v1358
    %v1402 = vpack.c.b16 %v1361, %v1360
    %v1403 = vpack.c.b16 %v1363, %v1362
    %v1404 = vpack.c.b16 %v1365, %v1364
    %v1405 = vpack.c.b16 %v1367, %v1366
    %v1406 = vpack.c.b16 %v1369, %v1368
    %v1407 = vpack.c.b16 %v1371, %v1370
    %v1408 = vpack.c.b16 %v1373, %v1372
    %v1409 = vpack.c.b16 %v1375, %v1374
    %v1410 = vpack.c.b16 %v1377, %v1376
    %v1411 = vpack.c.b16 %v1379, %v1378
    %v1413 = vsel %vm982, %v1380, 0
    %v1416 = vsel %vm982, %v1381, 0
    %v1419 = vsel %vm982, %v1382, 0
    %v1422 = vsel %vm982, %v1383, 0
    %v1425 = vsel %vm982, %v1384, 0
    %v1428 = vsel %vm982, %v1385, 0
    %v1431 = vsel %vm982, %v1386, 0
    %v1434 = vsel %vm982, %v1387, 0
    %v1437 = vsel %vm982, %v1388, 0
    %v1440 = vsel %vm982, %v1389, 0
    %v1443 = vsel %vm982, %v1390, 0
    %v1446 = vsel %vm982, %v1391, 0
    %v1449 = vsel %vm982, %v1392, 0
    %v1452 = vsel %vm982, %v1393, 0
    %v1455 = vsel %vm982, %v1394, 0
    %v1458 = vsel %vm982, %v1395, 0
    %v1461 = vsel %vm982, %v1396, 0
    %v1464 = vsel %vm982, %v1397, 0
    %v1467 = vsel %vm982, %v1398, 0
    %v1470 = vsel %vm982, %v1399, 0
    %v1473 = vsel %vm982, %v1400, 0
    %v1476 = vsel %vm982, %v1401, 0
    %v1479 = vsel %vm982, %v1402, 0
    %v1482 = vsel %vm982, %v1403, 0
    %v1485 = vsel %vm982, %v1404, 0
    %v1488 = vsel %vm982, %v1405, 0
    %v1491 = vsel %vm982, %v1406, 0
    %v1494 = vsel %vm982, %v1407, 0
    %v1497 = vsel %vm982, %v1408, 0
    %v1500 = vsel %vm982, %v1409, 0
    %v1503 = vsel %vm982, %v1410, 0
    %v1506 = vsel %vm982, %v1411, 0
    %v1509 = vsel %vm1079, %v80, 0
    %1511 = vmatpush.bf16.msra.mxu0 0
    %1512 = vmatpush.bf16.msra.mxu0 0
    %1513 = vmatpush.bf16.msra.mxu0 0
    %1514 = vmatpush.bf16.msra.mxu0 0
    %1515 = vmatpush.bf16.msra.mxu0 0
    %1516 = vmatpush.bf16.msra.mxu0 0
    %1517 = vmatpush.bf16.msra.mxu0 0
    %1518 = vmatpush.bf16.msra.mxu0 %v1509
    %1519 = vmatmul.bf16.gmra.mxu0 %v1413
    %v1520 = vpop.f32.mrf.mxu0
    %v1521 = vadd.f32 %v1093, %v1520
    %v1522 = vpop.f32.mrf.mxu0
    %v1523 = vadd.f32 %v1095, %v1522
    %1524 = vmatmul.bf16.gmra.mxu0 %v1416
    %v1525 = vpop.f32.mrf.mxu0
    %v1526 = vadd.f32 %v1098, %v1525
    %v1527 = vpop.f32.mrf.mxu0
    %v1528 = vadd.f32 %v1100, %v1527
    %1529 = vmatmul.bf16.gmra.mxu0 %v1419
    %v1530 = vpop.f32.mrf.mxu0
    %v1531 = vadd.f32 %v1103, %v1530
    %v1532 = vpop.f32.mrf.mxu0
    %v1533 = vadd.f32 %v1105, %v1532
    %1534 = vmatmul.bf16.gmra.mxu0 %v1422
    %v1535 = vpop.f32.mrf.mxu0
    %v1536 = vadd.f32 %v1108, %v1535
    %v1537 = vpop.f32.mrf.mxu0
    %v1538 = vadd.f32 %v1110, %v1537
    %1539 = vmatmul.bf16.gmra.mxu0 %v1425
    %v1540 = vpop.f32.mrf.mxu0
    %v1541 = vadd.f32 %v1113, %v1540
    %v1542 = vpop.f32.mrf.mxu0
    %v1543 = vadd.f32 %v1115, %v1542
    %1544 = vmatmul.bf16.gmra.mxu0 %v1428
    %v1545 = vpop.f32.mrf.mxu0
    %v1546 = vadd.f32 %v1118, %v1545
    %v1547 = vpop.f32.mrf.mxu0
    %v1548 = vadd.f32 %v1120, %v1547
    %1549 = vmatmul.bf16.gmra.mxu0 %v1431
    %v1550 = vpop.f32.mrf.mxu0
    %v1551 = vadd.f32 %v1123, %v1550
    %v1552 = vpop.f32.mrf.mxu0
    %v1553 = vadd.f32 %v1125, %v1552
    %1554 = vmatmul.bf16.gmra.mxu0 %v1434
    %v1555 = vpop.f32.mrf.mxu0
    %v1556 = vadd.f32 %v1128, %v1555
    %v1557 = vpop.f32.mrf.mxu0
    %v1558 = vadd.f32 %v1130, %v1557
    %1559 = vmatmul.bf16.gmra.mxu0 %v1437
    %v1560 = vpop.f32.mrf.mxu0
    %v1561 = vadd.f32 %v1133, %v1560
    %v1562 = vpop.f32.mrf.mxu0
    %v1563 = vadd.f32 %v1135, %v1562
    %1564 = vmatmul.bf16.gmra.mxu0 %v1440
    %v1565 = vpop.f32.mrf.mxu0
    %v1566 = vadd.f32 %v1138, %v1565
    %v1567 = vpop.f32.mrf.mxu0
    %v1568 = vadd.f32 %v1140, %v1567
    %1569 = vmatmul.bf16.gmra.mxu0 %v1443
    %v1570 = vpop.f32.mrf.mxu0
    %v1571 = vadd.f32 %v1143, %v1570
    %v1572 = vpop.f32.mrf.mxu0
    %v1573 = vadd.f32 %v1145, %v1572
    %1574 = vmatmul.bf16.gmra.mxu0 %v1446
    %v1575 = vpop.f32.mrf.mxu0
    %v1576 = vadd.f32 %v1148, %v1575
    %v1577 = vpop.f32.mrf.mxu0
    %v1578 = vadd.f32 %v1150, %v1577
    %1579 = vmatmul.bf16.gmra.mxu0 %v1449
    %v1580 = vpop.f32.mrf.mxu0
    %v1581 = vadd.f32 %v1153, %v1580
    %v1582 = vpop.f32.mrf.mxu0
    %v1583 = vadd.f32 %v1155, %v1582
    %1584 = vmatmul.bf16.gmra.mxu0 %v1452
    %v1585 = vpop.f32.mrf.mxu0
    %v1586 = vadd.f32 %v1158, %v1585
    %v1587 = vpop.f32.mrf.mxu0
    %v1588 = vadd.f32 %v1160, %v1587
    %1589 = vmatmul.bf16.gmra.mxu0 %v1455
    %v1590 = vpop.f32.mrf.mxu0
    %v1591 = vadd.f32 %v1163, %v1590
    %v1592 = vpop.f32.mrf.mxu0
    %v1593 = vadd.f32 %v1165, %v1592
    %1594 = vmatmul.bf16.gmra.mxu0 %v1458
    %v1595 = vpop.f32.mrf.mxu0
    %v1596 = vadd.f32 %v1168, %v1595
    %v1597 = vpop.f32.mrf.mxu0
    %v1598 = vadd.f32 %v1170, %v1597
    %1599 = vmatmul.bf16.gmra.mxu0 %v1461
    %v1600 = vpop.f32.mrf.mxu0
    %v1601 = vadd.f32 %v1173, %v1600
    %v1602 = vpop.f32.mrf.mxu0
    %v1603 = vadd.f32 %v1175, %v1602
    %1604 = vmatmul.bf16.gmra.mxu0 %v1464
    %v1605 = vpop.f32.mrf.mxu0
    %v1606 = vadd.f32 %v1178, %v1605
    %v1607 = vpop.f32.mrf.mxu0
    %v1608 = vadd.f32 %v1180, %v1607
    %1609 = vmatmul.bf16.gmra.mxu0 %v1467
    %v1610 = vpop.f32.mrf.mxu0
    %v1611 = vadd.f32 %v1183, %v1610
    %v1612 = vpop.f32.mrf.mxu0
    %v1613 = vadd.f32 %v1185, %v1612
    %1614 = vmatmul.bf16.gmra.mxu0 %v1470
    %v1615 = vpop.f32.mrf.mxu0
    %v1616 = vadd.f32 %v1188, %v1615
    %v1617 = vpop.f32.mrf.mxu0
    %v1618 = vadd.f32 %v1190, %v1617
    %1619 = vmatmul.bf16.gmra.mxu0 %v1473
    %v1620 = vpop.f32.mrf.mxu0
    %v1621 = vadd.f32 %v1193, %v1620
    %v1622 = vpop.f32.mrf.mxu0
    %v1623 = vadd.f32 %v1195, %v1622
    %1624 = vmatmul.bf16.gmra.mxu0 %v1476
    %v1625 = vpop.f32.mrf.mxu0
    %v1626 = vadd.f32 %v1198, %v1625
    %v1627 = vpop.f32.mrf.mxu0
    %v1628 = vadd.f32 %v1200, %v1627
    %1629 = vmatmul.bf16.gmra.mxu0 %v1479
    %v1630 = vpop.f32.mrf.mxu0
    %v1631 = vadd.f32 %v1203, %v1630
    %v1632 = vpop.f32.mrf.mxu0
    %v1633 = vadd.f32 %v1205, %v1632
    %1634 = vmatmul.bf16.gmra.mxu0 %v1482
    %v1635 = vpop.f32.mrf.mxu0
    %v1636 = vadd.f32 %v1208, %v1635
    %v1637 = vpop.f32.mrf.mxu0
    %v1638 = vadd.f32 %v1210, %v1637
    %1639 = vmatmul.bf16.gmra.mxu0 %v1485
    %v1640 = vpop.f32.mrf.mxu0
    %v1641 = vadd.f32 %v1213, %v1640
    %v1642 = vpop.f32.mrf.mxu0
    %v1643 = vadd.f32 %v1215, %v1642
    %1644 = vmatmul.bf16.gmra.mxu0 %v1488
    %v1645 = vpop.f32.mrf.mxu0
    %v1646 = vadd.f32 %v1218, %v1645
    %v1647 = vpop.f32.mrf.mxu0
    %v1648 = vadd.f32 %v1220, %v1647
    %1649 = vmatmul.bf16.gmra.mxu0 %v1491
    %v1650 = vpop.f32.mrf.mxu0
    %v1651 = vadd.f32 %v1223, %v1650
    %v1652 = vpop.f32.mrf.mxu0
    %v1653 = vadd.f32 %v1225, %v1652
    %1654 = vmatmul.bf16.gmra.mxu0 %v1494
    %v1655 = vpop.f32.mrf.mxu0
    %v1656 = vadd.f32 %v1228, %v1655
    %v1657 = vpop.f32.mrf.mxu0
    %v1658 = vadd.f32 %v1230, %v1657
    %1659 = vmatmul.bf16.gmra.mxu0 %v1497
    %v1660 = vpop.f32.mrf.mxu0
    %v1661 = vadd.f32 %v1233, %v1660
    %v1662 = vpop.f32.mrf.mxu0
    %v1663 = vadd.f32 %v1235, %v1662
    %1664 = vmatmul.bf16.gmra.mxu0 %v1500
    %v1665 = vpop.f32.mrf.mxu0
    %v1666 = vadd.f32 %v1238, %v1665
    %v1667 = vpop.f32.mrf.mxu0
    %v1668 = vadd.f32 %v1240, %v1667
    %1669 = vmatmul.bf16.gmra.mxu0 %v1503
    %v1670 = vpop.f32.mrf.mxu0
    %v1671 = vadd.f32 %v1243, %v1670
    %v1672 = vpop.f32.mrf.mxu0
    %v1673 = vadd.f32 %v1245, %v1672
    %1674 = vmatmul.bf16.gmra.mxu0 %v1506
    %v1675 = vpop.f32.mrf.mxu0
    %v1676 = vadd.f32 %v1248, %v1675
    %v1677 = vpop.f32.mrf.mxu0
    %v1678 = vadd.f32 %v1250, %v1677
    %1679 = vdwg.mxu0
    %v1680 = vld [vmem:[%s0] sm:$0xe]
    %v1681 = vld [vmem:[%s0 + $0xc] sm:$0xe]
    %v1682 = vld [vmem:[%s0 + $0x18] sm:$0xe]
    %v1683 = vld [vmem:[%s0 + $0x24] sm:$0xe]
    %v1684 = vld [vmem:[%s0 + $0x30] sm:$0xe]
    %v1685 = vld [vmem:[%s0 + $0x3c] sm:$0xe]
    %v1686 = vld [vmem:[%s0 + $0x48] sm:$0xe]
    %v1687 = vld [vmem:[%s0 + $0x54] sm:$0xe]
    %v1688 = vld [vmem:[%s0 + $0x60] sm:$0xe]
    %v1689 = vld [vmem:[%s0 + $0x6c] sm:$0xe]
    %v1690 = vld [vmem:[%s0 + $0x78] sm:$0xe]
    %v1691 = vld [vmem:[%s0 + $0x84] sm:$0xe]
    %v1692 = vld [vmem:[%s0 + $0x90] sm:$0xe]
    %v1693 = vld [vmem:[%s0 + $0x9c] sm:$0xe]
    %v1694 = vld [vmem:[%s0 + $0xa8] sm:$0xe]
    %v1695 = vld [vmem:[%s0 + $0xb4] sm:$0xe]
    %v1696 = vld [vmem:[%s0 + $0xd8] sm:$0xe]
    %v1697 = vld [vmem:[%s0 + $0xe4] sm:$0xe]
    %v1698 = vld [vmem:[%s0 + $0xf0] sm:$0xe]
    %v1699 = vld [vmem:[%s0 + $0xfc] sm:$0xe]
    %v1700 = vld [vmem:[%s0 + $0x108] sm:$0xe]
    %v1701 = vld [vmem:[%s0 + $0x114] sm:$0xe]
    %v1702 = vld [vmem:[%s0 + $0x120] sm:$0xe]
    %v1703 = vld [vmem:[%s0 + $0x12c] sm:$0xe]
    %v1704 = vld [vmem:[%s0 + $0x138] sm:$0xe]
    %v1705 = vld [vmem:[%s0 + $0x144] sm:$0xe]
    %v1706 = vld [vmem:[%s0 + $0x150] sm:$0xe]
    %v1707 = vld [vmem:[%s0 + $0x15c] sm:$0xe]
    %v1708 = vld [vmem:[%s0 + $0x168] sm:$0xe]
    %v1709 = vld [vmem:[%s0 + $0x174] sm:$0xe]
    %v1710 = vld [vmem:[%s0 + $0x180] sm:$0xe]
    %v1711 = vld [vmem:[%s0 + $0x18c] sm:$0xe]
    %vm1776 = vcmask 1042432
    %vm1777 = vcmask 1046532
    %vm1778 = vmor %vm1776, %vm1777
    %v1779 = vrot.slane %v1680, 5
    %v1780 = vrot.slane %v1779, 4
    %v1781 = vrot.slane %v17, 5
    %v1782 = vsel %vm1778, %v1780, %v1781
    %v1783 = vrot.slane %v1781, 4
    %v1784 = vrot.slane %v81, 5
    %v1785 = vsel %vm1778, %v1783, %v1784
    %v1786 = vrot.slane %v1681, 5
    %v1787 = vrot.slane %v1786, 4
    %v1788 = vrot.slane %v19, 5
    %v1789 = vsel %vm1778, %v1787, %v1788
    %v1790 = vrot.slane %v1788, 4
    %v1791 = vrot.slane %v82, 5
    %v1792 = vsel %vm1778, %v1790, %v1791
    %v1793 = vrot.slane %v1682, 5
    %v1794 = vrot.slane %v1793, 4
    %v1795 = vrot.slane %v21, 5
    %v1796 = vsel %vm1778, %v1794, %v1795
    %v1797 = vrot.slane %v1795, 4
    %v1798 = vrot.slane %v83, 5
    %v1799 = vsel %vm1778, %v1797, %v1798
    %v1800 = vrot.slane %v1683, 5
    %v1801 = vrot.slane %v1800, 4
    %v1802 = vrot.slane %v23, 5
    %v1803 = vsel %vm1778, %v1801, %v1802
    %v1804 = vrot.slane %v1802, 4
    %v1805 = vrot.slane %v84, 5
    %v1806 = vsel %vm1778, %v1804, %v1805
    %v1807 = vrot.slane %v1684, 5
    %v1808 = vrot.slane %v1807, 4
    %v1809 = vrot.slane %v25, 5
    %v1810 = vsel %vm1778, %v1808, %v1809
    %v1811 = vrot.slane %v1809, 4
    %v1812 = vrot.slane %v85, 5
    %v1813 = vsel %vm1778, %v1811, %v1812
    %v1814 = vrot.slane %v1685, 5
    %v1815 = vrot.slane %v1814, 4
    %v1816 = vrot.slane %v27, 5
    %v1817 = vsel %vm1778, %v1815, %v1816
    %v1818 = vrot.slane %v1816, 4
    %v1819 = vrot.slane %v86, 5
    %v1820 = vsel %vm1778, %v1818, %v1819
    %v1821 = vrot.slane %v1686, 5
    %v1822 = vrot.slane %v1821, 4
    %v1823 = vrot.slane %v29, 5
    %v1824 = vsel %vm1778, %v1822, %v1823
    %v1825 = vrot.slane %v1823, 4
    %v1826 = vrot.slane %v87, 5
    %v1827 = vsel %vm1778, %v1825, %v1826
    %v1828 = vrot.slane %v1687, 5
    %v1829 = vrot.slane %v1828, 4
    %v1830 = vrot.slane %v31, 5
    %v1831 = vsel %vm1778, %v1829, %v1830
    %v1832 = vrot.slane %v1830, 4
    %v1833 = vrot.slane %v88, 5
    %v1834 = vsel %vm1778, %v1832, %v1833
    %v1835 = vrot.slane %v1688, 5
    %v1836 = vrot.slane %v1835, 4
    %v1837 = vrot.slane %v33, 5
    %v1838 = vsel %vm1778, %v1836, %v1837
    %v1839 = vrot.slane %v1837, 4
    %v1840 = vrot.slane %v89, 5
    %v1841 = vsel %vm1778, %v1839, %v1840
    %v1842 = vrot.slane %v1689, 5
    %v1843 = vrot.slane %v1842, 4
    %v1844 = vrot.slane %v35, 5
    %v1845 = vsel %vm1778, %v1843, %v1844
    %v1846 = vrot.slane %v1844, 4
    %v1847 = vrot.slane %v90, 5
    %v1848 = vsel %vm1778, %v1846, %v1847
    %v1849 = vrot.slane %v1690, 5
    %v1850 = vrot.slane %v1849, 4
    %v1851 = vrot.slane %v37, 5
    %v1852 = vsel %vm1778, %v1850, %v1851
    %v1853 = vrot.slane %v1851, 4
    %v1854 = vrot.slane %v91, 5
    %v1855 = vsel %vm1778, %v1853, %v1854
    %v1856 = vrot.slane %v1691, 5
    %v1857 = vrot.slane %v1856, 4
    %v1858 = vrot.slane %v39, 5
    %v1859 = vsel %vm1778, %v1857, %v1858
    %v1860 = vrot.slane %v1858, 4
    %v1861 = vrot.slane %v92, 5
    %v1862 = vsel %vm1778, %v1860, %v1861
    %v1863 = vrot.slane %v1692, 5
    %v1864 = vrot.slane %v1863, 4
    %v1865 = vrot.slane %v41, 5
    %v1866 = vsel %vm1778, %v1864, %v1865
    %v1867 = vrot.slane %v1865, 4
    %v1868 = vrot.slane %v93, 5
    %v1869 = vsel %vm1778, %v1867, %v1868
    %v1870 = vrot.slane %v1693, 5
    %v1871 = vrot.slane %v1870, 4
    %v1872 = vrot.slane %v43, 5
    %v1873 = vsel %vm1778, %v1871, %v1872
    %v1874 = vrot.slane %v1872, 4
    %v1875 = vrot.slane %v94, 5
    %v1876 = vsel %vm1778, %v1874, %v1875
    %v1877 = vrot.slane %v1694, 5
    %v1878 = vrot.slane %v1877, 4
    %v1879 = vrot.slane %v45, 5
    %v1880 = vsel %vm1778, %v1878, %v1879
    %v1881 = vrot.slane %v1879, 4
    %v1882 = vrot.slane %v95, 5
    %v1883 = vsel %vm1778, %v1881, %v1882
    %v1884 = vrot.slane %v1695, 5
    %v1885 = vrot.slane %v1884, 4
    %v1886 = vrot.slane %v47, 5
    %v1887 = vsel %vm1778, %v1885, %v1886
    %v1888 = vrot.slane %v1886, 4
    %v1889 = vrot.slane %v96, 5
    %v1890 = vsel %vm1778, %v1888, %v1889
    %v1891 = vrot.slane %v1696, 5
    %v1892 = vrot.slane %v1891, 4
    %v1893 = vrot.slane %v49, 5
    %v1894 = vsel %vm1778, %v1892, %v1893
    %v1895 = vrot.slane %v1893, 4
    %v1896 = vrot.slane %v97, 5
    %v1897 = vsel %vm1778, %v1895, %v1896
    %v1898 = vrot.slane %v1697, 5
    %v1899 = vrot.slane %v1898, 4
    %v1900 = vrot.slane %v51, 5
    %v1901 = vsel %vm1778, %v1899, %v1900
    %v1902 = vrot.slane %v1900, 4
    %v1903 = vrot.slane %v98, 5
    %v1904 = vsel %vm1778, %v1902, %v1903
    %v1905 = vrot.slane %v1698, 5
    %v1906 = vrot.slane %v1905, 4
    %v1907 = vrot.slane %v53, 5
    %v1908 = vsel %vm1778, %v1906, %v1907
    %v1909 = vrot.slane %v1907, 4
    %v1910 = vrot.slane %v99, 5
    %v1911 = vsel %vm1778, %v1909, %v1910
    %v1912 = vrot.slane %v1699, 5
    %v1913 = vrot.slane %v1912, 4
    %v1914 = vrot.slane %v55, 5
    %v1915 = vsel %vm1778, %v1913, %v1914
    %v1916 = vrot.slane %v1914, 4
    %v1917 = vrot.slane %v100, 5
    %v1918 = vsel %vm1778, %v1916, %v1917
    %v1919 = vrot.slane %v1700, 5
    %v1920 = vrot.slane %v1919, 4
    %v1921 = vrot.slane %v57, 5
    %v1922 = vsel %vm1778, %v1920, %v1921
    %v1923 = vrot.slane %v1921, 4
    %v1924 = vrot.slane %v101, 5
    %v1925 = vsel %vm1778, %v1923, %v1924
    %v1926 = vrot.slane %v1701, 5
    %v1927 = vrot.slane %v1926, 4
    %v1928 = vrot.slane %v59, 5
    %v1929 = vsel %vm1778, %v1927, %v1928
    %v1930 = vrot.slane %v1928, 4
    %v1931 = vrot.slane %v102, 5
    %v1932 = vsel %vm1778, %v1930, %v1931
    %v1933 = vrot.slane %v1702, 5
    %v1934 = vrot.slane %v1933, 4
    %v1935 = vrot.slane %v61, 5
    %v1936 = vsel %vm1778, %v1934, %v1935
    %v1937 = vrot.slane %v1935, 4
    %v1938 = vrot.slane %v103, 5
    %v1939 = vsel %vm1778, %v1937, %v1938
    %v1940 = vrot.slane %v1703, 5
    %v1941 = vrot.slane %v1940, 4
    %v1942 = vrot.slane %v63, 5
    %v1943 = vsel %vm1778, %v1941, %v1942
    %v1944 = vrot.slane %v1942, 4
    %v1945 = vrot.slane %v104, 5
    %v1946 = vsel %vm1778, %v1944, %v1945
    %v1947 = vrot.slane %v1704, 5
    %v1948 = vrot.slane %v1947, 4
    %v1949 = vrot.slane %v65, 5
    %v1950 = vsel %vm1778, %v1948, %v1949
    %v1951 = vrot.slane %v1949, 4
    %v1952 = vrot.slane %v105, 5
    %v1953 = vsel %vm1778, %v1951, %v1952
    %v1954 = vrot.slane %v1705, 5
    %v1955 = vrot.slane %v1954, 4
    %v1956 = vrot.slane %v67, 5
    %v1957 = vsel %vm1778, %v1955, %v1956
    %v1958 = vrot.slane %v1956, 4
    %v1959 = vrot.slane %v106, 5
    %v1960 = vsel %vm1778, %v1958, %v1959
    %v1961 = vrot.slane %v1706, 5
    %v1962 = vrot.slane %v1961, 4
    %v1963 = vrot.slane %v69, 5
    %v1964 = vsel %vm1778, %v1962, %v1963
    %v1965 = vrot.slane %v1963, 4
    %v1966 = vrot.slane %v107, 5
    %v1967 = vsel %vm1778, %v1965, %v1966
    %v1968 = vrot.slane %v1707, 5
    %v1969 = vrot.slane %v1968, 4
    %v1970 = vrot.slane %v71, 5
    %v1971 = vsel %vm1778, %v1969, %v1970
    %v1972 = vrot.slane %v1970, 4
    %v1973 = vrot.slane %v108, 5
    %v1974 = vsel %vm1778, %v1972, %v1973
    %v1975 = vrot.slane %v1708, 5
    %v1976 = vrot.slane %v1975, 4
    %v1977 = vrot.slane %v73, 5
    %v1978 = vsel %vm1778, %v1976, %v1977
    %v1979 = vrot.slane %v1977, 4
    %v1980 = vrot.slane %v109, 5
    %v1981 = vsel %vm1778, %v1979, %v1980
    %v1982 = vrot.slane %v1709, 5
    %v1983 = vrot.slane %v1982, 4
    %v1984 = vrot.slane %v75, 5
    %v1985 = vsel %vm1778, %v1983, %v1984
    %v1986 = vrot.slane %v1984, 4
    %v1987 = vrot.slane %v110, 5
    %v1988 = vsel %vm1778, %v1986, %v1987
    %v1989 = vrot.slane %v1710, 5
    %v1990 = vrot.slane %v1989, 4
    %v1991 = vrot.slane %v77, 5
    %v1992 = vsel %vm1778, %v1990, %v1991
    %v1993 = vrot.slane %v1991, 4
    %v1994 = vrot.slane %v111, 5
    %v1995 = vsel %vm1778, %v1993, %v1994
    %v1996 = vrot.slane %v1711, 5
    %v1997 = vrot.slane %v1996, 4
    %v1998 = vrot.slane %v79, 5
    %v1999 = vsel %vm1778, %v1997, %v1998
    %v2000 = vrot.slane %v1998, 4
    %v2001 = vrot.slane %v112, 5
    %v2002 = vsel %vm1778, %v2000, %v2001
    %s2003 = scalar_lea.vmem %s1, 4
    %v2004 = vld [vmem:[%s2003] sm:$0x3]
    %v2005 = vunpack.c.l.b16 %v1782
    %v2006 = vunpack.c.l.b16 %v1785
    %v2007 = vunpack.c.l.b16 %v1789
    %v2008 = vunpack.c.l.b16 %v1792
    %v2009 = vunpack.c.l.b16 %v1796
    %v2010 = vunpack.c.l.b16 %v1799
    %v2011 = vunpack.c.l.b16 %v1803
    %v2012 = vunpack.c.l.b16 %v1806
    %v2013 = vunpack.c.l.b16 %v1810
    %v2014 = vunpack.c.l.b16 %v1813
    %v2015 = vunpack.c.l.b16 %v1817
    %v2016 = vunpack.c.l.b16 %v1820
    %v2017 = vunpack.c.l.b16 %v1824
    %v2018 = vunpack.c.l.b16 %v1827
    %v2019 = vunpack.c.l.b16 %v1831
    %v2020 = vunpack.c.l.b16 %v1834
    %v2021 = vunpack.c.l.b16 %v1838
    %v2022 = vunpack.c.l.b16 %v1841
    %v2023 = vunpack.c.l.b16 %v1845
    %v2024 = vunpack.c.l.b16 %v1848
    %v2025 = vunpack.c.l.b16 %v1852
    %v2026 = vunpack.c.l.b16 %v1855
    %v2027 = vunpack.c.l.b16 %v1859
    %v2028 = vunpack.c.l.b16 %v1862
    %v2029 = vunpack.c.l.b16 %v1866
    %v2030 = vunpack.c.l.b16 %v1869
    %v2031 = vunpack.c.l.b16 %v1873
    %v2032 = vunpack.c.l.b16 %v1876
    %v2033 = vunpack.c.l.b16 %v1880
    %v2034 = vunpack.c.l.b16 %v1883
    %v2035 = vunpack.c.l.b16 %v1887
    %v2036 = vunpack.c.l.b16 %v1890
    %v2037 = vunpack.c.l.b16 %v1894
    %v2038 = vunpack.c.l.b16 %v1897
    %v2039 = vunpack.c.l.b16 %v1901
    %v2040 = vunpack.c.l.b16 %v1904
    %v2041 = vunpack.c.l.b16 %v1908
    %v2042 = vunpack.c.l.b16 %v1911
    %v2043 = vunpack.c.l.b16 %v1915
    %v2044 = vunpack.c.l.b16 %v1918
    %v2045 = vunpack.c.l.b16 %v1922
    %v2046 = vunpack.c.l.b16 %v1925
    %v2047 = vunpack.c.l.b16 %v1929
    %v2048 = vunpack.c.l.b16 %v1932
    %v2049 = vunpack.c.l.b16 %v1936
    %v2050 = vunpack.c.l.b16 %v1939
    %v2051 = vunpack.c.l.b16 %v1943
    %v2052 = vunpack.c.l.b16 %v1946
    %v2053 = vunpack.c.l.b16 %v1950
    %v2054 = vunpack.c.l.b16 %v1953
    %v2055 = vunpack.c.l.b16 %v1957
    %v2056 = vunpack.c.l.b16 %v1960
    %v2057 = vunpack.c.l.b16 %v1964
    %v2058 = vunpack.c.l.b16 %v1967
    %v2059 = vunpack.c.l.b16 %v1971
    %v2060 = vunpack.c.l.b16 %v1974
    %v2061 = vunpack.c.l.b16 %v1978
    %v2062 = vunpack.c.l.b16 %v1981
    %v2063 = vunpack.c.l.b16 %v1985
    %v2064 = vunpack.c.l.b16 %v1988
    %v2065 = vunpack.c.l.b16 %v1992
    %v2066 = vunpack.c.l.b16 %v1995
    %v2067 = vunpack.c.l.b16 %v1999
    %v2068 = vunpack.c.l.b16 %v2002
    %v2069 = vpack.c.b16 %v2006, %v2005
    %v2070 = vpack.c.b16 %v2008, %v2007
    %v2071 = vpack.c.b16 %v2010, %v2009
    %v2072 = vpack.c.b16 %v2012, %v2011
    %v2073 = vpack.c.b16 %v2014, %v2013
    %v2074 = vpack.c.b16 %v2016, %v2015
    %v2075 = vpack.c.b16 %v2018, %v2017
    %v2076 = vpack.c.b16 %v2020, %v2019
    %v2077 = vpack.c.b16 %v2022, %v2021
    %v2078 = vpack.c.b16 %v2024, %v2023
    %v2079 = vpack.c.b16 %v2026, %v2025
    %v2080 = vpack.c.b16 %v2028, %v2027
    %v2081 = vpack.c.b16 %v2030, %v2029
    %v2082 = vpack.c.b16 %v2032, %v2031
    %v2083 = vpack.c.b16 %v2034, %v2033
    %v2084 = vpack.c.b16 %v2036, %v2035
    %v2085 = vpack.c.b16 %v2038, %v2037
    %v2086 = vpack.c.b16 %v2040, %v2039
    %v2087 = vpack.c.b16 %v2042, %v2041
    %v2088 = vpack.c.b16 %v2044, %v2043
    %v2089 = vpack.c.b16 %v2046, %v2045
    %v2090 = vpack.c.b16 %v2048, %v2047
    %v2091 = vpack.c.b16 %v2050, %v2049
    %v2092 = vpack.c.b16 %v2052, %v2051
    %v2093 = vpack.c.b16 %v2054, %v2053
    %v2094 = vpack.c.b16 %v2056, %v2055
    %v2095 = vpack.c.b16 %v2058, %v2057
    %v2096 = vpack.c.b16 %v2060, %v2059
    %v2097 = vpack.c.b16 %v2062, %v2061
    %v2098 = vpack.c.b16 %v2064, %v2063
    %v2099 = vpack.c.b16 %v2066, %v2065
    %v2100 = vpack.c.b16 %v2068, %v2067
    %v2102 = vsel %vm982, %v2069, 0
    %v2105 = vsel %vm982, %v2070, 0
    %v2108 = vsel %vm982, %v2071, 0
    %v2111 = vsel %vm982, %v2072, 0
    %v2114 = vsel %vm982, %v2073, 0
    %v2117 = vsel %vm982, %v2074, 0
    %v2120 = vsel %vm982, %v2075, 0
    %v2123 = vsel %vm982, %v2076, 0
    %v2126 = vsel %vm982, %v2077, 0
    %v2129 = vsel %vm982, %v2078, 0
    %v2132 = vsel %vm982, %v2079, 0
    %v2135 = vsel %vm982, %v2080, 0
    %v2138 = vsel %vm982, %v2081, 0
    %v2141 = vsel %vm982, %v2082, 0
    %v2144 = vsel %vm982, %v2083, 0
    %v2147 = vsel %vm982, %v2084, 0
    %v2150 = vsel %vm982, %v2085, 0
    %v2153 = vsel %vm982, %v2086, 0
    %v2156 = vsel %vm982, %v2087, 0
    %v2159 = vsel %vm982, %v2088, 0
    %v2162 = vsel %vm982, %v2089, 0
    %v2165 = vsel %vm982, %v2090, 0
    %v2168 = vsel %vm982, %v2091, 0
    %v2171 = vsel %vm982, %v2092, 0
    %v2174 = vsel %vm982, %v2093, 0
    %v2177 = vsel %vm982, %v2094, 0
    %v2180 = vsel %vm982, %v2095, 0
    %v2183 = vsel %vm982, %v2096, 0
    %v2186 = vsel %vm982, %v2097, 0
    %v2189 = vsel %vm982, %v2098, 0
    %v2192 = vsel %vm982, %v2099, 0
    %v2195 = vsel %vm982, %v2100, 0
    %v2198 = vsel %vm1079, %v2004, 0
    %2200 = vmatpush.bf16.msra.mxu0 0
    %2201 = vmatpush.bf16.msra.mxu0 0
    %2202 = vmatpush.bf16.msra.mxu0 0
    %2203 = vmatpush.bf16.msra.mxu0 0
    %2204 = vmatpush.bf16.msra.mxu0 0
    %2205 = vmatpush.bf16.msra.mxu0 0
    %2206 = vmatpush.bf16.msra.mxu0 0
    %2207 = vmatpush.bf16.msra.mxu0 %v2198
    %2208 = vmatmul.bf16.gmra.mxu0 %v2102
    %v2209 = vpop.f32.mrf.mxu0
    %v2210 = vadd.f32 0.0, %v2209
    %v2211 = vpop.f32.mrf.mxu0
    %v2212 = vadd.f32 0.0, %v2211
    %2213 = vmatmul.bf16.gmra.mxu0 %v2105
    %v2214 = vpop.f32.mrf.mxu0
    %v2215 = vadd.f32 0.0, %v2214
    %v2216 = vpop.f32.mrf.mxu0
    %v2217 = vadd.f32 0.0, %v2216
    %2218 = vmatmul.bf16.gmra.mxu0 %v2108
    %v2219 = vpop.f32.mrf.mxu0
    %v2220 = vadd.f32 0.0, %v2219
    %v2221 = vpop.f32.mrf.mxu0
    %v2222 = vadd.f32 0.0, %v2221
    %2223 = vmatmul.bf16.gmra.mxu0 %v2111
    %v2224 = vpop.f32.mrf.mxu0
    %v2225 = vadd.f32 0.0, %v2224
    %v2226 = vpop.f32.mrf.mxu0
    %v2227 = vadd.f32 0.0, %v2226
    %2228 = vmatmul.bf16.gmra.mxu0 %v2114
    %v2229 = vpop.f32.mrf.mxu0
    %v2230 = vadd.f32 0.0, %v2229
    %v2231 = vpop.f32.mrf.mxu0
    %v2232 = vadd.f32 0.0, %v2231
    %2233 = vmatmul.bf16.gmra.mxu0 %v2117
    %v2234 = vpop.f32.mrf.mxu0
    %v2235 = vadd.f32 0.0, %v2234
    %v2236 = vpop.f32.mrf.mxu0
    %v2237 = vadd.f32 0.0, %v2236
    %2238 = vmatmul.bf16.gmra.mxu0 %v2120
    %v2239 = vpop.f32.mrf.mxu0
    %v2240 = vadd.f32 0.0, %v2239
    %v2241 = vpop.f32.mrf.mxu0
    %v2242 = vadd.f32 0.0, %v2241
    %2243 = vmatmul.bf16.gmra.mxu0 %v2123
    %v2244 = vpop.f32.mrf.mxu0
    %v2245 = vadd.f32 0.0, %v2244
    %v2246 = vpop.f32.mrf.mxu0
    %v2247 = vadd.f32 0.0, %v2246
    %2248 = vmatmul.bf16.gmra.mxu0 %v2126
    %v2249 = vpop.f32.mrf.mxu0
    %v2250 = vadd.f32 0.0, %v2249
    %v2251 = vpop.f32.mrf.mxu0
    %v2252 = vadd.f32 0.0, %v2251
    %2253 = vmatmul.bf16.gmra.mxu0 %v2129
    %v2254 = vpop.f32.mrf.mxu0
    %v2255 = vadd.f32 0.0, %v2254
    %v2256 = vpop.f32.mrf.mxu0
    %v2257 = vadd.f32 0.0, %v2256
    %2258 = vmatmul.bf16.gmra.mxu0 %v2132
    %v2259 = vpop.f32.mrf.mxu0
    %v2260 = vadd.f32 0.0, %v2259
    %v2261 = vpop.f32.mrf.mxu0
    %v2262 = vadd.f32 0.0, %v2261
    %2263 = vmatmul.bf16.gmra.mxu0 %v2135
    %v2264 = vpop.f32.mrf.mxu0
    %v2265 = vadd.f32 0.0, %v2264
    %v2266 = vpop.f32.mrf.mxu0
    %v2267 = vadd.f32 0.0, %v2266
    %2268 = vmatmul.bf16.gmra.mxu0 %v2138
    %v2269 = vpop.f32.mrf.mxu0
    %v2270 = vadd.f32 0.0, %v2269
    %v2271 = vpop.f32.mrf.mxu0
    %v2272 = vadd.f32 0.0, %v2271
    %2273 = vmatmul.bf16.gmra.mxu0 %v2141
    %v2274 = vpop.f32.mrf.mxu0
    %v2275 = vadd.f32 0.0, %v2274
    %v2276 = vpop.f32.mrf.mxu0
    %v2277 = vadd.f32 0.0, %v2276
    %2278 = vmatmul.bf16.gmra.mxu0 %v2144
    %v2279 = vpop.f32.mrf.mxu0
    %v2280 = vadd.f32 0.0, %v2279
    %v2281 = vpop.f32.mrf.mxu0
    %v2282 = vadd.f32 0.0, %v2281
    %2283 = vmatmul.bf16.gmra.mxu0 %v2147
    %v2284 = vpop.f32.mrf.mxu0
    %v2285 = vadd.f32 0.0, %v2284
    %v2286 = vpop.f32.mrf.mxu0
    %v2287 = vadd.f32 0.0, %v2286
    %2288 = vmatmul.bf16.gmra.mxu0 %v2150
    %v2289 = vpop.f32.mrf.mxu0
    %v2290 = vadd.f32 0.0, %v2289
    %v2291 = vpop.f32.mrf.mxu0
    %v2292 = vadd.f32 0.0, %v2291
    %2293 = vmatmul.bf16.gmra.mxu0 %v2153
    %v2294 = vpop.f32.mrf.mxu0
    %v2295 = vadd.f32 0.0, %v2294
    %v2296 = vpop.f32.mrf.mxu0
    %v2297 = vadd.f32 0.0, %v2296
    %2298 = vmatmul.bf16.gmra.mxu0 %v2156
    %v2299 = vpop.f32.mrf.mxu0
    %v2300 = vadd.f32 0.0, %v2299
    %v2301 = vpop.f32.mrf.mxu0
    %v2302 = vadd.f32 0.0, %v2301
    %2303 = vmatmul.bf16.gmra.mxu0 %v2159
    %v2304 = vpop.f32.mrf.mxu0
    %v2305 = vadd.f32 0.0, %v2304
    %v2306 = vpop.f32.mrf.mxu0
    %v2307 = vadd.f32 0.0, %v2306
    %2308 = vmatmul.bf16.gmra.mxu0 %v2162
    %v2309 = vpop.f32.mrf.mxu0
    %v2310 = vadd.f32 0.0, %v2309
    %v2311 = vpop.f32.mrf.mxu0
    %v2312 = vadd.f32 0.0, %v2311
    %2313 = vmatmul.bf16.gmra.mxu0 %v2165
    %v2314 = vpop.f32.mrf.mxu0
    %v2315 = vadd.f32 0.0, %v2314
    %v2316 = vpop.f32.mrf.mxu0
    %v2317 = vadd.f32 0.0, %v2316
    %2318 = vmatmul.bf16.gmra.mxu0 %v2168
    %v2319 = vpop.f32.mrf.mxu0
    %v2320 = vadd.f32 0.0, %v2319
    %v2321 = vpop.f32.mrf.mxu0
    %v2322 = vadd.f32 0.0, %v2321
    %2323 = vmatmul.bf16.gmra.mxu0 %v2171
    %v2324 = vpop.f32.mrf.mxu0
    %v2325 = vadd.f32 0.0, %v2324
    %v2326 = vpop.f32.mrf.mxu0
    %v2327 = vadd.f32 0.0, %v2326
    %2328 = vmatmul.bf16.gmra.mxu0 %v2174
    %v2329 = vpop.f32.mrf.mxu0
    %v2330 = vadd.f32 0.0, %v2329
    %v2331 = vpop.f32.mrf.mxu0
    %v2332 = vadd.f32 0.0, %v2331
    %2333 = vmatmul.bf16.gmra.mxu0 %v2177
    %v2334 = vpop.f32.mrf.mxu0
    %v2335 = vadd.f32 0.0, %v2334
    %v2336 = vpop.f32.mrf.mxu0
    %v2337 = vadd.f32 0.0, %v2336
    %2338 = vmatmul.bf16.gmra.mxu0 %v2180
    %v2339 = vpop.f32.mrf.mxu0
    %v2340 = vadd.f32 0.0, %v2339
    %v2341 = vpop.f32.mrf.mxu0
    %v2342 = vadd.f32 0.0, %v2341
    %2343 = vmatmul.bf16.gmra.mxu0 %v2183
    %v2344 = vpop.f32.mrf.mxu0
    %v2345 = vadd.f32 0.0, %v2344
    %v2346 = vpop.f32.mrf.mxu0
    %v2347 = vadd.f32 0.0, %v2346
    %2348 = vmatmul.bf16.gmra.mxu0 %v2186
    %v2349 = vpop.f32.mrf.mxu0
    %v2350 = vadd.f32 0.0, %v2349
    %v2351 = vpop.f32.mrf.mxu0
    %v2352 = vadd.f32 0.0, %v2351
    %2353 = vmatmul.bf16.gmra.mxu0 %v2189
    %v2354 = vpop.f32.mrf.mxu0
    %v2355 = vadd.f32 0.0, %v2354
    %v2356 = vpop.f32.mrf.mxu0
    %v2357 = vadd.f32 0.0, %v2356
    %2358 = vmatmul.bf16.gmra.mxu0 %v2192
    %v2359 = vpop.f32.mrf.mxu0
    %v2360 = vadd.f32 0.0, %v2359
    %v2361 = vpop.f32.mrf.mxu0
    %v2362 = vadd.f32 0.0, %v2361
    %2363 = vmatmul.bf16.gmra.mxu0 %v2195
    %v2364 = vpop.f32.mrf.mxu0
    %v2365 = vadd.f32 0.0, %v2364
    %v2366 = vpop.f32.mrf.mxu0
    %v2367 = vadd.f32 0.0, %v2366
    %2368 = vdwg.mxu0
    %v2369 = vadd.f32 %v1521, %v2210
    %v2370 = vadd.f32 %v1523, %v2212
    %v2371 = vadd.f32 %v1526, %v2215
    %v2372 = vadd.f32 %v1528, %v2217
    %v2373 = vadd.f32 %v1531, %v2220
    %v2374 = vadd.f32 %v1533, %v2222
    %v2375 = vadd.f32 %v1536, %v2225
    %v2376 = vadd.f32 %v1538, %v2227
    %v2377 = vadd.f32 %v1541, %v2230
    %v2378 = vadd.f32 %v1543, %v2232
    %v2379 = vadd.f32 %v1546, %v2235
    %v2380 = vadd.f32 %v1548, %v2237
    %v2381 = vadd.f32 %v1551, %v2240
    %v2382 = vadd.f32 %v1553, %v2242
    %v2383 = vadd.f32 %v1556, %v2245
    %v2384 = vadd.f32 %v1558, %v2247
    %v2385 = vadd.f32 %v1561, %v2250
    %v2386 = vadd.f32 %v1563, %v2252
    %v2387 = vadd.f32 %v1566, %v2255
    %v2388 = vadd.f32 %v1568, %v2257
    %v2389 = vadd.f32 %v1571, %v2260
    %v2390 = vadd.f32 %v1573, %v2262
    %v2391 = vadd.f32 %v1576, %v2265
    %v2392 = vadd.f32 %v1578, %v2267
    %v2393 = vadd.f32 %v1581, %v2270
    %v2394 = vadd.f32 %v1583, %v2272
    %v2395 = vadd.f32 %v1586, %v2275
    %v2396 = vadd.f32 %v1588, %v2277
    %v2397 = vadd.f32 %v1591, %v2280
    %v2398 = vadd.f32 %v1593, %v2282
    %v2399 = vadd.f32 %v1596, %v2285
    %v2400 = vadd.f32 %v1598, %v2287
    %v2401 = vadd.f32 %v1601, %v2290
    %v2402 = vadd.f32 %v1603, %v2292
    %v2403 = vadd.f32 %v1606, %v2295
    %v2404 = vadd.f32 %v1608, %v2297
    %v2405 = vadd.f32 %v1611, %v2300
    %v2406 = vadd.f32 %v1613, %v2302
    %v2407 = vadd.f32 %v1616, %v2305
    %v2408 = vadd.f32 %v1618, %v2307
    %v2409 = vadd.f32 %v1621, %v2310
    %v2410 = vadd.f32 %v1623, %v2312
    %v2411 = vadd.f32 %v1626, %v2315
    %v2412 = vadd.f32 %v1628, %v2317
    %v2413 = vadd.f32 %v1631, %v2320
    %v2414 = vadd.f32 %v1633, %v2322
    %v2415 = vadd.f32 %v1636, %v2325
    %v2416 = vadd.f32 %v1638, %v2327
    %v2417 = vadd.f32 %v1641, %v2330
    %v2418 = vadd.f32 %v1643, %v2332
    %v2419 = vadd.f32 %v1646, %v2335
    %v2420 = vadd.f32 %v1648, %v2337
    %v2421 = vadd.f32 %v1651, %v2340
    %v2422 = vadd.f32 %v1653, %v2342
    %v2423 = vadd.f32 %v1656, %v2345
    %v2424 = vadd.f32 %v1658, %v2347
    %v2425 = vadd.f32 %v1661, %v2350
    %v2426 = vadd.f32 %v1663, %v2352
    %v2427 = vadd.f32 %v1666, %v2355
    %v2428 = vadd.f32 %v1668, %v2357
    %v2429 = vadd.f32 %v1671, %v2360
    %v2430 = vadd.f32 %v1673, %v2362
    %v2431 = vadd.f32 %v1676, %v2365
    %v2432 = vadd.f32 %v1678, %v2367
    %s2433 = scalar_lea.vmem %s0, 12
    %v2434 = vld [vmem:[%s2433] sm:$0xf]
    %v2435 = vld [vmem:[%s2433 + $0x4] sm:$0xf]
    %v2436 = vld [vmem:[%s2433 + $0xc] sm:$0xf]
    %v2437 = vld [vmem:[%s2433 + $0x10] sm:$0xf]
    %v2438 = vld [vmem:[%s2433 + $0x18] sm:$0xf]
    %v2439 = vld [vmem:[%s2433 + $0x1c] sm:$0xf]
    %v2440 = vld [vmem:[%s2433 + $0x24] sm:$0xf]
    %v2441 = vld [vmem:[%s2433 + $0x28] sm:$0xf]
    %v2442 = vld [vmem:[%s2433 + $0x30] sm:$0xf]
    %v2443 = vld [vmem:[%s2433 + $0x34] sm:$0xf]
    %v2444 = vld [vmem:[%s2433 + $0x3c] sm:$0xf]
    %v2445 = vld [vmem:[%s2433 + $0x40] sm:$0xf]
    %v2446 = vld [vmem:[%s2433 + $0x48] sm:$0xf]
    %v2447 = vld [vmem:[%s2433 + $0x4c] sm:$0xf]
    %v2448 = vld [vmem:[%s2433 + $0x54] sm:$0xf]
    %v2449 = vld [vmem:[%s2433 + $0x58] sm:$0xf]
    %v2450 = vld [vmem:[%s2433 + $0x60] sm:$0xf]
    %v2451 = vld [vmem:[%s2433 + $0x64] sm:$0xf]
    %v2452 = vld [vmem:[%s2433 + $0x6c] sm:$0xf]
    %v2453 = vld [vmem:[%s2433 + $0x70] sm:$0xf]
    %v2454 = vld [vmem:[%s2433 + $0x78] sm:$0xf]
    %v2455 = vld [vmem:[%s2433 + $0x7c] sm:$0xf]
    %v2456 = vld [vmem:[%s2433 + $0x84] sm:$0xf]
    %v2457 = vld [vmem:[%s2433 + $0x88] sm:$0xf]
    %v2458 = vld [vmem:[%s2433 + $0x90] sm:$0xf]
    %v2459 = vld [vmem:[%s2433 + $0x94] sm:$0xf]
    %v2460 = vld [vmem:[%s2433 + $0x9c] sm:$0xf]
    %v2461 = vld [vmem:[%s2433 + $0xa0] sm:$0xf]
    %v2462 = vld [vmem:[%s2433 + $0xa8] sm:$0xf]
    %v2463 = vld [vmem:[%s2433 + $0xac] sm:$0xf]
    %v2464 = vld [vmem:[%s2433 + $0xb4] sm:$0xf]
    %v2465 = vld [vmem:[%s2433 + $0xb8] sm:$0xf]
    %v2466 = vld [vmem:[%s2433 + $0xd8] sm:$0xf]
    %v2467 = vld [vmem:[%s2433 + $0xdc] sm:$0xf]
    %v2468 = vld [vmem:[%s2433 + $0xe4] sm:$0xf]
    %v2469 = vld [vmem:[%s2433 + $0xe8] sm:$0xf]
    %v2470 = vld [vmem:[%s2433 + $0xf0] sm:$0xf]
    %v2471 = vld [vmem:[%s2433 + $0xf4] sm:$0xf]
    %v2472 = vld [vmem:[%s2433 + $0xfc] sm:$0xf]
    %v2473 = vld [vmem:[%s2433 + $0x100] sm:$0xf]
    %v2474 = vld [vmem:[%s2433 + $0x108] sm:$0xf]
    %v2475 = vld [vmem:[%s2433 + $0x10c] sm:$0xf]
    %v2476 = vld [vmem:[%s2433 + $0x114] sm:$0xf]
    %v2477 = vld [vmem:[%s2433 + $0x118] sm:$0xf]
    %v2478 = vld [vmem:[%s2433 + $0x120] sm:$0xf]
    %v2479 = vld [vmem:[%s2433 + $0x124] sm:$0xf]
    %v2480 = vld [vmem:[%s2433 + $0x12c] sm:$0xf]
    %v2481 = vld [vmem:[%s2433 + $0x130] sm:$0xf]
    %v2482 = vld [vmem:[%s2433 + $0x138] sm:$0xf]
    %v2483 = vld [vmem:[%s2433 + $0x13c] sm:$0xf]
    %v2484 = vld [vmem:[%s2433 + $0x144] sm:$0xf]
    %v2485 = vld [vmem:[%s2433 + $0x148] sm:$0xf]
    %v2486 = vld [vmem:[%s2433 + $0x150] sm:$0xf]
    %v2487 = vld [vmem:[%s2433 + $0x154] sm:$0xf]
    %v2488 = vld [vmem:[%s2433 + $0x15c] sm:$0xf]
    %v2489 = vld [vmem:[%s2433 + $0x160] sm:$0xf]
    %v2490 = vld [vmem:[%s2433 + $0x168] sm:$0xf]
    %v2491 = vld [vmem:[%s2433 + $0x16c] sm:$0xf]
    %v2492 = vld [vmem:[%s2433 + $0x174] sm:$0xf]
    %v2493 = vld [vmem:[%s2433 + $0x178] sm:$0xf]
    %v2494 = vld [vmem:[%s2433 + $0x180] sm:$0xf]
    %v2495 = vld [vmem:[%s2433 + $0x184] sm:$0xf]
    %v2496 = vld [vmem:[%s2433 + $0x18c] sm:$0xf]
    %v2497 = vld [vmem:[%s2433 + $0x190] sm:$0xf]
    %s2498 = scalar_lea.vmem %s1, 6
    %v2499 = vld [vmem:[%s2498] sm:$0x3]
    %v2564 = vunpack.c.l.b16 %v2434
    %v2565 = vunpack.c.l.b16 %v2435
    %v2566 = vunpack.c.l.b16 %v2436
    %v2567 = vunpack.c.l.b16 %v2437
    %v2568 = vunpack.c.l.b16 %v2438
    %v2569 = vunpack.c.l.b16 %v2439
    %v2570 = vunpack.c.l.b16 %v2440
    %v2571 = vunpack.c.l.b16 %v2441
    %v2572 = vunpack.c.l.b16 %v2442
    %v2573 = vunpack.c.l.b16 %v2443
    %v2574 = vunpack.c.l.b16 %v2444
    %v2575 = vunpack.c.l.b16 %v2445
    %v2576 = vunpack.c.l.b16 %v2446
    %v2577 = vunpack.c.l.b16 %v2447
    %v2578 = vunpack.c.l.b16 %v2448
    %v2579 = vunpack.c.l.b16 %v2449
    %v2580 = vunpack.c.l.b16 %v2450
    %v2581 = vunpack.c.l.b16 %v2451
    %v2582 = vunpack.c.l.b16 %v2452
    %v2583 = vunpack.c.l.b16 %v2453
    %v2584 = vunpack.c.l.b16 %v2454
    %v2585 = vunpack.c.l.b16 %v2455
    %v2586 = vunpack.c.l.b16 %v2456
    %v2587 = vunpack.c.l.b16 %v2457
    %v2588 = vunpack.c.l.b16 %v2458
    %v2589 = vunpack.c.l.b16 %v2459
    %v2590 = vunpack.c.l.b16 %v2460
    %v2591 = vunpack.c.l.b16 %v2461
    %v2592 = vunpack.c.l.b16 %v2462
    %v2593 = vunpack.c.l.b16 %v2463
    %v2594 = vunpack.c.l.b16 %v2464
    %v2595 = vunpack.c.l.b16 %v2465
    %v2596 = vunpack.c.l.b16 %v2466
    %v2597 = vunpack.c.l.b16 %v2467
    %v2598 = vunpack.c.l.b16 %v2468
    %v2599 = vunpack.c.l.b16 %v2469
    %v2600 = vunpack.c.l.b16 %v2470
    %v2601 = vunpack.c.l.b16 %v2471
    %v2602 = vunpack.c.l.b16 %v2472
    %v2603 = vunpack.c.l.b16 %v2473
    %v2604 = vunpack.c.l.b16 %v2474
    %v2605 = vunpack.c.l.b16 %v2475
    %v2606 = vunpack.c.l.b16 %v2476
    %v2607 = vunpack.c.l.b16 %v2477
    %v2608 = vunpack.c.l.b16 %v2478
    %v2609 = vunpack.c.l.b16 %v2479
    %v2610 = vunpack.c.l.b16 %v2480
    %v2611 = vunpack.c.l.b16 %v2481
    %v2612 = vunpack.c.l.b16 %v2482
    %v2613 = vunpack.c.l.b16 %v2483
    %v2614 = vunpack.c.l.b16 %v2484
    %v2615 = vunpack.c.l.b16 %v2485
    %v2616 = vunpack.c.l.b16 %v2486
    %v2617 = vunpack.c.l.b16 %v2487
    %v2618 = vunpack.c.l.b16 %v2488
    %v2619 = vunpack.c.l.b16 %v2489
    %v2620 = vunpack.c.l.b16 %v2490
    %v2621 = vunpack.c.l.b16 %v2491
    %v2622 = vunpack.c.l.b16 %v2492
    %v2623 = vunpack.c.l.b16 %v2493
    %v2624 = vunpack.c.l.b16 %v2494
    %v2625 = vunpack.c.l.b16 %v2495
    %v2626 = vunpack.c.l.b16 %v2496
    %v2627 = vunpack.c.l.b16 %v2497
    %v2628 = vpack.c.b16 %v2565, %v2564
    %v2629 = vpack.c.b16 %v2567, %v2566
    %v2630 = vpack.c.b16 %v2569, %v2568
    %v2631 = vpack.c.b16 %v2571, %v2570
    %v2632 = vpack.c.b16 %v2573, %v2572
    %v2633 = vpack.c.b16 %v2575, %v2574
    %v2634 = vpack.c.b16 %v2577, %v2576
    %v2635 = vpack.c.b16 %v2579, %v2578
    %v2636 = vpack.c.b16 %v2581, %v2580
    %v2637 = vpack.c.b16 %v2583, %v2582
    %v2638 = vpack.c.b16 %v2585, %v2584
    %v2639 = vpack.c.b16 %v2587, %v2586
    %v2640 = vpack.c.b16 %v2589, %v2588
    %v2641 = vpack.c.b16 %v2591, %v2590
    %v2642 = vpack.c.b16 %v2593, %v2592
    %v2643 = vpack.c.b16 %v2595, %v2594
    %v2644 = vpack.c.b16 %v2597, %v2596
    %v2645 = vpack.c.b16 %v2599, %v2598
    %v2646 = vpack.c.b16 %v2601, %v2600
    %v2647 = vpack.c.b16 %v2603, %v2602
    %v2648 = vpack.c.b16 %v2605, %v2604
    %v2649 = vpack.c.b16 %v2607, %v2606
    %v2650 = vpack.c.b16 %v2609, %v2608
    %v2651 = vpack.c.b16 %v2611, %v2610
    %v2652 = vpack.c.b16 %v2613, %v2612
    %v2653 = vpack.c.b16 %v2615, %v2614
    %v2654 = vpack.c.b16 %v2617, %v2616
    %v2655 = vpack.c.b16 %v2619, %v2618
    %v2656 = vpack.c.b16 %v2621, %v2620
    %v2657 = vpack.c.b16 %v2623, %v2622
    %v2658 = vpack.c.b16 %v2625, %v2624
    %v2659 = vpack.c.b16 %v2627, %v2626
    %v2661 = vsel %vm982, %v2628, 0
    %v2664 = vsel %vm982, %v2629, 0
    %v2667 = vsel %vm982, %v2630, 0
    %v2670 = vsel %vm982, %v2631, 0
    %v2673 = vsel %vm982, %v2632, 0
    %v2676 = vsel %vm982, %v2633, 0
    %v2679 = vsel %vm982, %v2634, 0
    %v2682 = vsel %vm982, %v2635, 0
    %v2685 = vsel %vm982, %v2636, 0
    %v2688 = vsel %vm982, %v2637, 0
    %v2691 = vsel %vm982, %v2638, 0
    %v2694 = vsel %vm982, %v2639, 0
    %v2697 = vsel %vm982, %v2640, 0
    %v2700 = vsel %vm982, %v2641, 0
    %v2703 = vsel %vm982, %v2642, 0
    %v2706 = vsel %vm982, %v2643, 0
    %v2709 = vsel %vm982, %v2644, 0
    %v2712 = vsel %vm982, %v2645, 0
    %v2715 = vsel %vm982, %v2646, 0
    %v2718 = vsel %vm982, %v2647, 0
    %v2721 = vsel %vm982, %v2648, 0
    %v2724 = vsel %vm982, %v2649, 0
    %v2727 = vsel %vm982, %v2650, 0
    %v2730 = vsel %vm982, %v2651, 0
    %v2733 = vsel %vm982, %v2652, 0
    %v2736 = vsel %vm982, %v2653, 0
    %v2739 = vsel %vm982, %v2654, 0
    %v2742 = vsel %vm982, %v2655, 0
    %v2745 = vsel %vm982, %v2656, 0
    %v2748 = vsel %vm982, %v2657, 0
    %v2751 = vsel %vm982, %v2658, 0
    %v2754 = vsel %vm982, %v2659, 0
    %v2757 = vsel %vm1079, %v2499, 0
    %2759 = vmatpush.bf16.msra.mxu0 0
    %2760 = vmatpush.bf16.msra.mxu0 0
    %2761 = vmatpush.bf16.msra.mxu0 0
    %2762 = vmatpush.bf16.msra.mxu0 0
    %2763 = vmatpush.bf16.msra.mxu0 0
    %2764 = vmatpush.bf16.msra.mxu0 0
    %2765 = vmatpush.bf16.msra.mxu0 0
    %2766 = vmatpush.bf16.msra.mxu0 %v2757
    %2767 = vmatmul.bf16.gmra.mxu0 %v2661
    %v2768 = vpop.f32.mrf.mxu0
    %v2769 = vadd.f32 0.0, %v2768
    %v2770 = vpop.f32.mrf.mxu0
    %v2771 = vadd.f32 0.0, %v2770
    %2772 = vmatmul.bf16.gmra.mxu0 %v2664
    %v2773 = vpop.f32.mrf.mxu0
    %v2774 = vadd.f32 0.0, %v2773
    %v2775 = vpop.f32.mrf.mxu0
    %v2776 = vadd.f32 0.0, %v2775
    %2777 = vmatmul.bf16.gmra.mxu0 %v2667
    %v2778 = vpop.f32.mrf.mxu0
    %v2779 = vadd.f32 0.0, %v2778
    %v2780 = vpop.f32.mrf.mxu0
    %v2781 = vadd.f32 0.0, %v2780
    %2782 = vmatmul.bf16.gmra.mxu0 %v2670
    %v2783 = vpop.f32.mrf.mxu0
    %v2784 = vadd.f32 0.0, %v2783
    %v2785 = vpop.f32.mrf.mxu0
    %v2786 = vadd.f32 0.0, %v2785
    %2787 = vmatmul.bf16.gmra.mxu0 %v2673
    %v2788 = vpop.f32.mrf.mxu0
    %v2789 = vadd.f32 0.0, %v2788
    %v2790 = vpop.f32.mrf.mxu0
    %v2791 = vadd.f32 0.0, %v2790
    %2792 = vmatmul.bf16.gmra.mxu0 %v2676
    %v2793 = vpop.f32.mrf.mxu0
    %v2794 = vadd.f32 0.0, %v2793
    %v2795 = vpop.f32.mrf.mxu0
    %v2796 = vadd.f32 0.0, %v2795
    %2797 = vmatmul.bf16.gmra.mxu0 %v2679
    %v2798 = vpop.f32.mrf.mxu0
    %v2799 = vadd.f32 0.0, %v2798
    %v2800 = vpop.f32.mrf.mxu0
    %v2801 = vadd.f32 0.0, %v2800
    %2802 = vmatmul.bf16.gmra.mxu0 %v2682
    %v2803 = vpop.f32.mrf.mxu0
    %v2804 = vadd.f32 0.0, %v2803
    %v2805 = vpop.f32.mrf.mxu0
    %v2806 = vadd.f32 0.0, %v2805
    %2807 = vmatmul.bf16.gmra.mxu0 %v2685
    %v2808 = vpop.f32.mrf.mxu0
    %v2809 = vadd.f32 0.0, %v2808
    %v2810 = vpop.f32.mrf.mxu0
    %v2811 = vadd.f32 0.0, %v2810
    %2812 = vmatmul.bf16.gmra.mxu0 %v2688
    %v2813 = vpop.f32.mrf.mxu0
    %v2814 = vadd.f32 0.0, %v2813
    %v2815 = vpop.f32.mrf.mxu0
    %v2816 = vadd.f32 0.0, %v2815
    %2817 = vmatmul.bf16.gmra.mxu0 %v2691
    %v2818 = vpop.f32.mrf.mxu0
    %v2819 = vadd.f32 0.0, %v2818
    %v2820 = vpop.f32.mrf.mxu0
    %v2821 = vadd.f32 0.0, %v2820
    %2822 = vmatmul.bf16.gmra.mxu0 %v2694
    %v2823 = vpop.f32.mrf.mxu0
    %v2824 = vadd.f32 0.0, %v2823
    %v2825 = vpop.f32.mrf.mxu0
    %v2826 = vadd.f32 0.0, %v2825
    %2827 = vmatmul.bf16.gmra.mxu0 %v2697
    %v2828 = vpop.f32.mrf.mxu0
    %v2829 = vadd.f32 0.0, %v2828
    %v2830 = vpop.f32.mrf.mxu0
    %v2831 = vadd.f32 0.0, %v2830
    %2832 = vmatmul.bf16.gmra.mxu0 %v2700
    %v2833 = vpop.f32.mrf.mxu0
    %v2834 = vadd.f32 0.0, %v2833
    %v2835 = vpop.f32.mrf.mxu0
    %v2836 = vadd.f32 0.0, %v2835
    %2837 = vmatmul.bf16.gmra.mxu0 %v2703
    %v2838 = vpop.f32.mrf.mxu0
    %v2839 = vadd.f32 0.0, %v2838
    %v2840 = vpop.f32.mrf.mxu0
    %v2841 = vadd.f32 0.0, %v2840
    %2842 = vmatmul.bf16.gmra.mxu0 %v2706
    %v2843 = vpop.f32.mrf.mxu0
    %v2844 = vadd.f32 0.0, %v2843
    %v2845 = vpop.f32.mrf.mxu0
    %v2846 = vadd.f32 0.0, %v2845
    %2847 = vmatmul.bf16.gmra.mxu0 %v2709
    %v2848 = vpop.f32.mrf.mxu0
    %v2849 = vadd.f32 0.0, %v2848
    %v2850 = vpop.f32.mrf.mxu0
    %v2851 = vadd.f32 0.0, %v2850
    %2852 = vmatmul.bf16.gmra.mxu0 %v2712
    %v2853 = vpop.f32.mrf.mxu0
    %v2854 = vadd.f32 0.0, %v2853
    %v2855 = vpop.f32.mrf.mxu0
    %v2856 = vadd.f32 0.0, %v2855
    %2857 = vmatmul.bf16.gmra.mxu0 %v2715
    %v2858 = vpop.f32.mrf.mxu0
    %v2859 = vadd.f32 0.0, %v2858
    %v2860 = vpop.f32.mrf.mxu0
    %v2861 = vadd.f32 0.0, %v2860
    %2862 = vmatmul.bf16.gmra.mxu0 %v2718
    %v2863 = vpop.f32.mrf.mxu0
    %v2864 = vadd.f32 0.0, %v2863
    %v2865 = vpop.f32.mrf.mxu0
    %v2866 = vadd.f32 0.0, %v2865
    %2867 = vmatmul.bf16.gmra.mxu0 %v2721
    %v2868 = vpop.f32.mrf.mxu0
    %v2869 = vadd.f32 0.0, %v2868
    %v2870 = vpop.f32.mrf.mxu0
    %v2871 = vadd.f32 0.0, %v2870
    %2872 = vmatmul.bf16.gmra.mxu0 %v2724
    %v2873 = vpop.f32.mrf.mxu0
    %v2874 = vadd.f32 0.0, %v2873
    %v2875 = vpop.f32.mrf.mxu0
    %v2876 = vadd.f32 0.0, %v2875
    %2877 = vmatmul.bf16.gmra.mxu0 %v2727
    %v2878 = vpop.f32.mrf.mxu0
    %v2879 = vadd.f32 0.0, %v2878
    %v2880 = vpop.f32.mrf.mxu0
    %v2881 = vadd.f32 0.0, %v2880
    %2882 = vmatmul.bf16.gmra.mxu0 %v2730
    %v2883 = vpop.f32.mrf.mxu0
    %v2884 = vadd.f32 0.0, %v2883
    %v2885 = vpop.f32.mrf.mxu0
    %v2886 = vadd.f32 0.0, %v2885
    %2887 = vmatmul.bf16.gmra.mxu0 %v2733
    %v2888 = vpop.f32.mrf.mxu0
    %v2889 = vadd.f32 0.0, %v2888
    %v2890 = vpop.f32.mrf.mxu0
    %v2891 = vadd.f32 0.0, %v2890
    %2892 = vmatmul.bf16.gmra.mxu0 %v2736
    %v2893 = vpop.f32.mrf.mxu0
    %v2894 = vadd.f32 0.0, %v2893
    %v2895 = vpop.f32.mrf.mxu0
    %v2896 = vadd.f32 0.0, %v2895
    %2897 = vmatmul.bf16.gmra.mxu0 %v2739
    %v2898 = vpop.f32.mrf.mxu0
    %v2899 = vadd.f32 0.0, %v2898
    %v2900 = vpop.f32.mrf.mxu0
    %v2901 = vadd.f32 0.0, %v2900
    %2902 = vmatmul.bf16.gmra.mxu0 %v2742
    %v2903 = vpop.f32.mrf.mxu0
    %v2904 = vadd.f32 0.0, %v2903
    %v2905 = vpop.f32.mrf.mxu0
    %v2906 = vadd.f32 0.0, %v2905
    %2907 = vmatmul.bf16.gmra.mxu0 %v2745
    %v2908 = vpop.f32.mrf.mxu0
    %v2909 = vadd.f32 0.0, %v2908
    %v2910 = vpop.f32.mrf.mxu0
    %v2911 = vadd.f32 0.0, %v2910
    %2912 = vmatmul.bf16.gmra.mxu0 %v2748
    %v2913 = vpop.f32.mrf.mxu0
    %v2914 = vadd.f32 0.0, %v2913
    %v2915 = vpop.f32.mrf.mxu0
    %v2916 = vadd.f32 0.0, %v2915
    %2917 = vmatmul.bf16.gmra.mxu0 %v2751
    %v2918 = vpop.f32.mrf.mxu0
    %v2919 = vadd.f32 0.0, %v2918
    %v2920 = vpop.f32.mrf.mxu0
    %v2921 = vadd.f32 0.0, %v2920
    %2922 = vmatmul.bf16.gmra.mxu0 %v2754
    %v2923 = vpop.f32.mrf.mxu0
    %v2924 = vadd.f32 0.0, %v2923
    %v2925 = vpop.f32.mrf.mxu0
    %v2926 = vadd.f32 0.0, %v2925
    %2927 = vdwg.mxu0
    %v2928 = vadd.f32 %v2369, %v2769
    %v2929 = vadd.f32 %v2370, %v2771
    %v2930 = vadd.f32 %v2371, %v2774
    %v2931 = vadd.f32 %v2372, %v2776
    %v2932 = vadd.f32 %v2373, %v2779
    %v2933 = vadd.f32 %v2374, %v2781
    %v2934 = vadd.f32 %v2375, %v2784
    %v2935 = vadd.f32 %v2376, %v2786
    %v2936 = vadd.f32 %v2377, %v2789
    %v2937 = vadd.f32 %v2378, %v2791
    %v2938 = vadd.f32 %v2379, %v2794
    %v2939 = vadd.f32 %v2380, %v2796
    %v2940 = vadd.f32 %v2381, %v2799
    %v2941 = vadd.f32 %v2382, %v2801
    %v2942 = vadd.f32 %v2383, %v2804
    %v2943 = vadd.f32 %v2384, %v2806
    %v2944 = vadd.f32 %v2385, %v2809
    %v2945 = vadd.f32 %v2386, %v2811
    %v2946 = vadd.f32 %v2387, %v2814
    %v2947 = vadd.f32 %v2388, %v2816
    %v2948 = vadd.f32 %v2389, %v2819
    %v2949 = vadd.f32 %v2390, %v2821
    %v2950 = vadd.f32 %v2391, %v2824
    %v2951 = vadd.f32 %v2392, %v2826
    %v2952 = vadd.f32 %v2393, %v2829
    %v2953 = vadd.f32 %v2394, %v2831
    %v2954 = vadd.f32 %v2395, %v2834
    %v2955 = vadd.f32 %v2396, %v2836
    %v2956 = vadd.f32 %v2397, %v2839
    %v2957 = vadd.f32 %v2398, %v2841
    %v2958 = vadd.f32 %v2399, %v2844
    %v2959 = vadd.f32 %v2400, %v2846
    %v2960 = vadd.f32 %v2401, %v2849
    %v2961 = vadd.f32 %v2402, %v2851
    %v2962 = vadd.f32 %v2403, %v2854
    %v2963 = vadd.f32 %v2404, %v2856
    %v2964 = vadd.f32 %v2405, %v2859
    %v2965 = vadd.f32 %v2406, %v2861
    %v2966 = vadd.f32 %v2407, %v2864
    %v2967 = vadd.f32 %v2408, %v2866
    %v2968 = vadd.f32 %v2409, %v2869
    %v2969 = vadd.f32 %v2410, %v2871
    %v2970 = vadd.f32 %v2411, %v2874
    %v2971 = vadd.f32 %v2412, %v2876
    %v2972 = vadd.f32 %v2413, %v2879
    %v2973 = vadd.f32 %v2414, %v2881
    %v2974 = vadd.f32 %v2415, %v2884
    %v2975 = vadd.f32 %v2416, %v2886
    %v2976 = vadd.f32 %v2417, %v2889
    %v2977 = vadd.f32 %v2418, %v2891
    %v2978 = vadd.f32 %v2419, %v2894
    %v2979 = vadd.f32 %v2420, %v2896
    %v2980 = vadd.f32 %v2421, %v2899
    %v2981 = vadd.f32 %v2422, %v2901
    %v2982 = vadd.f32 %v2423, %v2904
    %v2983 = vadd.f32 %v2424, %v2906
    %v2984 = vadd.f32 %v2425, %v2909
    %v2985 = vadd.f32 %v2426, %v2911
    %v2986 = vadd.f32 %v2427, %v2914
    %v2987 = vadd.f32 %v2428, %v2916
    %v2988 = vadd.f32 %v2429, %v2919
    %v2989 = vadd.f32 %v2430, %v2921
    %v2990 = vadd.f32 %v2431, %v2924
    %v2991 = vadd.f32 %v2432, %v2926
    %v2992 = vld [vmem:[%s2433] sm:$0xf]
    %v2993 = vld [vmem:[%s2433 + $0x4] sm:$0xf]
    %v2994 = vld [vmem:[%s2433 + $0x8] sm:$0x1]
    %v2995 = vld [vmem:[%s2433 + $0xc] sm:$0xf]
    %v2996 = vld [vmem:[%s2433 + $0x10] sm:$0xf]
    %v2997 = vld [vmem:[%s2433 + $0x14] sm:$0x1]
    %v2998 = vld [vmem:[%s2433 + $0x18] sm:$0xf]
    %v2999 = vld [vmem:[%s2433 + $0x1c] sm:$0xf]
    %v3000 = vld [vmem:[%s2433 + $0x20] sm:$0x1]
    %v3001 = vld [vmem:[%s2433 + $0x24] sm:$0xf]
    %v3002 = vld [vmem:[%s2433 + $0x28] sm:$0xf]
    %v3003 = vld [vmem:[%s2433 + $0x2c] sm:$0x1]
    %v3004 = vld [vmem:[%s2433 + $0x30] sm:$0xf]
    %v3005 = vld [vmem:[%s2433 + $0x34] sm:$0xf]
    %v3006 = vld [vmem:[%s2433 + $0x38] sm:$0x1]
    %v3007 = vld [vmem:[%s2433 + $0x3c] sm:$0xf]
    %v3008 = vld [vmem:[%s2433 + $0x40] sm:$0xf]
    %v3009 = vld [vmem:[%s2433 + $0x44] sm:$0x1]
    %v3010 = vld [vmem:[%s2433 + $0x48] sm:$0xf]
    %v3011 = vld [vmem:[%s2433 + $0x4c] sm:$0xf]
    %v3012 = vld [vmem:[%s2433 + $0x50] sm:$0x1]
    %v3013 = vld [vmem:[%s2433 + $0x54] sm:$0xf]
    %v3014 = vld [vmem:[%s2433 + $0x58] sm:$0xf]
    %v3015 = vld [vmem:[%s2433 + $0x5c] sm:$0x1]
    %v3016 = vld [vmem:[%s2433 + $0x60] sm:$0xf]
    %v3017 = vld [vmem:[%s2433 + $0x64] sm:$0xf]
    %v3018 = vld [vmem:[%s2433 + $0x68] sm:$0x1]
    %v3019 = vld [vmem:[%s2433 + $0x6c] sm:$0xf]
    %v3020 = vld [vmem:[%s2433 + $0x70] sm:$0xf]
    %v3021 = vld [vmem:[%s2433 + $0x74] sm:$0x1]
    %v3022 = vld [vmem:[%s2433 + $0x78] sm:$0xf]
    %v3023 = vld [vmem:[%s2433 + $0x7c] sm:$0xf]
    %v3024 = vld [vmem:[%s2433 + $0x80] sm:$0x1]
    %v3025 = vld [vmem:[%s2433 + $0x84] sm:$0xf]
    %v3026 = vld [vmem:[%s2433 + $0x88] sm:$0xf]
    %v3027 = vld [vmem:[%s2433 + $0x8c] sm:$0x1]
    %v3028 = vld [vmem:[%s2433 + $0x90] sm:$0xf]
    %v3029 = vld [vmem:[%s2433 + $0x94] sm:$0xf]
    %v3030 = vld [vmem:[%s2433 + $0x98] sm:$0x1]
    %v3031 = vld [vmem:[%s2433 + $0x9c] sm:$0xf]
    %v3032 = vld [vmem:[%s2433 + $0xa0] sm:$0xf]
    %v3033 = vld [vmem:[%s2433 + $0xa4] sm:$0x1]
    %v3034 = vld [vmem:[%s2433 + $0xa8] sm:$0xf]
    %v3035 = vld [vmem:[%s2433 + $0xac] sm:$0xf]
    %v3036 = vld [vmem:[%s2433 + $0xb0] sm:$0x1]
    %v3037 = vld [vmem:[%s2433 + $0xb4] sm:$0xf]
    %v3038 = vld [vmem:[%s2433 + $0xb8] sm:$0xf]
    %v3039 = vld [vmem:[%s2433 + $0xbc] sm:$0x1]
    %v3040 = vld [vmem:[%s2433 + $0xd8] sm:$0xf]
    %v3041 = vld [vmem:[%s2433 + $0xdc] sm:$0xf]
    %v3042 = vld [vmem:[%s2433 + $0xe0] sm:$0x1]
    %v3043 = vld [vmem:[%s2433 + $0xe4] sm:$0xf]
    %v3044 = vld [vmem:[%s2433 + $0xe8] sm:$0xf]
    %v3045 = vld [vmem:[%s2433 + $0xec] sm:$0x1]
    %v3046 = vld [vmem:[%s2433 + $0xf0] sm:$0xf]
    %v3047 = vld [vmem:[%s2433 + $0xf4] sm:$0xf]
    %v3048 = vld [vmem:[%s2433 + $0xf8] sm:$0x1]
    %v3049 = vld [vmem:[%s2433 + $0xfc] sm:$0xf]
    %v3050 = vld [vmem:[%s2433 + $0x100] sm:$0xf]
    %v3051 = vld [vmem:[%s2433 + $0x104] sm:$0x1]
    %v3052 = vld [vmem:[%s2433 + $0x108] sm:$0xf]
    %v3053 = vld [vmem:[%s2433 + $0x10c] sm:$0xf]
    %v3054 = vld [vmem:[%s2433 + $0x110] sm:$0x1]
    %v3055 = vld [vmem:[%s2433 + $0x114] sm:$0xf]
    %v3056 = vld [vmem:[%s2433 + $0x118] sm:$0xf]
    %v3057 = vld [vmem:[%s2433 + $0x11c] sm:$0x1]
    %v3058 = vld [vmem:[%s2433 + $0x120] sm:$0xf]
    %v3059 = vld [vmem:[%s2433 + $0x124] sm:$0xf]
    %v3060 = vld [vmem:[%s2433 + $0x128] sm:$0x1]
    %v3061 = vld [vmem:[%s2433 + $0x12c] sm:$0xf]
    %v3062 = vld [vmem:[%s2433 + $0x130] sm:$0xf]
    %v3063 = vld [vmem:[%s2433 + $0x134] sm:$0x1]
    %v3064 = vld [vmem:[%s2433 + $0x138] sm:$0xf]
    %v3065 = vld [vmem:[%s2433 + $0x13c] sm:$0xf]
    %v3066 = vld [vmem:[%s2433 + $0x140] sm:$0x1]
    %v3067 = vld [vmem:[%s2433 + $0x144] sm:$0xf]
    %v3068 = vld [vmem:[%s2433 + $0x148] sm:$0xf]
    %v3069 = vld [vmem:[%s2433 + $0x14c] sm:$0x1]
    %v3070 = vld [vmem:[%s2433 + $0x150] sm:$0xf]
    %v3071 = vld [vmem:[%s2433 + $0x154] sm:$0xf]
    %v3072 = vld [vmem:[%s2433 + $0x158] sm:$0x1]
    %v3073 = vld [vmem:[%s2433 + $0x15c] sm:$0xf]
    %v3074 = vld [vmem:[%s2433 + $0x160] sm:$0xf]
    %v3075 = vld [vmem:[%s2433 + $0x164] sm:$0x1]
    %v3076 = vld [vmem:[%s2433 + $0x168] sm:$0xf]
    %v3077 = vld [vmem:[%s2433 + $0x16c] sm:$0xf]
    %v3078 = vld [vmem:[%s2433 + $0x170] sm:$0x1]
    %v3079 = vld [vmem:[%s2433 + $0x174] sm:$0xf]
    %v3080 = vld [vmem:[%s2433 + $0x178] sm:$0xf]
    %v3081 = vld [vmem:[%s2433 + $0x17c] sm:$0x1]
    %v3082 = vld [vmem:[%s2433 + $0x180] sm:$0xf]
    %v3083 = vld [vmem:[%s2433 + $0x184] sm:$0xf]
    %v3084 = vld [vmem:[%s2433 + $0x188] sm:$0x1]
    %v3085 = vld [vmem:[%s2433 + $0x18c] sm:$0xf]
    %v3086 = vld [vmem:[%s2433 + $0x190] sm:$0xf]
    %v3087 = vld [vmem:[%s2433 + $0x194] sm:$0x1]
    %v3089 = vshrl.u32 %v2992, 16
    %v3091 = vrot.slane %v3089, 4
    %v3092 = vshll.u32 %v2992, 16
    %v3094 = vrot.slane %v3092, 5
    %v3095 = vor.u32 %v3091, %v3094
    %v3096 = vrot.slane %v3095, 4
    %v3098 = vshll.u32 %v2993, 16
    %v3100 = vrot.slane %v3098, 5
    %v3101 = vsel %vm115, %v3096, %v3100
    %v3102 = vshrl.u32 %v2993, 16
    %v3104 = vrot.slane %v3102, 4
    %v3105 = vor.u32 %v3104, %v3100
    %v3106 = vrot.slane %v3105, 4
    %v3108 = vshll.u32 %v2994, 16
    %v3110 = vrot.slane %v3108, 5
    %v3111 = vsel %vm115, %v3106, %v3110
    %v3113 = vshrl.u32 %v2995, 16
    %v3115 = vrot.slane %v3113, 4
    %v3116 = vshll.u32 %v2995, 16
    %v3118 = vrot.slane %v3116, 5
    %v3119 = vor.u32 %v3115, %v3118
    %v3120 = vrot.slane %v3119, 4
    %v3122 = vshll.u32 %v2996, 16
    %v3124 = vrot.slane %v3122, 5
    %v3125 = vsel %vm115, %v3120, %v3124
    %v3126 = vshrl.u32 %v2996, 16
    %v3128 = vrot.slane %v3126, 4
    %v3129 = vor.u32 %v3128, %v3124
    %v3130 = vrot.slane %v3129, 4
    %v3132 = vshll.u32 %v2997, 16
    %v3134 = vrot.slane %v3132, 5
    %v3135 = vsel %vm115, %v3130, %v3134
    %v3137 = vshrl.u32 %v2998, 16
    %v3139 = vrot.slane %v3137, 4
    %v3140 = vshll.u32 %v2998, 16
    %v3142 = vrot.slane %v3140, 5
    %v3143 = vor.u32 %v3139, %v3142
    %v3144 = vrot.slane %v3143, 4
    %v3146 = vshll.u32 %v2999, 16
    %v3148 = vrot.slane %v3146, 5
    %v3149 = vsel %vm115, %v3144, %v3148
    %v3150 = vshrl.u32 %v2999, 16
    %v3152 = vrot.slane %v3150, 4
    %v3153 = vor.u32 %v3152, %v3148
    %v3154 = vrot.slane %v3153, 4
    %v3156 = vshll.u32 %v3000, 16
    %v3158 = vrot.slane %v3156, 5
    %v3159 = vsel %vm115, %v3154, %v3158
    %v3161 = vshrl.u32 %v3001, 16
    %v3163 = vrot.slane %v3161, 4
    %v3164 = vshll.u32 %v3001, 16
    %v3166 = vrot.slane %v3164, 5
    %v3167 = vor.u32 %v3163, %v3166
    %v3168 = vrot.slane %v3167, 4
    %v3170 = vshll.u32 %v3002, 16
    %v3172 = vrot.slane %v3170, 5
    %v3173 = vsel %vm115, %v3168, %v3172
    %v3174 = vshrl.u32 %v3002, 16
    %v3176 = vrot.slane %v3174, 4
    %v3177 = vor.u32 %v3176, %v3172
    %v3178 = vrot.slane %v3177, 4
    %v3180 = vshll.u32 %v3003, 16
    %v3182 = vrot.slane %v3180, 5
    %v3183 = vsel %vm115, %v3178, %v3182
    %v3185 = vshrl.u32 %v3004, 16
    %v3187 = vrot.slane %v3185, 4
    %v3188 = vshll.u32 %v3004, 16
    %v3190 = vrot.slane %v3188, 5
    %v3191 = vor.u32 %v3187, %v3190
    %v3192 = vrot.slane %v3191, 4
    %v3194 = vshll.u32 %v3005, 16
    %v3196 = vrot.slane %v3194, 5
    %v3197 = vsel %vm115, %v3192, %v3196
    %v3198 = vshrl.u32 %v3005, 16
    %v3200 = vrot.slane %v3198, 4
    %v3201 = vor.u32 %v3200, %v3196
    %v3202 = vrot.slane %v3201, 4
    %v3204 = vshll.u32 %v3006, 16
    %v3206 = vrot.slane %v3204, 5
    %v3207 = vsel %vm115, %v3202, %v3206
    %v3209 = vshrl.u32 %v3007, 16
    %v3211 = vrot.slane %v3209, 4
    %v3212 = vshll.u32 %v3007, 16
    %v3214 = vrot.slane %v3212, 5
    %v3215 = vor.u32 %v3211, %v3214
    %v3216 = vrot.slane %v3215, 4
    %v3218 = vshll.u32 %v3008, 16
    %v3220 = vrot.slane %v3218, 5
    %v3221 = vsel %vm115, %v3216, %v3220
    %v3222 = vshrl.u32 %v3008, 16
    %v3224 = vrot.slane %v3222, 4
    %v3225 = vor.u32 %v3224, %v3220
    %v3226 = vrot.slane %v3225, 4
    %v3228 = vshll.u32 %v3009, 16
    %v3230 = vrot.slane %v3228, 5
    %v3231 = vsel %vm115, %v3226, %v3230
    %v3233 = vshrl.u32 %v3010, 16
    %v3235 = vrot.slane %v3233, 4
    %v3236 = vshll.u32 %v3010, 16
    %v3238 = vrot.slane %v3236, 5
    %v3239 = vor.u32 %v3235, %v3238
    %v3240 = vrot.slane %v3239, 4
    %v3242 = vshll.u32 %v3011, 16
    %v3244 = vrot.slane %v3242, 5
    %v3245 = vsel %vm115, %v3240, %v3244
    %v3246 = vshrl.u32 %v3011, 16
    %v3248 = vrot.slane %v3246, 4
    %v3249 = vor.u32 %v3248, %v3244
    %v3250 = vrot.slane %v3249, 4
    %v3252 = vshll.u32 %v3012, 16
    %v3254 = vrot.slane %v3252, 5
    %v3255 = vsel %vm115, %v3250, %v3254
    %v3257 = vshrl.u32 %v3013, 16
    %v3259 = vrot.slane %v3257, 4
    %v3260 = vshll.u32 %v3013, 16
    %v3262 = vrot.slane %v3260, 5
    %v3263 = vor.u32 %v3259, %v3262
    %v3264 = vrot.slane %v3263, 4
    %v3266 = vshll.u32 %v3014, 16
    %v3268 = vrot.slane %v3266, 5
    %v3269 = vsel %vm115, %v3264, %v3268
    %v3270 = vshrl.u32 %v3014, 16
    %v3272 = vrot.slane %v3270, 4
    %v3273 = vor.u32 %v3272, %v3268
    %v3274 = vrot.slane %v3273, 4
    %v3276 = vshll.u32 %v3015, 16
    %v3278 = vrot.slane %v3276, 5
    %v3279 = vsel %vm115, %v3274, %v3278
    %v3281 = vshrl.u32 %v3016, 16
    %v3283 = vrot.slane %v3281, 4
    %v3284 = vshll.u32 %v3016, 16
    %v3286 = vrot.slane %v3284, 5
    %v3287 = vor.u32 %v3283, %v3286
    %v3288 = vrot.slane %v3287, 4
    %v3290 = vshll.u32 %v3017, 16
    %v3292 = vrot.slane %v3290, 5
    %v3293 = vsel %vm115, %v3288, %v3292
    %v3294 = vshrl.u32 %v3017, 16
    %v3296 = vrot.slane %v3294, 4
    %v3297 = vor.u32 %v3296, %v3292
    %v3298 = vrot.slane %v3297, 4
    %v3300 = vshll.u32 %v3018, 16
    %v3302 = vrot.slane %v3300, 5
    %v3303 = vsel %vm115, %v3298, %v3302
    %v3305 = vshrl.u32 %v3019, 16
    %v3307 = vrot.slane %v3305, 4
    %v3308 = vshll.u32 %v3019, 16
    %v3310 = vrot.slane %v3308, 5
    %v3311 = vor.u32 %v3307, %v3310
    %v3312 = vrot.slane %v3311, 4
    %v3314 = vshll.u32 %v3020, 16
    %v3316 = vrot.slane %v3314, 5
    %v3317 = vsel %vm115, %v3312, %v3316
    %v3318 = vshrl.u32 %v3020, 16
    %v3320 = vrot.slane %v3318, 4
    %v3321 = vor.u32 %v3320, %v3316
    %v3322 = vrot.slane %v3321, 4
    %v3324 = vshll.u32 %v3021, 16
    %v3326 = vrot.slane %v3324, 5
    %v3327 = vsel %vm115, %v3322, %v3326
    %v3329 = vshrl.u32 %v3022, 16
    %v3331 = vrot.slane %v3329, 4
    %v3332 = vshll.u32 %v3022, 16
    %v3334 = vrot.slane %v3332, 5
    %v3335 = vor.u32 %v3331, %v3334
    %v3336 = vrot.slane %v3335, 4
    %v3338 = vshll.u32 %v3023, 16
    %v3340 = vrot.slane %v3338, 5
    %v3341 = vsel %vm115, %v3336, %v3340
    %v3342 = vshrl.u32 %v3023, 16
    %v3344 = vrot.slane %v3342, 4
    %v3345 = vor.u32 %v3344, %v3340
    %v3346 = vrot.slane %v3345, 4
    %v3348 = vshll.u32 %v3024, 16
    %v3350 = vrot.slane %v3348, 5
    %v3351 = vsel %vm115, %v3346, %v3350
    %v3353 = vshrl.u32 %v3025, 16
    %v3355 = vrot.slane %v3353, 4
    %v3356 = vshll.u32 %v3025, 16
    %v3358 = vrot.slane %v3356, 5
    %v3359 = vor.u32 %v3355, %v3358
    %v3360 = vrot.slane %v3359, 4
    %v3362 = vshll.u32 %v3026, 16
    %v3364 = vrot.slane %v3362, 5
    %v3365 = vsel %vm115, %v3360, %v3364
    %v3366 = vshrl.u32 %v3026, 16
    %v3368 = vrot.slane %v3366, 4
    %v3369 = vor.u32 %v3368, %v3364
    %v3370 = vrot.slane %v3369, 4
    %v3372 = vshll.u32 %v3027, 16
    %v3374 = vrot.slane %v3372, 5
    %v3375 = vsel %vm115, %v3370, %v3374
    %v3377 = vshrl.u32 %v3028, 16
    %v3379 = vrot.slane %v3377, 4
    %v3380 = vshll.u32 %v3028, 16
    %v3382 = vrot.slane %v3380, 5
    %v3383 = vor.u32 %v3379, %v3382
    %v3384 = vrot.slane %v3383, 4
    %v3386 = vshll.u32 %v3029, 16
    %v3388 = vrot.slane %v3386, 5
    %v3389 = vsel %vm115, %v3384, %v3388
    %v3390 = vshrl.u32 %v3029, 16
    %v3392 = vrot.slane %v3390, 4
    %v3393 = vor.u32 %v3392, %v3388
    %v3394 = vrot.slane %v3393, 4
    %v3396 = vshll.u32 %v3030, 16
    %v3398 = vrot.slane %v3396, 5
    %v3399 = vsel %vm115, %v3394, %v3398
    %v3401 = vshrl.u32 %v3031, 16
    %v3403 = vrot.slane %v3401, 4
    %v3404 = vshll.u32 %v3031, 16
    %v3406 = vrot.slane %v3404, 5
    %v3407 = vor.u32 %v3403, %v3406
    %v3408 = vrot.slane %v3407, 4
    %v3410 = vshll.u32 %v3032, 16
    %v3412 = vrot.slane %v3410, 5
    %v3413 = vsel %vm115, %v3408, %v3412
    %v3414 = vshrl.u32 %v3032, 16
    %v3416 = vrot.slane %v3414, 4
    %v3417 = vor.u32 %v3416, %v3412
    %v3418 = vrot.slane %v3417, 4
    %v3420 = vshll.u32 %v3033, 16
    %v3422 = vrot.slane %v3420, 5
    %v3423 = vsel %vm115, %v3418, %v3422
    %v3425 = vshrl.u32 %v3034, 16
    %v3427 = vrot.slane %v3425, 4
    %v3428 = vshll.u32 %v3034, 16
    %v3430 = vrot.slane %v3428, 5
    %v3431 = vor.u32 %v3427, %v3430
    %v3432 = vrot.slane %v3431, 4
    %v3434 = vshll.u32 %v3035, 16
    %v3436 = vrot.slane %v3434, 5
    %v3437 = vsel %vm115, %v3432, %v3436
    %v3438 = vshrl.u32 %v3035, 16
    %v3440 = vrot.slane %v3438, 4
    %v3441 = vor.u32 %v3440, %v3436
    %v3442 = vrot.slane %v3441, 4
    %v3444 = vshll.u32 %v3036, 16
    %v3446 = vrot.slane %v3444, 5
    %v3447 = vsel %vm115, %v3442, %v3446
    %v3449 = vshrl.u32 %v3037, 16
    %v3451 = vrot.slane %v3449, 4
    %v3452 = vshll.u32 %v3037, 16
    %v3454 = vrot.slane %v3452, 5
    %v3455 = vor.u32 %v3451, %v3454
    %v3456 = vrot.slane %v3455, 4
    %v3458 = vshll.u32 %v3038, 16
    %v3460 = vrot.slane %v3458, 5
    %v3461 = vsel %vm115, %v3456, %v3460
    %v3462 = vshrl.u32 %v3038, 16
    %v3464 = vrot.slane %v3462, 4
    %v3465 = vor.u32 %v3464, %v3460
    %v3466 = vrot.slane %v3465, 4
    %v3468 = vshll.u32 %v3039, 16
    %v3470 = vrot.slane %v3468, 5
    %v3471 = vsel %vm115, %v3466, %v3470
    %v3473 = vshrl.u32 %v3040, 16
    %v3475 = vrot.slane %v3473, 4
    %v3476 = vshll.u32 %v3040, 16
    %v3478 = vrot.slane %v3476, 5
    %v3479 = vor.u32 %v3475, %v3478
    %v3480 = vrot.slane %v3479, 4
    %v3482 = vshll.u32 %v3041, 16
    %v3484 = vrot.slane %v3482, 5
    %v3485 = vsel %vm115, %v3480, %v3484
    %v3486 = vshrl.u32 %v3041, 16
    %v3488 = vrot.slane %v3486, 4
    %v3489 = vor.u32 %v3488, %v3484
    %v3490 = vrot.slane %v3489, 4
    %v3492 = vshll.u32 %v3042, 16
    %v3494 = vrot.slane %v3492, 5
    %v3495 = vsel %vm115, %v3490, %v3494
    %v3497 = vshrl.u32 %v3043, 16
    %v3499 = vrot.slane %v3497, 4
    %v3500 = vshll.u32 %v3043, 16
    %v3502 = vrot.slane %v3500, 5
    %v3503 = vor.u32 %v3499, %v3502
    %v3504 = vrot.slane %v3503, 4
    %v3506 = vshll.u32 %v3044, 16
    %v3508 = vrot.slane %v3506, 5
    %v3509 = vsel %vm115, %v3504, %v3508
    %v3510 = vshrl.u32 %v3044, 16
    %v3512 = vrot.slane %v3510, 4
    %v3513 = vor.u32 %v3512, %v3508
    %v3514 = vrot.slane %v3513, 4
    %v3516 = vshll.u32 %v3045, 16
    %v3518 = vrot.slane %v3516, 5
    %v3519 = vsel %vm115, %v3514, %v3518
    %v3521 = vshrl.u32 %v3046, 16
    %v3523 = vrot.slane %v3521, 4
    %v3524 = vshll.u32 %v3046, 16
    %v3526 = vrot.slane %v3524, 5
    %v3527 = vor.u32 %v3523, %v3526
    %v3528 = vrot.slane %v3527, 4
    %v3530 = vshll.u32 %v3047, 16
    %v3532 = vrot.slane %v3530, 5
    %v3533 = vsel %vm115, %v3528, %v3532
    %v3534 = vshrl.u32 %v3047, 16
    %v3536 = vrot.slane %v3534, 4
    %v3537 = vor.u32 %v3536, %v3532
    %v3538 = vrot.slane %v3537, 4
    %v3540 = vshll.u32 %v3048, 16
    %v3542 = vrot.slane %v3540, 5
    %v3543 = vsel %vm115, %v3538, %v3542
    %v3545 = vshrl.u32 %v3049, 16
    %v3547 = vrot.slane %v3545, 4
    %v3548 = vshll.u32 %v3049, 16
    %v3550 = vrot.slane %v3548, 5
    %v3551 = vor.u32 %v3547, %v3550
    %v3552 = vrot.slane %v3551, 4
    %v3554 = vshll.u32 %v3050, 16
    %v3556 = vrot.slane %v3554, 5
    %v3557 = vsel %vm115, %v3552, %v3556
    %v3558 = vshrl.u32 %v3050, 16
    %v3560 = vrot.slane %v3558, 4
    %v3561 = vor.u32 %v3560, %v3556
    %v3562 = vrot.slane %v3561, 4
    %v3564 = vshll.u32 %v3051, 16
    %v3566 = vrot.slane %v3564, 5
    %v3567 = vsel %vm115, %v3562, %v3566
    %v3569 = vshrl.u32 %v3052, 16
    %v3571 = vrot.slane %v3569, 4
    %v3572 = vshll.u32 %v3052, 16
    %v3574 = vrot.slane %v3572, 5
    %v3575 = vor.u32 %v3571, %v3574
    %v3576 = vrot.slane %v3575, 4
    %v3578 = vshll.u32 %v3053, 16
    %v3580 = vrot.slane %v3578, 5
    %v3581 = vsel %vm115, %v3576, %v3580
    %v3582 = vshrl.u32 %v3053, 16
    %v3584 = vrot.slane %v3582, 4
    %v3585 = vor.u32 %v3584, %v3580
    %v3586 = vrot.slane %v3585, 4
    %v3588 = vshll.u32 %v3054, 16
    %v3590 = vrot.slane %v3588, 5
    %v3591 = vsel %vm115, %v3586, %v3590
    %v3593 = vshrl.u32 %v3055, 16
    %v3595 = vrot.slane %v3593, 4
    %v3596 = vshll.u32 %v3055, 16
    %v3598 = vrot.slane %v3596, 5
    %v3599 = vor.u32 %v3595, %v3598
    %v3600 = vrot.slane %v3599, 4
    %v3602 = vshll.u32 %v3056, 16
    %v3604 = vrot.slane %v3602, 5
    %v3605 = vsel %vm115, %v3600, %v3604
    %v3606 = vshrl.u32 %v3056, 16
    %v3608 = vrot.slane %v3606, 4
    %v3609 = vor.u32 %v3608, %v3604
    %v3610 = vrot.slane %v3609, 4
    %v3612 = vshll.u32 %v3057, 16
    %v3614 = vrot.slane %v3612, 5
    %v3615 = vsel %vm115, %v3610, %v3614
    %v3617 = vshrl.u32 %v3058, 16
    %v3619 = vrot.slane %v3617, 4
    %v3620 = vshll.u32 %v3058, 16
    %v3622 = vrot.slane %v3620, 5
    %v3623 = vor.u32 %v3619, %v3622
    %v3624 = vrot.slane %v3623, 4
    %v3626 = vshll.u32 %v3059, 16
    %v3628 = vrot.slane %v3626, 5
    %v3629 = vsel %vm115, %v3624, %v3628
    %v3630 = vshrl.u32 %v3059, 16
    %v3632 = vrot.slane %v3630, 4
    %v3633 = vor.u32 %v3632, %v3628
    %v3634 = vrot.slane %v3633, 4
    %v3636 = vshll.u32 %v3060, 16
    %v3638 = vrot.slane %v3636, 5
    %v3639 = vsel %vm115, %v3634, %v3638
    %v3641 = vshrl.u32 %v3061, 16
    %v3643 = vrot.slane %v3641, 4
    %v3644 = vshll.u32 %v3061, 16
    %v3646 = vrot.slane %v3644, 5
    %v3647 = vor.u32 %v3643, %v3646
    %v3648 = vrot.slane %v3647, 4
    %v3650 = vshll.u32 %v3062, 16
    %v3652 = vrot.slane %v3650, 5
    %v3653 = vsel %vm115, %v3648, %v3652
    %v3654 = vshrl.u32 %v3062, 16
    %v3656 = vrot.slane %v3654, 4
    %v3657 = vor.u32 %v3656, %v3652
    %v3658 = vrot.slane %v3657, 4
    %v3660 = vshll.u32 %v3063, 16
    %v3662 = vrot.slane %v3660, 5
    %v3663 = vsel %vm115, %v3658, %v3662
    %v3665 = vshrl.u32 %v3064, 16
    %v3667 = vrot.slane %v3665, 4
    %v3668 = vshll.u32 %v3064, 16
    %v3670 = vrot.slane %v3668, 5
    %v3671 = vor.u32 %v3667, %v3670
    %v3672 = vrot.slane %v3671, 4
    %v3674 = vshll.u32 %v3065, 16
    %v3676 = vrot.slane %v3674, 5
    %v3677 = vsel %vm115, %v3672, %v3676
    %v3678 = vshrl.u32 %v3065, 16
    %v3680 = vrot.slane %v3678, 4
    %v3681 = vor.u32 %v3680, %v3676
    %v3682 = vrot.slane %v3681, 4
    %v3684 = vshll.u32 %v3066, 16
    %v3686 = vrot.slane %v3684, 5
    %v3687 = vsel %vm115, %v3682, %v3686
    %v3689 = vshrl.u32 %v3067, 16
    %v3691 = vrot.slane %v3689, 4
    %v3692 = vshll.u32 %v3067, 16
    %v3694 = vrot.slane %v3692, 5
    %v3695 = vor.u32 %v3691, %v3694
    %v3696 = vrot.slane %v3695, 4
    %v3698 = vshll.u32 %v3068, 16
    %v3700 = vrot.slane %v3698, 5
    %v3701 = vsel %vm115, %v3696, %v3700
    %v3702 = vshrl.u32 %v3068, 16
    %v3704 = vrot.slane %v3702, 4
    %v3705 = vor.u32 %v3704, %v3700
    %v3706 = vrot.slane %v3705, 4
    %v3708 = vshll.u32 %v3069, 16
    %v3710 = vrot.slane %v3708, 5
    %v3711 = vsel %vm115, %v3706, %v3710
    %v3713 = vshrl.u32 %v3070, 16
    %v3715 = vrot.slane %v3713, 4
    %v3716 = vshll.u32 %v3070, 16
    %v3718 = vrot.slane %v3716, 5
    %v3719 = vor.u32 %v3715, %v3718
    %v3720 = vrot.slane %v3719, 4
    %v3722 = vshll.u32 %v3071, 16
    %v3724 = vrot.slane %v3722, 5
    %v3725 = vsel %vm115, %v3720, %v3724
    %v3726 = vshrl.u32 %v3071, 16
    %v3728 = vrot.slane %v3726, 4
    %v3729 = vor.u32 %v3728, %v3724
    %v3730 = vrot.slane %v3729, 4
    %v3732 = vshll.u32 %v3072, 16
    %v3734 = vrot.slane %v3732, 5
    %v3735 = vsel %vm115, %v3730, %v3734
    %v3737 = vshrl.u32 %v3073, 16
    %v3739 = vrot.slane %v3737, 4
    %v3740 = vshll.u32 %v3073, 16
    %v3742 = vrot.slane %v3740, 5
    %v3743 = vor.u32 %v3739, %v3742
    %v3744 = vrot.slane %v3743, 4
    %v3746 = vshll.u32 %v3074, 16
    %v3748 = vrot.slane %v3746, 5
    %v3749 = vsel %vm115, %v3744, %v3748
    %v3750 = vshrl.u32 %v3074, 16
    %v3752 = vrot.slane %v3750, 4
    %v3753 = vor.u32 %v3752, %v3748
    %v3754 = vrot.slane %v3753, 4
    %v3756 = vshll.u32 %v3075, 16
    %v3758 = vrot.slane %v3756, 5
    %v3759 = vsel %vm115, %v3754, %v3758
    %v3761 = vshrl.u32 %v3076, 16
    %v3763 = vrot.slane %v3761, 4
    %v3764 = vshll.u32 %v3076, 16
    %v3766 = vrot.slane %v3764, 5
    %v3767 = vor.u32 %v3763, %v3766
    %v3768 = vrot.slane %v3767, 4
    %v3770 = vshll.u32 %v3077, 16
    %v3772 = vrot.slane %v3770, 5
    %v3773 = vsel %vm115, %v3768, %v3772
    %v3774 = vshrl.u32 %v3077, 16
    %v3776 = vrot.slane %v3774, 4
    %v3777 = vor.u32 %v3776, %v3772
    %v3778 = vrot.slane %v3777, 4
    %v3780 = vshll.u32 %v3078, 16
    %v3782 = vrot.slane %v3780, 5
    %v3783 = vsel %vm115, %v3778, %v3782
    %v3785 = vshrl.u32 %v3079, 16
    %v3787 = vrot.slane %v3785, 4
    %v3788 = vshll.u32 %v3079, 16
    %v3790 = vrot.slane %v3788, 5
    %v3791 = vor.u32 %v3787, %v3790
    %v3792 = vrot.slane %v3791, 4
    %v3794 = vshll.u32 %v3080, 16
    %v3796 = vrot.slane %v3794, 5
    %v3797 = vsel %vm115, %v3792, %v3796
    %v3798 = vshrl.u32 %v3080, 16
    %v3800 = vrot.slane %v3798, 4
    %v3801 = vor.u32 %v3800, %v3796
    %v3802 = vrot.slane %v3801, 4
    %v3804 = vshll.u32 %v3081, 16
    %v3806 = vrot.slane %v3804, 5
    %v3807 = vsel %vm115, %v3802, %v3806
    %v3809 = vshrl.u32 %v3082, 16
    %v3811 = vrot.slane %v3809, 4
    %v3812 = vshll.u32 %v3082, 16
    %v3814 = vrot.slane %v3812, 5
    %v3815 = vor.u32 %v3811, %v3814
    %v3816 = vrot.slane %v3815, 4
    %v3818 = vshll.u32 %v3083, 16
    %v3820 = vrot.slane %v3818, 5
    %v3821 = vsel %vm115, %v3816, %v3820
    %v3822 = vshrl.u32 %v3083, 16
    %v3824 = vrot.slane %v3822, 4
    %v3825 = vor.u32 %v3824, %v3820
    %v3826 = vrot.slane %v3825, 4
    %v3828 = vshll.u32 %v3084, 16
    %v3830 = vrot.slane %v3828, 5
    %v3831 = vsel %vm115, %v3826, %v3830
    %v3833 = vshrl.u32 %v3085, 16
    %v3835 = vrot.slane %v3833, 4
    %v3836 = vshll.u32 %v3085, 16
    %v3838 = vrot.slane %v3836, 5
    %v3839 = vor.u32 %v3835, %v3838
    %v3840 = vrot.slane %v3839, 4
    %v3842 = vshll.u32 %v3086, 16
    %v3844 = vrot.slane %v3842, 5
    %v3845 = vsel %vm115, %v3840, %v3844
    %v3846 = vshrl.u32 %v3086, 16
    %v3848 = vrot.slane %v3846, 4
    %v3849 = vor.u32 %v3848, %v3844
    %v3850 = vrot.slane %v3849, 4
    %v3852 = vshll.u32 %v3087, 16
    %v3854 = vrot.slane %v3852, 5
    %v3855 = vsel %vm115, %v3850, %v3854
    %s3856 = scalar_lea.vmem %s1, 8
    %v3857 = vld [vmem:[%s3856] sm:$0x3]
    %v3858 = vunpack.c.l.b16 %v3101
    %v3859 = vunpack.c.l.b16 %v3111
    %v3860 = vunpack.c.l.b16 %v3125
    %v3861 = vunpack.c.l.b16 %v3135
    %v3862 = vunpack.c.l.b16 %v3149
    %v3863 = vunpack.c.l.b16 %v3159
    %v3864 = vunpack.c.l.b16 %v3173
    %v3865 = vunpack.c.l.b16 %v3183
    %v3866 = vunpack.c.l.b16 %v3197
    %v3867 = vunpack.c.l.b16 %v3207
    %v3868 = vunpack.c.l.b16 %v3221
    %v3869 = vunpack.c.l.b16 %v3231
    %v3870 = vunpack.c.l.b16 %v3245
    %v3871 = vunpack.c.l.b16 %v3255
    %v3872 = vunpack.c.l.b16 %v3269
    %v3873 = vunpack.c.l.b16 %v3279
    %v3874 = vunpack.c.l.b16 %v3293
    %v3875 = vunpack.c.l.b16 %v3303
    %v3876 = vunpack.c.l.b16 %v3317
    %v3877 = vunpack.c.l.b16 %v3327
    %v3878 = vunpack.c.l.b16 %v3341
    %v3879 = vunpack.c.l.b16 %v3351
    %v3880 = vunpack.c.l.b16 %v3365
    %v3881 = vunpack.c.l.b16 %v3375
    %v3882 = vunpack.c.l.b16 %v3389
    %v3883 = vunpack.c.l.b16 %v3399
    %v3884 = vunpack.c.l.b16 %v3413
    %v3885 = vunpack.c.l.b16 %v3423
    %v3886 = vunpack.c.l.b16 %v3437
    %v3887 = vunpack.c.l.b16 %v3447
    %v3888 = vunpack.c.l.b16 %v3461
    %v3889 = vunpack.c.l.b16 %v3471
    %v3890 = vunpack.c.l.b16 %v3485
    %v3891 = vunpack.c.l.b16 %v3495
    %v3892 = vunpack.c.l.b16 %v3509
    %v3893 = vunpack.c.l.b16 %v3519
    %v3894 = vunpack.c.l.b16 %v3533
    %v3895 = vunpack.c.l.b16 %v3543
    %v3896 = vunpack.c.l.b16 %v3557
    %v3897 = vunpack.c.l.b16 %v3567
    %v3898 = vunpack.c.l.b16 %v3581
    %v3899 = vunpack.c.l.b16 %v3591
    %v3900 = vunpack.c.l.b16 %v3605
    %v3901 = vunpack.c.l.b16 %v3615
    %v3902 = vunpack.c.l.b16 %v3629
    %v3903 = vunpack.c.l.b16 %v3639
    %v3904 = vunpack.c.l.b16 %v3653
    %v3905 = vunpack.c.l.b16 %v3663
    %v3906 = vunpack.c.l.b16 %v3677
    %v3907 = vunpack.c.l.b16 %v3687
    %v3908 = vunpack.c.l.b16 %v3701
    %v3909 = vunpack.c.l.b16 %v3711
    %v3910 = vunpack.c.l.b16 %v3725
    %v3911 = vunpack.c.l.b16 %v3735
    %v3912 = vunpack.c.l.b16 %v3749
    %v3913 = vunpack.c.l.b16 %v3759
    %v3914 = vunpack.c.l.b16 %v3773
    %v3915 = vunpack.c.l.b16 %v3783
    %v3916 = vunpack.c.l.b16 %v3797
    %v3917 = vunpack.c.l.b16 %v3807
    %v3918 = vunpack.c.l.b16 %v3821
    %v3919 = vunpack.c.l.b16 %v3831
    %v3920 = vunpack.c.l.b16 %v3845
    %v3921 = vunpack.c.l.b16 %v3855
    %v3922 = vpack.c.b16 %v3859, %v3858
    %v3923 = vpack.c.b16 %v3861, %v3860
    %v3924 = vpack.c.b16 %v3863, %v3862
    %v3925 = vpack.c.b16 %v3865, %v3864
    %v3926 = vpack.c.b16 %v3867, %v3866
    %v3927 = vpack.c.b16 %v3869, %v3868
    %v3928 = vpack.c.b16 %v3871, %v3870
    %v3929 = vpack.c.b16 %v3873, %v3872
    %v3930 = vpack.c.b16 %v3875, %v3874
    %v3931 = vpack.c.b16 %v3877, %v3876
    %v3932 = vpack.c.b16 %v3879, %v3878
    %v3933 = vpack.c.b16 %v3881, %v3880
    %v3934 = vpack.c.b16 %v3883, %v3882
    %v3935 = vpack.c.b16 %v3885, %v3884
    %v3936 = vpack.c.b16 %v3887, %v3886
    %v3937 = vpack.c.b16 %v3889, %v3888
    %v3938 = vpack.c.b16 %v3891, %v3890
    %v3939 = vpack.c.b16 %v3893, %v3892
    %v3940 = vpack.c.b16 %v3895, %v3894
    %v3941 = vpack.c.b16 %v3897, %v3896
    %v3942 = vpack.c.b16 %v3899, %v3898
    %v3943 = vpack.c.b16 %v3901, %v3900
    %v3944 = vpack.c.b16 %v3903, %v3902
    %v3945 = vpack.c.b16 %v3905, %v3904
    %v3946 = vpack.c.b16 %v3907, %v3906
    %v3947 = vpack.c.b16 %v3909, %v3908
    %v3948 = vpack.c.b16 %v3911, %v3910
    %v3949 = vpack.c.b16 %v3913, %v3912
    %v3950 = vpack.c.b16 %v3915, %v3914
    %v3951 = vpack.c.b16 %v3917, %v3916
    %v3952 = vpack.c.b16 %v3919, %v3918
    %v3953 = vpack.c.b16 %v3921, %v3920
    %v3955 = vsel %vm982, %v3922, 0
    %v3958 = vsel %vm982, %v3923, 0
    %v3961 = vsel %vm982, %v3924, 0
    %v3964 = vsel %vm982, %v3925, 0
    %v3967 = vsel %vm982, %v3926, 0
    %v3970 = vsel %vm982, %v3927, 0
    %v3973 = vsel %vm982, %v3928, 0
    %v3976 = vsel %vm982, %v3929, 0
    %v3979 = vsel %vm982, %v3930, 0
    %v3982 = vsel %vm982, %v3931, 0
    %v3985 = vsel %vm982, %v3932, 0
    %v3988 = vsel %vm982, %v3933, 0
    %v3991 = vsel %vm982, %v3934, 0
    %v3994 = vsel %vm982, %v3935, 0
    %v3997 = vsel %vm982, %v3936, 0
    %v4000 = vsel %vm982, %v3937, 0
    %v4003 = vsel %vm982, %v3938, 0
    %v4006 = vsel %vm982, %v3939, 0
    %v4009 = vsel %vm982, %v3940, 0
    %v4012 = vsel %vm982, %v3941, 0
    %v4015 = vsel %vm982, %v3942, 0
    %v4018 = vsel %vm982, %v3943, 0
    %v4021 = vsel %vm982, %v3944, 0
    %v4024 = vsel %vm982, %v3945, 0
    %v4027 = vsel %vm982, %v3946, 0
    %v4030 = vsel %vm982, %v3947, 0
    %v4033 = vsel %vm982, %v3948, 0
    %v4036 = vsel %vm982, %v3949, 0
    %v4039 = vsel %vm982, %v3950, 0
    %v4042 = vsel %vm982, %v3951, 0
    %v4045 = vsel %vm982, %v3952, 0
    %v4048 = vsel %vm982, %v3953, 0
    %v4051 = vsel %vm1079, %v3857, 0
    %4053 = vmatpush.bf16.msra.mxu0 0
    %4054 = vmatpush.bf16.msra.mxu0 0
    %4055 = vmatpush.bf16.msra.mxu0 0
    %4056 = vmatpush.bf16.msra.mxu0 0
    %4057 = vmatpush.bf16.msra.mxu0 0
    %4058 = vmatpush.bf16.msra.mxu0 0
    %4059 = vmatpush.bf16.msra.mxu0 0
    %4060 = vmatpush.bf16.msra.mxu0 %v4051
    %4061 = vmatmul.bf16.gmra.mxu0 %v3955
    %v4062 = vpop.f32.mrf.mxu0
    %v4063 = vadd.f32 0.0, %v4062
    %v4064 = vpop.f32.mrf.mxu0
    %v4065 = vadd.f32 0.0, %v4064
    %4066 = vmatmul.bf16.gmra.mxu0 %v3958
    %v4067 = vpop.f32.mrf.mxu0
    %v4068 = vadd.f32 0.0, %v4067
    %v4069 = vpop.f32.mrf.mxu0
    %v4070 = vadd.f32 0.0, %v4069
    %4071 = vmatmul.bf16.gmra.mxu0 %v3961
    %v4072 = vpop.f32.mrf.mxu0
    %v4073 = vadd.f32 0.0, %v4072
    %v4074 = vpop.f32.mrf.mxu0
    %v4075 = vadd.f32 0.0, %v4074
    %4076 = vmatmul.bf16.gmra.mxu0 %v3964
    %v4077 = vpop.f32.mrf.mxu0
    %v4078 = vadd.f32 0.0, %v4077
    %v4079 = vpop.f32.mrf.mxu0
    %v4080 = vadd.f32 0.0, %v4079
    %4081 = vmatmul.bf16.gmra.mxu0 %v3967
    %v4082 = vpop.f32.mrf.mxu0
    %v4083 = vadd.f32 0.0, %v4082
    %v4084 = vpop.f32.mrf.mxu0
    %v4085 = vadd.f32 0.0, %v4084
    %4086 = vmatmul.bf16.gmra.mxu0 %v3970
    %v4087 = vpop.f32.mrf.mxu0
    %v4088 = vadd.f32 0.0, %v4087
    %v4089 = vpop.f32.mrf.mxu0
    %v4090 = vadd.f32 0.0, %v4089
    %4091 = vmatmul.bf16.gmra.mxu0 %v3973
    %v4092 = vpop.f32.mrf.mxu0
    %v4093 = vadd.f32 0.0, %v4092
    %v4094 = vpop.f32.mrf.mxu0
    %v4095 = vadd.f32 0.0, %v4094
    %4096 = vmatmul.bf16.gmra.mxu0 %v3976
    %v4097 = vpop.f32.mrf.mxu0
    %v4098 = vadd.f32 0.0, %v4097
    %v4099 = vpop.f32.mrf.mxu0
    %v4100 = vadd.f32 0.0, %v4099
    %4101 = vmatmul.bf16.gmra.mxu0 %v3979
    %v4102 = vpop.f32.mrf.mxu0
    %v4103 = vadd.f32 0.0, %v4102
    %v4104 = vpop.f32.mrf.mxu0
    %v4105 = vadd.f32 0.0, %v4104
    %4106 = vmatmul.bf16.gmra.mxu0 %v3982
    %v4107 = vpop.f32.mrf.mxu0
    %v4108 = vadd.f32 0.0, %v4107
    %v4109 = vpop.f32.mrf.mxu0
    %v4110 = vadd.f32 0.0, %v4109
    %4111 = vmatmul.bf16.gmra.mxu0 %v3985
    %v4112 = vpop.f32.mrf.mxu0
    %v4113 = vadd.f32 0.0, %v4112
    %v4114 = vpop.f32.mrf.mxu0
    %v4115 = vadd.f32 0.0, %v4114
    %4116 = vmatmul.bf16.gmra.mxu0 %v3988
    %v4117 = vpop.f32.mrf.mxu0
    %v4118 = vadd.f32 0.0, %v4117
    %v4119 = vpop.f32.mrf.mxu0
    %v4120 = vadd.f32 0.0, %v4119
    %4121 = vmatmul.bf16.gmra.mxu0 %v3991
    %v4122 = vpop.f32.mrf.mxu0
    %v4123 = vadd.f32 0.0, %v4122
    %v4124 = vpop.f32.mrf.mxu0
    %v4125 = vadd.f32 0.0, %v4124
    %4126 = vmatmul.bf16.gmra.mxu0 %v3994
    %v4127 = vpop.f32.mrf.mxu0
    %v4128 = vadd.f32 0.0, %v4127
    %v4129 = vpop.f32.mrf.mxu0
    %v4130 = vadd.f32 0.0, %v4129
    %4131 = vmatmul.bf16.gmra.mxu0 %v3997
    %v4132 = vpop.f32.mrf.mxu0
    %v4133 = vadd.f32 0.0, %v4132
    %v4134 = vpop.f32.mrf.mxu0
    %v4135 = vadd.f32 0.0, %v4134
    %4136 = vmatmul.bf16.gmra.mxu0 %v4000
    %v4137 = vpop.f32.mrf.mxu0
    %v4138 = vadd.f32 0.0, %v4137
    %v4139 = vpop.f32.mrf.mxu0
    %v4140 = vadd.f32 0.0, %v4139
    %4141 = vmatmul.bf16.gmra.mxu0 %v4003
    %v4142 = vpop.f32.mrf.mxu0
    %v4143 = vadd.f32 0.0, %v4142
    %v4144 = vpop.f32.mrf.mxu0
    %v4145 = vadd.f32 0.0, %v4144
    %4146 = vmatmul.bf16.gmra.mxu0 %v4006
    %v4147 = vpop.f32.mrf.mxu0
    %v4148 = vadd.f32 0.0, %v4147
    %v4149 = vpop.f32.mrf.mxu0
    %v4150 = vadd.f32 0.0, %v4149
    %4151 = vmatmul.bf16.gmra.mxu0 %v4009
    %v4152 = vpop.f32.mrf.mxu0
    %v4153 = vadd.f32 0.0, %v4152
    %v4154 = vpop.f32.mrf.mxu0
    %v4155 = vadd.f32 0.0, %v4154
    %4156 = vmatmul.bf16.gmra.mxu0 %v4012
    %v4157 = vpop.f32.mrf.mxu0
    %v4158 = vadd.f32 0.0, %v4157
    %v4159 = vpop.f32.mrf.mxu0
    %v4160 = vadd.f32 0.0, %v4159
    %4161 = vmatmul.bf16.gmra.mxu0 %v4015
    %v4162 = vpop.f32.mrf.mxu0
    %v4163 = vadd.f32 0.0, %v4162
    %v4164 = vpop.f32.mrf.mxu0
    %v4165 = vadd.f32 0.0, %v4164
    %4166 = vmatmul.bf16.gmra.mxu0 %v4018
    %v4167 = vpop.f32.mrf.mxu0
    %v4168 = vadd.f32 0.0, %v4167
    %v4169 = vpop.f32.mrf.mxu0
    %v4170 = vadd.f32 0.0, %v4169
    %4171 = vmatmul.bf16.gmra.mxu0 %v4021
    %v4172 = vpop.f32.mrf.mxu0
    %v4173 = vadd.f32 0.0, %v4172
    %v4174 = vpop.f32.mrf.mxu0
    %v4175 = vadd.f32 0.0, %v4174
    %4176 = vmatmul.bf16.gmra.mxu0 %v4024
    %v4177 = vpop.f32.mrf.mxu0
    %v4178 = vadd.f32 0.0, %v4177
    %v4179 = vpop.f32.mrf.mxu0
    %v4180 = vadd.f32 0.0, %v4179
    %4181 = vmatmul.bf16.gmra.mxu0 %v4027
    %v4182 = vpop.f32.mrf.mxu0
    %v4183 = vadd.f32 0.0, %v4182
    %v4184 = vpop.f32.mrf.mxu0
    %v4185 = vadd.f32 0.0, %v4184
    %4186 = vmatmul.bf16.gmra.mxu0 %v4030
    %v4187 = vpop.f32.mrf.mxu0
    %v4188 = vadd.f32 0.0, %v4187
    %v4189 = vpop.f32.mrf.mxu0
    %v4190 = vadd.f32 0.0, %v4189
    %4191 = vmatmul.bf16.gmra.mxu0 %v4033
    %v4192 = vpop.f32.mrf.mxu0
    %v4193 = vadd.f32 0.0, %v4192
    %v4194 = vpop.f32.mrf.mxu0
    %v4195 = vadd.f32 0.0, %v4194
    %4196 = vmatmul.bf16.gmra.mxu0 %v4036
    %v4197 = vpop.f32.mrf.mxu0
    %v4198 = vadd.f32 0.0, %v4197
    %v4199 = vpop.f32.mrf.mxu0
    %v4200 = vadd.f32 0.0, %v4199
    %4201 = vmatmul.bf16.gmra.mxu0 %v4039
    %v4202 = vpop.f32.mrf.mxu0
    %v4203 = vadd.f32 0.0, %v4202
    %v4204 = vpop.f32.mrf.mxu0
    %v4205 = vadd.f32 0.0, %v4204
    %4206 = vmatmul.bf16.gmra.mxu0 %v4042
    %v4207 = vpop.f32.mrf.mxu0
    %v4208 = vadd.f32 0.0, %v4207
    %v4209 = vpop.f32.mrf.mxu0
    %v4210 = vadd.f32 0.0, %v4209
    %4211 = vmatmul.bf16.gmra.mxu0 %v4045
    %v4212 = vpop.f32.mrf.mxu0
    %v4213 = vadd.f32 0.0, %v4212
    %v4214 = vpop.f32.mrf.mxu0
    %v4215 = vadd.f32 0.0, %v4214
    %4216 = vmatmul.bf16.gmra.mxu0 %v4048
    %v4217 = vpop.f32.mrf.mxu0
    %v4218 = vadd.f32 0.0, %v4217
    %v4219 = vpop.f32.mrf.mxu0
    %v4220 = vadd.f32 0.0, %v4219
    %4221 = vdwg.mxu0
    %v4222 = vadd.f32 %v2928, %v4063
    %v4223 = vadd.f32 %v2929, %v4065
    %v4224 = vadd.f32 %v2930, %v4068
    %v4225 = vadd.f32 %v2931, %v4070
    %v4226 = vadd.f32 %v2932, %v4073
    %v4227 = vadd.f32 %v2933, %v4075
    %v4228 = vadd.f32 %v2934, %v4078
    %v4229 = vadd.f32 %v2935, %v4080
    %v4230 = vadd.f32 %v2936, %v4083
    %v4231 = vadd.f32 %v2937, %v4085
    %v4232 = vadd.f32 %v2938, %v4088
    %v4233 = vadd.f32 %v2939, %v4090
    %v4234 = vadd.f32 %v2940, %v4093
    %v4235 = vadd.f32 %v2941, %v4095
    %v4236 = vadd.f32 %v2942, %v4098
    %v4237 = vadd.f32 %v2943, %v4100
    %v4238 = vadd.f32 %v2944, %v4103
    %v4239 = vadd.f32 %v2945, %v4105
    %v4240 = vadd.f32 %v2946, %v4108
    %v4241 = vadd.f32 %v2947, %v4110
    %v4242 = vadd.f32 %v2948, %v4113
    %v4243 = vadd.f32 %v2949, %v4115
    %v4244 = vadd.f32 %v2950, %v4118
    %v4245 = vadd.f32 %v2951, %v4120
    %v4246 = vadd.f32 %v2952, %v4123
    %v4247 = vadd.f32 %v2953, %v4125
    %v4248 = vadd.f32 %v2954, %v4128
    %v4249 = vadd.f32 %v2955, %v4130
    %v4250 = vadd.f32 %v2956, %v4133
    %v4251 = vadd.f32 %v2957, %v4135
    %v4252 = vadd.f32 %v2958, %v4138
    %v4253 = vadd.f32 %v2959, %v4140
    %v4254 = vadd.f32 %v2960, %v4143
    %v4255 = vadd.f32 %v2961, %v4145
    %v4256 = vadd.f32 %v2962, %v4148
    %v4257 = vadd.f32 %v2963, %v4150
    %v4258 = vadd.f32 %v2964, %v4153
    %v4259 = vadd.f32 %v2965, %v4155
    %v4260 = vadd.f32 %v2966, %v4158
    %v4261 = vadd.f32 %v2967, %v4160
    %v4262 = vadd.f32 %v2968, %v4163
    %v4263 = vadd.f32 %v2969, %v4165
    %v4264 = vadd.f32 %v2970, %v4168
    %v4265 = vadd.f32 %v2971, %v4170
    %v4266 = vadd.f32 %v2972, %v4173
    %v4267 = vadd.f32 %v2973, %v4175
    %v4268 = vadd.f32 %v2974, %v4178
    %v4269 = vadd.f32 %v2975, %v4180
    %v4270 = vadd.f32 %v2976, %v4183
    %v4271 = vadd.f32 %v2977, %v4185
    %v4272 = vadd.f32 %v2978, %v4188
    %v4273 = vadd.f32 %v2979, %v4190
    %v4274 = vadd.f32 %v2980, %v4193
    %v4275 = vadd.f32 %v2981, %v4195
    %v4276 = vadd.f32 %v2982, %v4198
    %v4277 = vadd.f32 %v2983, %v4200
    %v4278 = vadd.f32 %v2984, %v4203
    %v4279 = vadd.f32 %v2985, %v4205
    %v4280 = vadd.f32 %v2986, %v4208
    %v4281 = vadd.f32 %v2987, %v4210
    %v4282 = vadd.f32 %v2988, %v4213
    %v4283 = vadd.f32 %v2989, %v4215
    %v4284 = vadd.f32 %v2990, %v4218
    %v4285 = vadd.f32 %v2991, %v4220
    %v4286 = vld [vmem:[%s2433] sm:$0xe]
    %v4287 = vld [vmem:[%s2433 + $0xc] sm:$0xe]
    %v4288 = vld [vmem:[%s2433 + $0x18] sm:$0xe]
    %v4289 = vld [vmem:[%s2433 + $0x24] sm:$0xe]
    %v4290 = vld [vmem:[%s2433 + $0x30] sm:$0xe]
    %v4291 = vld [vmem:[%s2433 + $0x3c] sm:$0xe]
    %v4292 = vld [vmem:[%s2433 + $0x48] sm:$0xe]
    %v4293 = vld [vmem:[%s2433 + $0x54] sm:$0xe]
    %v4294 = vld [vmem:[%s2433 + $0x60] sm:$0xe]
    %v4295 = vld [vmem:[%s2433 + $0x6c] sm:$0xe]
    %v4296 = vld [vmem:[%s2433 + $0x78] sm:$0xe]
    %v4297 = vld [vmem:[%s2433 + $0x84] sm:$0xe]
    %v4298 = vld [vmem:[%s2433 + $0x90] sm:$0xe]
    %v4299 = vld [vmem:[%s2433 + $0x9c] sm:$0xe]
    %v4300 = vld [vmem:[%s2433 + $0xa8] sm:$0xe]
    %v4301 = vld [vmem:[%s2433 + $0xb4] sm:$0xe]
    %v4302 = vld [vmem:[%s2433 + $0xd8] sm:$0xe]
    %v4303 = vld [vmem:[%s2433 + $0xe4] sm:$0xe]
    %v4304 = vld [vmem:[%s2433 + $0xf0] sm:$0xe]
    %v4305 = vld [vmem:[%s2433 + $0xfc] sm:$0xe]
    %v4306 = vld [vmem:[%s2433 + $0x108] sm:$0xe]
    %v4307 = vld [vmem:[%s2433 + $0x114] sm:$0xe]
    %v4308 = vld [vmem:[%s2433 + $0x120] sm:$0xe]
    %v4309 = vld [vmem:[%s2433 + $0x12c] sm:$0xe]
    %v4310 = vld [vmem:[%s2433 + $0x138] sm:$0xe]
    %v4311 = vld [vmem:[%s2433 + $0x144] sm:$0xe]
    %v4312 = vld [vmem:[%s2433 + $0x150] sm:$0xe]
    %v4313 = vld [vmem:[%s2433 + $0x15c] sm:$0xe]
    %v4314 = vld [vmem:[%s2433 + $0x168] sm:$0xe]
    %v4315 = vld [vmem:[%s2433 + $0x174] sm:$0xe]
    %v4316 = vld [vmem:[%s2433 + $0x180] sm:$0xe]
    %v4317 = vld [vmem:[%s2433 + $0x18c] sm:$0xe]
    %v4414 = vrot.slane %v4286, 5
    %v4415 = vrot.slane %v4414, 4
    %v4416 = vrot.slane %v2993, 5
    %v4417 = vsel %vm1778, %v4415, %v4416
    %v4418 = vrot.slane %v4416, 4
    %v4419 = vrot.slane %v2994, 5
    %v4420 = vsel %vm1778, %v4418, %v4419
    %v4421 = vrot.slane %v4287, 5
    %v4422 = vrot.slane %v4421, 4
    %v4423 = vrot.slane %v2996, 5
    %v4424 = vsel %vm1778, %v4422, %v4423
    %v4425 = vrot.slane %v4423, 4
    %v4426 = vrot.slane %v2997, 5
    %v4427 = vsel %vm1778, %v4425, %v4426
    %v4428 = vrot.slane %v4288, 5
    %v4429 = vrot.slane %v4428, 4
    %v4430 = vrot.slane %v2999, 5
    %v4431 = vsel %vm1778, %v4429, %v4430
    %v4432 = vrot.slane %v4430, 4
    %v4433 = vrot.slane %v3000, 5
    %v4434 = vsel %vm1778, %v4432, %v4433
    %v4435 = vrot.slane %v4289, 5
    %v4436 = vrot.slane %v4435, 4
    %v4437 = vrot.slane %v3002, 5
    %v4438 = vsel %vm1778, %v4436, %v4437
    %v4439 = vrot.slane %v4437, 4
    %v4440 = vrot.slane %v3003, 5
    %v4441 = vsel %vm1778, %v4439, %v4440
    %v4442 = vrot.slane %v4290, 5
    %v4443 = vrot.slane %v4442, 4
    %v4444 = vrot.slane %v3005, 5
    %v4445 = vsel %vm1778, %v4443, %v4444
    %v4446 = vrot.slane %v4444, 4
    %v4447 = vrot.slane %v3006, 5
    %v4448 = vsel %vm1778, %v4446, %v4447
    %v4449 = vrot.slane %v4291, 5
    %v4450 = vrot.slane %v4449, 4
    %v4451 = vrot.slane %v3008, 5
    %v4452 = vsel %vm1778, %v4450, %v4451
    %v4453 = vrot.slane %v4451, 4
    %v4454 = vrot.slane %v3009, 5
    %v4455 = vsel %vm1778, %v4453, %v4454
    %v4456 = vrot.slane %v4292, 5
    %v4457 = vrot.slane %v4456, 4
    %v4458 = vrot.slane %v3011, 5
    %v4459 = vsel %vm1778, %v4457, %v4458
    %v4460 = vrot.slane %v4458, 4
    %v4461 = vrot.slane %v3012, 5
    %v4462 = vsel %vm1778, %v4460, %v4461
    %v4463 = vrot.slane %v4293, 5
    %v4464 = vrot.slane %v4463, 4
    %v4465 = vrot.slane %v3014, 5
    %v4466 = vsel %vm1778, %v4464, %v4465
    %v4467 = vrot.slane %v4465, 4
    %v4468 = vrot.slane %v3015, 5
    %v4469 = vsel %vm1778, %v4467, %v4468
    %v4470 = vrot.slane %v4294, 5
    %v4471 = vrot.slane %v4470, 4
    %v4472 = vrot.slane %v3017, 5
    %v4473 = vsel %vm1778, %v4471, %v4472
    %v4474 = vrot.slane %v4472, 4
    %v4475 = vrot.slane %v3018, 5
    %v4476 = vsel %vm1778, %v4474, %v4475
    %v4477 = vrot.slane %v4295, 5
    %v4478 = vrot.slane %v4477, 4
    %v4479 = vrot.slane %v3020, 5
    %v4480 = vsel %vm1778, %v4478, %v4479
    %v4481 = vrot.slane %v4479, 4
    %v4482 = vrot.slane %v3021, 5
    %v4483 = vsel %vm1778, %v4481, %v4482
    %v4484 = vrot.slane %v4296, 5
    %v4485 = vrot.slane %v4484, 4
    %v4486 = vrot.slane %v3023, 5
    %v4487 = vsel %vm1778, %v4485, %v4486
    %v4488 = vrot.slane %v4486, 4
    %v4489 = vrot.slane %v3024, 5
    %v4490 = vsel %vm1778, %v4488, %v4489
    %v4491 = vrot.slane %v4297, 5
    %v4492 = vrot.slane %v4491, 4
    %v4493 = vrot.slane %v3026, 5
    %v4494 = vsel %vm1778, %v4492, %v4493
    %v4495 = vrot.slane %v4493, 4
    %v4496 = vrot.slane %v3027, 5
    %v4497 = vsel %vm1778, %v4495, %v4496
    %v4498 = vrot.slane %v4298, 5
    %v4499 = vrot.slane %v4498, 4
    %v4500 = vrot.slane %v3029, 5
    %v4501 = vsel %vm1778, %v4499, %v4500
    %v4502 = vrot.slane %v4500, 4
    %v4503 = vrot.slane %v3030, 5
    %v4504 = vsel %vm1778, %v4502, %v4503
    %v4505 = vrot.slane %v4299, 5
    %v4506 = vrot.slane %v4505, 4
    %v4507 = vrot.slane %v3032, 5
    %v4508 = vsel %vm1778, %v4506, %v4507
    %v4509 = vrot.slane %v4507, 4
    %v4510 = vrot.slane %v3033, 5
    %v4511 = vsel %vm1778, %v4509, %v4510
    %v4512 = vrot.slane %v4300, 5
    %v4513 = vrot.slane %v4512, 4
    %v4514 = vrot.slane %v3035, 5
    %v4515 = vsel %vm1778, %v4513, %v4514
    %v4516 = vrot.slane %v4514, 4
    %v4517 = vrot.slane %v3036, 5
    %v4518 = vsel %vm1778, %v4516, %v4517
    %v4519 = vrot.slane %v4301, 5
    %v4520 = vrot.slane %v4519, 4
    %v4521 = vrot.slane %v3038, 5
    %v4522 = vsel %vm1778, %v4520, %v4521
    %v4523 = vrot.slane %v4521, 4
    %v4524 = vrot.slane %v3039, 5
    %v4525 = vsel %vm1778, %v4523, %v4524
    %v4526 = vrot.slane %v4302, 5
    %v4527 = vrot.slane %v4526, 4
    %v4528 = vrot.slane %v3041, 5
    %v4529 = vsel %vm1778, %v4527, %v4528
    %v4530 = vrot.slane %v4528, 4
    %v4531 = vrot.slane %v3042, 5
    %v4532 = vsel %vm1778, %v4530, %v4531
    %v4533 = vrot.slane %v4303, 5
    %v4534 = vrot.slane %v4533, 4
    %v4535 = vrot.slane %v3044, 5
    %v4536 = vsel %vm1778, %v4534, %v4535
    %v4537 = vrot.slane %v4535, 4
    %v4538 = vrot.slane %v3045, 5
    %v4539 = vsel %vm1778, %v4537, %v4538
    %v4540 = vrot.slane %v4304, 5
    %v4541 = vrot.slane %v4540, 4
    %v4542 = vrot.slane %v3047, 5
    %v4543 = vsel %vm1778, %v4541, %v4542
    %v4544 = vrot.slane %v4542, 4
    %v4545 = vrot.slane %v3048, 5
    %v4546 = vsel %vm1778, %v4544, %v4545
    %v4547 = vrot.slane %v4305, 5
    %v4548 = vrot.slane %v4547, 4
    %v4549 = vrot.slane %v3050, 5
    %v4550 = vsel %vm1778, %v4548, %v4549
    %v4551 = vrot.slane %v4549, 4
    %v4552 = vrot.slane %v3051, 5
    %v4553 = vsel %vm1778, %v4551, %v4552
    %v4554 = vrot.slane %v4306, 5
    %v4555 = vrot.slane %v4554, 4
    %v4556 = vrot.slane %v3053, 5
    %v4557 = vsel %vm1778, %v4555, %v4556
    %v4558 = vrot.slane %v4556, 4
    %v4559 = vrot.slane %v3054, 5
    %v4560 = vsel %vm1778, %v4558, %v4559
    %v4561 = vrot.slane %v4307, 5
    %v4562 = vrot.slane %v4561, 4
    %v4563 = vrot.slane %v3056, 5
    %v4564 = vsel %vm1778, %v4562, %v4563
    %v4565 = vrot.slane %v4563, 4
    %v4566 = vrot.slane %v3057, 5
    %v4567 = vsel %vm1778, %v4565, %v4566
    %v4568 = vrot.slane %v4308, 5
    %v4569 = vrot.slane %v4568, 4
    %v4570 = vrot.slane %v3059, 5
    %v4571 = vsel %vm1778, %v4569, %v4570
    %v4572 = vrot.slane %v4570, 4
    %v4573 = vrot.slane %v3060, 5
    %v4574 = vsel %vm1778, %v4572, %v4573
    %v4575 = vrot.slane %v4309, 5
    %v4576 = vrot.slane %v4575, 4
    %v4577 = vrot.slane %v3062, 5
    %v4578 = vsel %vm1778, %v4576, %v4577
    %v4579 = vrot.slane %v4577, 4
    %v4580 = vrot.slane %v3063, 5
    %v4581 = vsel %vm1778, %v4579, %v4580
    %v4582 = vrot.slane %v4310, 5
    %v4583 = vrot.slane %v4582, 4
    %v4584 = vrot.slane %v3065, 5
    %v4585 = vsel %vm1778, %v4583, %v4584
    %v4586 = vrot.slane %v4584, 4
    %v4587 = vrot.slane %v3066, 5
    %v4588 = vsel %vm1778, %v4586, %v4587
    %v4589 = vrot.slane %v4311, 5
    %v4590 = vrot.slane %v4589, 4
    %v4591 = vrot.slane %v3068, 5
    %v4592 = vsel %vm1778, %v4590, %v4591
    %v4593 = vrot.slane %v4591, 4
    %v4594 = vrot.slane %v3069, 5
    %v4595 = vsel %vm1778, %v4593, %v4594
    %v4596 = vrot.slane %v4312, 5
    %v4597 = vrot.slane %v4596, 4
    %v4598 = vrot.slane %v3071, 5
    %v4599 = vsel %vm1778, %v4597, %v4598
    %v4600 = vrot.slane %v4598, 4
    %v4601 = vrot.slane %v3072, 5
    %v4602 = vsel %vm1778, %v4600, %v4601
    %v4603 = vrot.slane %v4313, 5
    %v4604 = vrot.slane %v4603, 4
    %v4605 = vrot.slane %v3074, 5
    %v4606 = vsel %vm1778, %v4604, %v4605
    %v4607 = vrot.slane %v4605, 4
    %v4608 = vrot.slane %v3075, 5
    %v4609 = vsel %vm1778, %v4607, %v4608
    %v4610 = vrot.slane %v4314, 5
    %v4611 = vrot.slane %v4610, 4
    %v4612 = vrot.slane %v3077, 5
    %v4613 = vsel %vm1778, %v4611, %v4612
    %v4614 = vrot.slane %v4612, 4
    %v4615 = vrot.slane %v3078, 5
    %v4616 = vsel %vm1778, %v4614, %v4615
    %v4617 = vrot.slane %v4315, 5
    %v4618 = vrot.slane %v4617, 4
    %v4619 = vrot.slane %v3080, 5
    %v4620 = vsel %vm1778, %v4618, %v4619
    %v4621 = vrot.slane %v4619, 4
    %v4622 = vrot.slane %v3081, 5
    %v4623 = vsel %vm1778, %v4621, %v4622
    %v4624 = vrot.slane %v4316, 5
    %v4625 = vrot.slane %v4624, 4
    %v4626 = vrot.slane %v3083, 5
    %v4627 = vsel %vm1778, %v4625, %v4626
    %v4628 = vrot.slane %v4626, 4
    %v4629 = vrot.slane %v3084, 5
    %v4630 = vsel %vm1778, %v4628, %v4629
    %v4631 = vrot.slane %v4317, 5
    %v4632 = vrot.slane %v4631, 4
    %v4633 = vrot.slane %v3086, 5
    %v4634 = vsel %vm1778, %v4632, %v4633
    %v4635 = vrot.slane %v4633, 4
    %v4636 = vrot.slane %v3087, 5
    %v4637 = vsel %vm1778, %v4635, %v4636
    %s4638 = scalar_lea.vmem %s1, 10
    %v4639 = vld [vmem:[%s4638] sm:$0x3]
    %v4640 = vunpack.c.l.b16 %v4417
    %v4641 = vunpack.c.l.b16 %v4420
    %v4642 = vunpack.c.l.b16 %v4424
    %v4643 = vunpack.c.l.b16 %v4427
    %v4644 = vunpack.c.l.b16 %v4431
    %v4645 = vunpack.c.l.b16 %v4434
    %v4646 = vunpack.c.l.b16 %v4438
    %v4647 = vunpack.c.l.b16 %v4441
    %v4648 = vunpack.c.l.b16 %v4445
    %v4649 = vunpack.c.l.b16 %v4448
    %v4650 = vunpack.c.l.b16 %v4452
    %v4651 = vunpack.c.l.b16 %v4455
    %v4652 = vunpack.c.l.b16 %v4459
    %v4653 = vunpack.c.l.b16 %v4462
    %v4654 = vunpack.c.l.b16 %v4466
    %v4655 = vunpack.c.l.b16 %v4469
    %v4656 = vunpack.c.l.b16 %v4473
    %v4657 = vunpack.c.l.b16 %v4476
    %v4658 = vunpack.c.l.b16 %v4480
    %v4659 = vunpack.c.l.b16 %v4483
    %v4660 = vunpack.c.l.b16 %v4487
    %v4661 = vunpack.c.l.b16 %v4490
    %v4662 = vunpack.c.l.b16 %v4494
    %v4663 = vunpack.c.l.b16 %v4497
    %v4664 = vunpack.c.l.b16 %v4501
    %v4665 = vunpack.c.l.b16 %v4504
    %v4666 = vunpack.c.l.b16 %v4508
    %v4667 = vunpack.c.l.b16 %v4511
    %v4668 = vunpack.c.l.b16 %v4515
    %v4669 = vunpack.c.l.b16 %v4518
    %v4670 = vunpack.c.l.b16 %v4522
    %v4671 = vunpack.c.l.b16 %v4525
    %v4672 = vunpack.c.l.b16 %v4529
    %v4673 = vunpack.c.l.b16 %v4532
    %v4674 = vunpack.c.l.b16 %v4536
    %v4675 = vunpack.c.l.b16 %v4539
    %v4676 = vunpack.c.l.b16 %v4543
    %v4677 = vunpack.c.l.b16 %v4546
    %v4678 = vunpack.c.l.b16 %v4550
    %v4679 = vunpack.c.l.b16 %v4553
    %v4680 = vunpack.c.l.b16 %v4557
    %v4681 = vunpack.c.l.b16 %v4560
    %v4682 = vunpack.c.l.b16 %v4564
    %v4683 = vunpack.c.l.b16 %v4567
    %v4684 = vunpack.c.l.b16 %v4571
    %v4685 = vunpack.c.l.b16 %v4574
    %v4686 = vunpack.c.l.b16 %v4578
    %v4687 = vunpack.c.l.b16 %v4581
    %v4688 = vunpack.c.l.b16 %v4585
    %v4689 = vunpack.c.l.b16 %v4588
    %v4690 = vunpack.c.l.b16 %v4592
    %v4691 = vunpack.c.l.b16 %v4595
    %v4692 = vunpack.c.l.b16 %v4599
    %v4693 = vunpack.c.l.b16 %v4602
    %v4694 = vunpack.c.l.b16 %v4606
    %v4695 = vunpack.c.l.b16 %v4609
    %v4696 = vunpack.c.l.b16 %v4613
    %v4697 = vunpack.c.l.b16 %v4616
    %v4698 = vunpack.c.l.b16 %v4620
    %v4699 = vunpack.c.l.b16 %v4623
    %v4700 = vunpack.c.l.b16 %v4627
    %v4701 = vunpack.c.l.b16 %v4630
    %v4702 = vunpack.c.l.b16 %v4634
    %v4703 = vunpack.c.l.b16 %v4637
    %v4704 = vpack.c.b16 %v4641, %v4640
    %v4705 = vpack.c.b16 %v4643, %v4642
    %v4706 = vpack.c.b16 %v4645, %v4644
    %v4707 = vpack.c.b16 %v4647, %v4646
    %v4708 = vpack.c.b16 %v4649, %v4648
    %v4709 = vpack.c.b16 %v4651, %v4650
    %v4710 = vpack.c.b16 %v4653, %v4652
    %v4711 = vpack.c.b16 %v4655, %v4654
    %v4712 = vpack.c.b16 %v4657, %v4656
    %v4713 = vpack.c.b16 %v4659, %v4658
    %v4714 = vpack.c.b16 %v4661, %v4660
    %v4715 = vpack.c.b16 %v4663, %v4662
    %v4716 = vpack.c.b16 %v4665, %v4664
    %v4717 = vpack.c.b16 %v4667, %v4666
    %v4718 = vpack.c.b16 %v4669, %v4668
    %v4719 = vpack.c.b16 %v4671, %v4670
    %v4720 = vpack.c.b16 %v4673, %v4672
    %v4721 = vpack.c.b16 %v4675, %v4674
    %v4722 = vpack.c.b16 %v4677, %v4676
    %v4723 = vpack.c.b16 %v4679, %v4678
    %v4724 = vpack.c.b16 %v4681, %v4680
    %v4725 = vpack.c.b16 %v4683, %v4682
    %v4726 = vpack.c.b16 %v4685, %v4684
    %v4727 = vpack.c.b16 %v4687, %v4686
    %v4728 = vpack.c.b16 %v4689, %v4688
    %v4729 = vpack.c.b16 %v4691, %v4690
    %v4730 = vpack.c.b16 %v4693, %v4692
    %v4731 = vpack.c.b16 %v4695, %v4694
    %v4732 = vpack.c.b16 %v4697, %v4696
    %v4733 = vpack.c.b16 %v4699, %v4698
    %v4734 = vpack.c.b16 %v4701, %v4700
    %v4735 = vpack.c.b16 %v4703, %v4702
    %v4737 = vsel %vm982, %v4704, 0
    %v4740 = vsel %vm982, %v4705, 0
    %v4743 = vsel %vm982, %v4706, 0
    %v4746 = vsel %vm982, %v4707, 0
    %v4749 = vsel %vm982, %v4708, 0
    %v4752 = vsel %vm982, %v4709, 0
    %v4755 = vsel %vm982, %v4710, 0
    %v4758 = vsel %vm982, %v4711, 0
    %v4761 = vsel %vm982, %v4712, 0
    %v4764 = vsel %vm982, %v4713, 0
    %v4767 = vsel %vm982, %v4714, 0
    %v4770 = vsel %vm982, %v4715, 0
    %v4773 = vsel %vm982, %v4716, 0
    %v4776 = vsel %vm982, %v4717, 0
    %v4779 = vsel %vm982, %v4718, 0
    %v4782 = vsel %vm982, %v4719, 0
    %v4785 = vsel %vm982, %v4720, 0
    %v4788 = vsel %vm982, %v4721, 0
    %v4791 = vsel %vm982, %v4722, 0
    %v4794 = vsel %vm982, %v4723, 0
    %v4797 = vsel %vm982, %v4724, 0
    %v4800 = vsel %vm982, %v4725, 0
    %v4803 = vsel %vm982, %v4726, 0
    %v4806 = vsel %vm982, %v4727, 0
    %v4809 = vsel %vm982, %v4728, 0
    %v4812 = vsel %vm982, %v4729, 0
    %v4815 = vsel %vm982, %v4730, 0
    %v4818 = vsel %vm982, %v4731, 0
    %v4821 = vsel %vm982, %v4732, 0
    %v4824 = vsel %vm982, %v4733, 0
    %v4827 = vsel %vm982, %v4734, 0
    %v4830 = vsel %vm982, %v4735, 0
    %v4833 = vsel %vm1079, %v4639, 0
    %4835 = vmatpush.bf16.msra.mxu0 0
    %4836 = vmatpush.bf16.msra.mxu0 0
    %4837 = vmatpush.bf16.msra.mxu0 0
    %4838 = vmatpush.bf16.msra.mxu0 0
    %4839 = vmatpush.bf16.msra.mxu0 0
    %4840 = vmatpush.bf16.msra.mxu0 0
    %4841 = vmatpush.bf16.msra.mxu0 0
    %4842 = vmatpush.bf16.msra.mxu0 %v4833
    %4843 = vmatmul.bf16.gmra.mxu0 %v4737
    %v4844 = vpop.f32.mrf.mxu0
    %v4845 = vadd.f32 0.0, %v4844
    %v4846 = vpop.f32.mrf.mxu0
    %v4847 = vadd.f32 0.0, %v4846
    %4848 = vmatmul.bf16.gmra.mxu0 %v4740
    %v4849 = vpop.f32.mrf.mxu0
    %v4850 = vadd.f32 0.0, %v4849
    %v4851 = vpop.f32.mrf.mxu0
    %v4852 = vadd.f32 0.0, %v4851
    %4853 = vmatmul.bf16.gmra.mxu0 %v4743
    %v4854 = vpop.f32.mrf.mxu0
    %v4855 = vadd.f32 0.0, %v4854
    %v4856 = vpop.f32.mrf.mxu0
    %v4857 = vadd.f32 0.0, %v4856
    %4858 = vmatmul.bf16.gmra.mxu0 %v4746
    %v4859 = vpop.f32.mrf.mxu0
    %v4860 = vadd.f32 0.0, %v4859
    %v4861 = vpop.f32.mrf.mxu0
    %v4862 = vadd.f32 0.0, %v4861
    %4863 = vmatmul.bf16.gmra.mxu0 %v4749
    %v4864 = vpop.f32.mrf.mxu0
    %v4865 = vadd.f32 0.0, %v4864
    %v4866 = vpop.f32.mrf.mxu0
    %v4867 = vadd.f32 0.0, %v4866
    %4868 = vmatmul.bf16.gmra.mxu0 %v4752
    %v4869 = vpop.f32.mrf.mxu0
    %v4870 = vadd.f32 0.0, %v4869
    %v4871 = vpop.f32.mrf.mxu0
    %v4872 = vadd.f32 0.0, %v4871
    %4873 = vmatmul.bf16.gmra.mxu0 %v4755
    %v4874 = vpop.f32.mrf.mxu0
    %v4875 = vadd.f32 0.0, %v4874
    %v4876 = vpop.f32.mrf.mxu0
    %v4877 = vadd.f32 0.0, %v4876
    %4878 = vmatmul.bf16.gmra.mxu0 %v4758
    %v4879 = vpop.f32.mrf.mxu0
    %v4880 = vadd.f32 0.0, %v4879
    %v4881 = vpop.f32.mrf.mxu0
    %v4882 = vadd.f32 0.0, %v4881
    %4883 = vmatmul.bf16.gmra.mxu0 %v4761
    %v4884 = vpop.f32.mrf.mxu0
    %v4885 = vadd.f32 0.0, %v4884
    %v4886 = vpop.f32.mrf.mxu0
    %v4887 = vadd.f32 0.0, %v4886
    %4888 = vmatmul.bf16.gmra.mxu0 %v4764
    %v4889 = vpop.f32.mrf.mxu0
    %v4890 = vadd.f32 0.0, %v4889
    %v4891 = vpop.f32.mrf.mxu0
    %v4892 = vadd.f32 0.0, %v4891
    %4893 = vmatmul.bf16.gmra.mxu0 %v4767
    %v4894 = vpop.f32.mrf.mxu0
    %v4895 = vadd.f32 0.0, %v4894
    %v4896 = vpop.f32.mrf.mxu0
    %v4897 = vadd.f32 0.0, %v4896
    %4898 = vmatmul.bf16.gmra.mxu0 %v4770
    %v4899 = vpop.f32.mrf.mxu0
    %v4900 = vadd.f32 0.0, %v4899
    %v4901 = vpop.f32.mrf.mxu0
    %v4902 = vadd.f32 0.0, %v4901
    %4903 = vmatmul.bf16.gmra.mxu0 %v4773
    %v4904 = vpop.f32.mrf.mxu0
    %v4905 = vadd.f32 0.0, %v4904
    %v4906 = vpop.f32.mrf.mxu0
    %v4907 = vadd.f32 0.0, %v4906
    %4908 = vmatmul.bf16.gmra.mxu0 %v4776
    %v4909 = vpop.f32.mrf.mxu0
    %v4910 = vadd.f32 0.0, %v4909
    %v4911 = vpop.f32.mrf.mxu0
    %v4912 = vadd.f32 0.0, %v4911
    %4913 = vmatmul.bf16.gmra.mxu0 %v4779
    %v4914 = vpop.f32.mrf.mxu0
    %v4915 = vadd.f32 0.0, %v4914
    %v4916 = vpop.f32.mrf.mxu0
    %v4917 = vadd.f32 0.0, %v4916
    %4918 = vmatmul.bf16.gmra.mxu0 %v4782
    %v4919 = vpop.f32.mrf.mxu0
    %v4920 = vadd.f32 0.0, %v4919
    %v4921 = vpop.f32.mrf.mxu0
    %v4922 = vadd.f32 0.0, %v4921
    %4923 = vmatmul.bf16.gmra.mxu0 %v4785
    %v4924 = vpop.f32.mrf.mxu0
    %v4925 = vadd.f32 0.0, %v4924
    %v4926 = vpop.f32.mrf.mxu0
    %v4927 = vadd.f32 0.0, %v4926
    %4928 = vmatmul.bf16.gmra.mxu0 %v4788
    %v4929 = vpop.f32.mrf.mxu0
    %v4930 = vadd.f32 0.0, %v4929
    %v4931 = vpop.f32.mrf.mxu0
    %v4932 = vadd.f32 0.0, %v4931
    %4933 = vmatmul.bf16.gmra.mxu0 %v4791
    %v4934 = vpop.f32.mrf.mxu0
    %v4935 = vadd.f32 0.0, %v4934
    %v4936 = vpop.f32.mrf.mxu0
    %v4937 = vadd.f32 0.0, %v4936
    %4938 = vmatmul.bf16.gmra.mxu0 %v4794
    %v4939 = vpop.f32.mrf.mxu0
    %v4940 = vadd.f32 0.0, %v4939
    %v4941 = vpop.f32.mrf.mxu0
    %v4942 = vadd.f32 0.0, %v4941
    %4943 = vmatmul.bf16.gmra.mxu0 %v4797
    %v4944 = vpop.f32.mrf.mxu0
    %v4945 = vadd.f32 0.0, %v4944
    %v4946 = vpop.f32.mrf.mxu0
    %v4947 = vadd.f32 0.0, %v4946
    %4948 = vmatmul.bf16.gmra.mxu0 %v4800
    %v4949 = vpop.f32.mrf.mxu0
    %v4950 = vadd.f32 0.0, %v4949
    %v4951 = vpop.f32.mrf.mxu0
    %v4952 = vadd.f32 0.0, %v4951
    %4953 = vmatmul.bf16.gmra.mxu0 %v4803
    %v4954 = vpop.f32.mrf.mxu0
    %v4955 = vadd.f32 0.0, %v4954
    %v4956 = vpop.f32.mrf.mxu0
    %v4957 = vadd.f32 0.0, %v4956
    %4958 = vmatmul.bf16.gmra.mxu0 %v4806
    %v4959 = vpop.f32.mrf.mxu0
    %v4960 = vadd.f32 0.0, %v4959
    %v4961 = vpop.f32.mrf.mxu0
    %v4962 = vadd.f32 0.0, %v4961
    %4963 = vmatmul.bf16.gmra.mxu0 %v4809
    %v4964 = vpop.f32.mrf.mxu0
    %v4965 = vadd.f32 0.0, %v4964
    %v4966 = vpop.f32.mrf.mxu0
    %v4967 = vadd.f32 0.0, %v4966
    %4968 = vmatmul.bf16.gmra.mxu0 %v4812
    %v4969 = vpop.f32.mrf.mxu0
    %v4970 = vadd.f32 0.0, %v4969
    %v4971 = vpop.f32.mrf.mxu0
    %v4972 = vadd.f32 0.0, %v4971
    %4973 = vmatmul.bf16.gmra.mxu0 %v4815
    %v4974 = vpop.f32.mrf.mxu0
    %v4975 = vadd.f32 0.0, %v4974
    %v4976 = vpop.f32.mrf.mxu0
    %v4977 = vadd.f32 0.0, %v4976
    %4978 = vmatmul.bf16.gmra.mxu0 %v4818
    %v4979 = vpop.f32.mrf.mxu0
    %v4980 = vadd.f32 0.0, %v4979
    %v4981 = vpop.f32.mrf.mxu0
    %v4982 = vadd.f32 0.0, %v4981
    %4983 = vmatmul.bf16.gmra.mxu0 %v4821
    %v4984 = vpop.f32.mrf.mxu0
    %v4985 = vadd.f32 0.0, %v4984
    %v4986 = vpop.f32.mrf.mxu0
    %v4987 = vadd.f32 0.0, %v4986
    %4988 = vmatmul.bf16.gmra.mxu0 %v4824
    %v4989 = vpop.f32.mrf.mxu0
    %v4990 = vadd.f32 0.0, %v4989
    %v4991 = vpop.f32.mrf.mxu0
    %v4992 = vadd.f32 0.0, %v4991
    %4993 = vmatmul.bf16.gmra.mxu0 %v4827
    %v4994 = vpop.f32.mrf.mxu0
    %v4995 = vadd.f32 0.0, %v4994
    %v4996 = vpop.f32.mrf.mxu0
    %v4997 = vadd.f32 0.0, %v4996
    %4998 = vmatmul.bf16.gmra.mxu0 %v4830
    %v4999 = vpop.f32.mrf.mxu0
    %v5000 = vadd.f32 0.0, %v4999
    %v5001 = vpop.f32.mrf.mxu0
    %v5002 = vadd.f32 0.0, %v5001
    %5003 = vdwg.mxu0
    %v5004 = vadd.f32 %v4222, %v4845
    %v5005 = vadd.f32 %v4223, %v4847
    %v5006 = vadd.f32 %v4224, %v4850
    %v5007 = vadd.f32 %v4225, %v4852
    %v5008 = vadd.f32 %v4226, %v4855
    %v5009 = vadd.f32 %v4227, %v4857
    %v5010 = vadd.f32 %v4228, %v4860
    %v5011 = vadd.f32 %v4229, %v4862
    %v5012 = vadd.f32 %v4230, %v4865
    %v5013 = vadd.f32 %v4231, %v4867
    %v5014 = vadd.f32 %v4232, %v4870
    %v5015 = vadd.f32 %v4233, %v4872
    %v5016 = vadd.f32 %v4234, %v4875
    %v5017 = vadd.f32 %v4235, %v4877
    %v5018 = vadd.f32 %v4236, %v4880
    %v5019 = vadd.f32 %v4237, %v4882
    %v5020 = vadd.f32 %v4238, %v4885
    %v5021 = vadd.f32 %v4239, %v4887
    %v5022 = vadd.f32 %v4240, %v4890
    %v5023 = vadd.f32 %v4241, %v4892
    %v5024 = vadd.f32 %v4242, %v4895
    %v5025 = vadd.f32 %v4243, %v4897
    %v5026 = vadd.f32 %v4244, %v4900
    %v5027 = vadd.f32 %v4245, %v4902
    %v5028 = vadd.f32 %v4246, %v4905
    %v5029 = vadd.f32 %v4247, %v4907
    %v5030 = vadd.f32 %v4248, %v4910
    %v5031 = vadd.f32 %v4249, %v4912
    %v5032 = vadd.f32 %v4250, %v4915
    %v5033 = vadd.f32 %v4251, %v4917
    %v5034 = vadd.f32 %v4252, %v4920
    %v5035 = vadd.f32 %v4253, %v4922
    %v5036 = vadd.f32 %v4254, %v4925
    %v5037 = vadd.f32 %v4255, %v4927
    %v5038 = vadd.f32 %v4256, %v4930
    %v5039 = vadd.f32 %v4257, %v4932
    %v5040 = vadd.f32 %v4258, %v4935
    %v5041 = vadd.f32 %v4259, %v4937
    %v5042 = vadd.f32 %v4260, %v4940
    %v5043 = vadd.f32 %v4261, %v4942
    %v5044 = vadd.f32 %v4262, %v4945
    %v5045 = vadd.f32 %v4263, %v4947
    %v5046 = vadd.f32 %v4264, %v4950
    %v5047 = vadd.f32 %v4265, %v4952
    %v5048 = vadd.f32 %v4266, %v4955
    %v5049 = vadd.f32 %v4267, %v4957
    %v5050 = vadd.f32 %v4268, %v4960
    %v5051 = vadd.f32 %v4269, %v4962
    %v5052 = vadd.f32 %v4270, %v4965
    %v5053 = vadd.f32 %v4271, %v4967
    %v5054 = vadd.f32 %v4272, %v4970
    %v5055 = vadd.f32 %v4273, %v4972
    %v5056 = vadd.f32 %v4274, %v4975
    %v5057 = vadd.f32 %v4275, %v4977
    %v5058 = vadd.f32 %v4276, %v4980
    %v5059 = vadd.f32 %v4277, %v4982
    %v5060 = vadd.f32 %v4278, %v4985
    %v5061 = vadd.f32 %v4279, %v4987
    %v5062 = vadd.f32 %v4280, %v4990
    %v5063 = vadd.f32 %v4281, %v4992
    %v5064 = vadd.f32 %v4282, %v4995
    %v5065 = vadd.f32 %v4283, %v4997
    %v5066 = vadd.f32 %v4284, %v5000
    %v5067 = vadd.f32 %v4285, %v5002
    %s5068 = scalar_lea.vmem %s0, 24
    %v5069 = vld [vmem:[%s5068] sm:$0xf]
    %v5070 = vld [vmem:[%s5068 + $0x4] sm:$0xf]
    %v5071 = vld [vmem:[%s5068 + $0xc] sm:$0xf]
    %v5072 = vld [vmem:[%s5068 + $0x10] sm:$0xf]
    %v5073 = vld [vmem:[%s5068 + $0x18] sm:$0xf]
    %v5074 = vld [vmem:[%s5068 + $0x1c] sm:$0xf]
    %v5075 = vld [vmem:[%s5068 + $0x24] sm:$0xf]
    %v5076 = vld [vmem:[%s5068 + $0x28] sm:$0xf]
    %v5077 = vld [vmem:[%s5068 + $0x30] sm:$0xf]
    %v5078 = vld [vmem:[%s5068 + $0x34] sm:$0xf]
    %v5079 = vld [vmem:[%s5068 + $0x3c] sm:$0xf]
    %v5080 = vld [vmem:[%s5068 + $0x40] sm:$0xf]
    %v5081 = vld [vmem:[%s5068 + $0x48] sm:$0xf]
    %v5082 = vld [vmem:[%s5068 + $0x4c] sm:$0xf]
    %v5083 = vld [vmem:[%s5068 + $0x54] sm:$0xf]
    %v5084 = vld [vmem:[%s5068 + $0x58] sm:$0xf]
    %v5085 = vld [vmem:[%s5068 + $0x60] sm:$0xf]
    %v5086 = vld [vmem:[%s5068 + $0x64] sm:$0xf]
    %v5087 = vld [vmem:[%s5068 + $0x6c] sm:$0xf]
    %v5088 = vld [vmem:[%s5068 + $0x70] sm:$0xf]
    %v5089 = vld [vmem:[%s5068 + $0x78] sm:$0xf]
    %v5090 = vld [vmem:[%s5068 + $0x7c] sm:$0xf]
    %v5091 = vld [vmem:[%s5068 + $0x84] sm:$0xf]
    %v5092 = vld [vmem:[%s5068 + $0x88] sm:$0xf]
    %v5093 = vld [vmem:[%s5068 + $0x90] sm:$0xf]
    %v5094 = vld [vmem:[%s5068 + $0x94] sm:$0xf]
    %v5095 = vld [vmem:[%s5068 + $0x9c] sm:$0xf]
    %v5096 = vld [vmem:[%s5068 + $0xa0] sm:$0xf]
    %v5097 = vld [vmem:[%s5068 + $0xa8] sm:$0xf]
    %v5098 = vld [vmem:[%s5068 + $0xac] sm:$0xf]
    %v5099 = vld [vmem:[%s5068 + $0xb4] sm:$0xf]
    %v5100 = vld [vmem:[%s5068 + $0xb8] sm:$0xf]
    %v5101 = vld [vmem:[%s5068 + $0xd8] sm:$0xf]
    %v5102 = vld [vmem:[%s5068 + $0xdc] sm:$0xf]
    %v5103 = vld [vmem:[%s5068 + $0xe4] sm:$0xf]
    %v5104 = vld [vmem:[%s5068 + $0xe8] sm:$0xf]
    %v5105 = vld [vmem:[%s5068 + $0xf0] sm:$0xf]
    %v5106 = vld [vmem:[%s5068 + $0xf4] sm:$0xf]
    %v5107 = vld [vmem:[%s5068 + $0xfc] sm:$0xf]
    %v5108 = vld [vmem:[%s5068 + $0x100] sm:$0xf]
    %v5109 = vld [vmem:[%s5068 + $0x108] sm:$0xf]
    %v5110 = vld [vmem:[%s5068 + $0x10c] sm:$0xf]
    %v5111 = vld [vmem:[%s5068 + $0x114] sm:$0xf]
    %v5112 = vld [vmem:[%s5068 + $0x118] sm:$0xf]
    %v5113 = vld [vmem:[%s5068 + $0x120] sm:$0xf]
    %v5114 = vld [vmem:[%s5068 + $0x124] sm:$0xf]
    %v5115 = vld [vmem:[%s5068 + $0x12c] sm:$0xf]
    %v5116 = vld [vmem:[%s5068 + $0x130] sm:$0xf]
    %v5117 = vld [vmem:[%s5068 + $0x138] sm:$0xf]
    %v5118 = vld [vmem:[%s5068 + $0x13c] sm:$0xf]
    %v5119 = vld [vmem:[%s5068 + $0x144] sm:$0xf]
    %v5120 = vld [vmem:[%s5068 + $0x148] sm:$0xf]
    %v5121 = vld [vmem:[%s5068 + $0x150] sm:$0xf]
    %v5122 = vld [vmem:[%s5068 + $0x154] sm:$0xf]
    %v5123 = vld [vmem:[%s5068 + $0x15c] sm:$0xf]
    %v5124 = vld [vmem:[%s5068 + $0x160] sm:$0xf]
    %v5125 = vld [vmem:[%s5068 + $0x168] sm:$0xf]
    %v5126 = vld [vmem:[%s5068 + $0x16c] sm:$0xf]
    %v5127 = vld [vmem:[%s5068 + $0x174] sm:$0xf]
    %v5128 = vld [vmem:[%s5068 + $0x178] sm:$0xf]
    %v5129 = vld [vmem:[%s5068 + $0x180] sm:$0xf]
    %v5130 = vld [vmem:[%s5068 + $0x184] sm:$0xf]
    %v5131 = vld [vmem:[%s5068 + $0x18c] sm:$0xf]
    %v5132 = vld [vmem:[%s5068 + $0x190] sm:$0xf]
    %s5133 = scalar_lea.vmem %s1, 12
    %v5134 = vld [vmem:[%s5133] sm:$0x3]
    %v5199 = vunpack.c.l.b16 %v5069
    %v5200 = vunpack.c.l.b16 %v5070
    %v5201 = vunpack.c.l.b16 %v5071
    %v5202 = vunpack.c.l.b16 %v5072
    %v5203 = vunpack.c.l.b16 %v5073
    %v5204 = vunpack.c.l.b16 %v5074
    %v5205 = vunpack.c.l.b16 %v5075
    %v5206 = vunpack.c.l.b16 %v5076
    %v5207 = vunpack.c.l.b16 %v5077
    %v5208 = vunpack.c.l.b16 %v5078
    %v5209 = vunpack.c.l.b16 %v5079
    %v5210 = vunpack.c.l.b16 %v5080
    %v5211 = vunpack.c.l.b16 %v5081
    %v5212 = vunpack.c.l.b16 %v5082
    %v5213 = vunpack.c.l.b16 %v5083
    %v5214 = vunpack.c.l.b16 %v5084
    %v5215 = vunpack.c.l.b16 %v5085
    %v5216 = vunpack.c.l.b16 %v5086
    %v5217 = vunpack.c.l.b16 %v5087
    %v5218 = vunpack.c.l.b16 %v5088
    %v5219 = vunpack.c.l.b16 %v5089
    %v5220 = vunpack.c.l.b16 %v5090
    %v5221 = vunpack.c.l.b16 %v5091
    %v5222 = vunpack.c.l.b16 %v5092
    %v5223 = vunpack.c.l.b16 %v5093
    %v5224 = vunpack.c.l.b16 %v5094
    %v5225 = vunpack.c.l.b16 %v5095
    %v5226 = vunpack.c.l.b16 %v5096
    %v5227 = vunpack.c.l.b16 %v5097
    %v5228 = vunpack.c.l.b16 %v5098
    %v5229 = vunpack.c.l.b16 %v5099
    %v5230 = vunpack.c.l.b16 %v5100
    %v5231 = vunpack.c.l.b16 %v5101
    %v5232 = vunpack.c.l.b16 %v5102
    %v5233 = vunpack.c.l.b16 %v5103
    %v5234 = vunpack.c.l.b16 %v5104
    %v5235 = vunpack.c.l.b16 %v5105
    %v5236 = vunpack.c.l.b16 %v5106
    %v5237 = vunpack.c.l.b16 %v5107
    %v5238 = vunpack.c.l.b16 %v5108
    %v5239 = vunpack.c.l.b16 %v5109
    %v5240 = vunpack.c.l.b16 %v5110
    %v5241 = vunpack.c.l.b16 %v5111
    %v5242 = vunpack.c.l.b16 %v5112
    %v5243 = vunpack.c.l.b16 %v5113
    %v5244 = vunpack.c.l.b16 %v5114
    %v5245 = vunpack.c.l.b16 %v5115
    %v5246 = vunpack.c.l.b16 %v5116
    %v5247 = vunpack.c.l.b16 %v5117
    %v5248 = vunpack.c.l.b16 %v5118
    %v5249 = vunpack.c.l.b16 %v5119
    %v5250 = vunpack.c.l.b16 %v5120
    %v5251 = vunpack.c.l.b16 %v5121
    %v5252 = vunpack.c.l.b16 %v5122
    %v5253 = vunpack.c.l.b16 %v5123
    %v5254 = vunpack.c.l.b16 %v5124
    %v5255 = vunpack.c.l.b16 %v5125
    %v5256 = vunpack.c.l.b16 %v5126
    %v5257 = vunpack.c.l.b16 %v5127
    %v5258 = vunpack.c.l.b16 %v5128
    %v5259 = vunpack.c.l.b16 %v5129
    %v5260 = vunpack.c.l.b16 %v5130
    %v5261 = vunpack.c.l.b16 %v5131
    %v5262 = vunpack.c.l.b16 %v5132
    %v5263 = vpack.c.b16 %v5200, %v5199
    %v5264 = vpack.c.b16 %v5202, %v5201
    %v5265 = vpack.c.b16 %v5204, %v5203
    %v5266 = vpack.c.b16 %v5206, %v5205
    %v5267 = vpack.c.b16 %v5208, %v5207
    %v5268 = vpack.c.b16 %v5210, %v5209
    %v5269 = vpack.c.b16 %v5212, %v5211
    %v5270 = vpack.c.b16 %v5214, %v5213
    %v5271 = vpack.c.b16 %v5216, %v5215
    %v5272 = vpack.c.b16 %v5218, %v5217
    %v5273 = vpack.c.b16 %v5220, %v5219
    %v5274 = vpack.c.b16 %v5222, %v5221
    %v5275 = vpack.c.b16 %v5224, %v5223
    %v5276 = vpack.c.b16 %v5226, %v5225
    %v5277 = vpack.c.b16 %v5228, %v5227
    %v5278 = vpack.c.b16 %v5230, %v5229
    %v5279 = vpack.c.b16 %v5232, %v5231
    %v5280 = vpack.c.b16 %v5234, %v5233
    %v5281 = vpack.c.b16 %v5236, %v5235
    %v5282 = vpack.c.b16 %v5238, %v5237
    %v5283 = vpack.c.b16 %v5240, %v5239
    %v5284 = vpack.c.b16 %v5242, %v5241
    %v5285 = vpack.c.b16 %v5244, %v5243
    %v5286 = vpack.c.b16 %v5246, %v5245
    %v5287 = vpack.c.b16 %v5248, %v5247
    %v5288 = vpack.c.b16 %v5250, %v5249
    %v5289 = vpack.c.b16 %v5252, %v5251
    %v5290 = vpack.c.b16 %v5254, %v5253
    %v5291 = vpack.c.b16 %v5256, %v5255
    %v5292 = vpack.c.b16 %v5258, %v5257
    %v5293 = vpack.c.b16 %v5260, %v5259
    %v5294 = vpack.c.b16 %v5262, %v5261
    %v5296 = vsel %vm982, %v5263, 0
    %v5299 = vsel %vm982, %v5264, 0
    %v5302 = vsel %vm982, %v5265, 0
    %v5305 = vsel %vm982, %v5266, 0
    %v5308 = vsel %vm982, %v5267, 0
    %v5311 = vsel %vm982, %v5268, 0
    %v5314 = vsel %vm982, %v5269, 0
    %v5317 = vsel %vm982, %v5270, 0
    %v5320 = vsel %vm982, %v5271, 0
    %v5323 = vsel %vm982, %v5272, 0
    %v5326 = vsel %vm982, %v5273, 0
    %v5329 = vsel %vm982, %v5274, 0
    %v5332 = vsel %vm982, %v5275, 0
    %v5335 = vsel %vm982, %v5276, 0
    %v5338 = vsel %vm982, %v5277, 0
    %v5341 = vsel %vm982, %v5278, 0
    %v5344 = vsel %vm982, %v5279, 0
    %v5347 = vsel %vm982, %v5280, 0
    %v5350 = vsel %vm982, %v5281, 0
    %v5353 = vsel %vm982, %v5282, 0
    %v5356 = vsel %vm982, %v5283, 0
    %v5359 = vsel %vm982, %v5284, 0
    %v5362 = vsel %vm982, %v5285, 0
    %v5365 = vsel %vm982, %v5286, 0
    %v5368 = vsel %vm982, %v5287, 0
    %v5371 = vsel %vm982, %v5288, 0
    %v5374 = vsel %vm982, %v5289, 0
    %v5377 = vsel %vm982, %v5290, 0
    %v5380 = vsel %vm982, %v5291, 0
    %v5383 = vsel %vm982, %v5292, 0
    %v5386 = vsel %vm982, %v5293, 0
    %v5389 = vsel %vm982, %v5294, 0
    %v5392 = vsel %vm1079, %v5134, 0
    %5394 = vmatpush.bf16.msra.mxu0 0
    %5395 = vmatpush.bf16.msra.mxu0 0
    %5396 = vmatpush.bf16.msra.mxu0 0
    %5397 = vmatpush.bf16.msra.mxu0 0
    %5398 = vmatpush.bf16.msra.mxu0 0
    %5399 = vmatpush.bf16.msra.mxu0 0
    %5400 = vmatpush.bf16.msra.mxu0 0
    %5401 = vmatpush.bf16.msra.mxu0 %v5392
    %5402 = vmatmul.bf16.gmra.mxu0 %v5296
    %v5403 = vpop.f32.mrf.mxu0
    %v5404 = vadd.f32 0.0, %v5403
    %v5405 = vpop.f32.mrf.mxu0
    %v5406 = vadd.f32 0.0, %v5405
    %5407 = vmatmul.bf16.gmra.mxu0 %v5299
    %v5408 = vpop.f32.mrf.mxu0
    %v5409 = vadd.f32 0.0, %v5408
    %v5410 = vpop.f32.mrf.mxu0
    %v5411 = vadd.f32 0.0, %v5410
    %5412 = vmatmul.bf16.gmra.mxu0 %v5302
    %v5413 = vpop.f32.mrf.mxu0
    %v5414 = vadd.f32 0.0, %v5413
    %v5415 = vpop.f32.mrf.mxu0
    %v5416 = vadd.f32 0.0, %v5415
    %5417 = vmatmul.bf16.gmra.mxu0 %v5305
    %v5418 = vpop.f32.mrf.mxu0
    %v5419 = vadd.f32 0.0, %v5418
    %v5420 = vpop.f32.mrf.mxu0
    %v5421 = vadd.f32 0.0, %v5420
    %5422 = vmatmul.bf16.gmra.mxu0 %v5308
    %v5423 = vpop.f32.mrf.mxu0
    %v5424 = vadd.f32 0.0, %v5423
    %v5425 = vpop.f32.mrf.mxu0
    %v5426 = vadd.f32 0.0, %v5425
    %5427 = vmatmul.bf16.gmra.mxu0 %v5311
    %v5428 = vpop.f32.mrf.mxu0
    %v5429 = vadd.f32 0.0, %v5428
    %v5430 = vpop.f32.mrf.mxu0
    %v5431 = vadd.f32 0.0, %v5430
    %5432 = vmatmul.bf16.gmra.mxu0 %v5314
    %v5433 = vpop.f32.mrf.mxu0
    %v5434 = vadd.f32 0.0, %v5433
    %v5435 = vpop.f32.mrf.mxu0
    %v5436 = vadd.f32 0.0, %v5435
    %5437 = vmatmul.bf16.gmra.mxu0 %v5317
    %v5438 = vpop.f32.mrf.mxu0
    %v5439 = vadd.f32 0.0, %v5438
    %v5440 = vpop.f32.mrf.mxu0
    %v5441 = vadd.f32 0.0, %v5440
    %5442 = vmatmul.bf16.gmra.mxu0 %v5320
    %v5443 = vpop.f32.mrf.mxu0
    %v5444 = vadd.f32 0.0, %v5443
    %v5445 = vpop.f32.mrf.mxu0
    %v5446 = vadd.f32 0.0, %v5445
    %5447 = vmatmul.bf16.gmra.mxu0 %v5323
    %v5448 = vpop.f32.mrf.mxu0
    %v5449 = vadd.f32 0.0, %v5448
    %v5450 = vpop.f32.mrf.mxu0
    %v5451 = vadd.f32 0.0, %v5450
    %5452 = vmatmul.bf16.gmra.mxu0 %v5326
    %v5453 = vpop.f32.mrf.mxu0
    %v5454 = vadd.f32 0.0, %v5453
    %v5455 = vpop.f32.mrf.mxu0
    %v5456 = vadd.f32 0.0, %v5455
    %5457 = vmatmul.bf16.gmra.mxu0 %v5329
    %v5458 = vpop.f32.mrf.mxu0
    %v5459 = vadd.f32 0.0, %v5458
    %v5460 = vpop.f32.mrf.mxu0
    %v5461 = vadd.f32 0.0, %v5460
    %5462 = vmatmul.bf16.gmra.mxu0 %v5332
    %v5463 = vpop.f32.mrf.mxu0
    %v5464 = vadd.f32 0.0, %v5463
    %v5465 = vpop.f32.mrf.mxu0
    %v5466 = vadd.f32 0.0, %v5465
    %5467 = vmatmul.bf16.gmra.mxu0 %v5335
    %v5468 = vpop.f32.mrf.mxu0
    %v5469 = vadd.f32 0.0, %v5468
    %v5470 = vpop.f32.mrf.mxu0
    %v5471 = vadd.f32 0.0, %v5470
    %5472 = vmatmul.bf16.gmra.mxu0 %v5338
    %v5473 = vpop.f32.mrf.mxu0
    %v5474 = vadd.f32 0.0, %v5473
    %v5475 = vpop.f32.mrf.mxu0
    %v5476 = vadd.f32 0.0, %v5475
    %5477 = vmatmul.bf16.gmra.mxu0 %v5341
    %v5478 = vpop.f32.mrf.mxu0
    %v5479 = vadd.f32 0.0, %v5478
    %v5480 = vpop.f32.mrf.mxu0
    %v5481 = vadd.f32 0.0, %v5480
    %5482 = vmatmul.bf16.gmra.mxu0 %v5344
    %v5483 = vpop.f32.mrf.mxu0
    %v5484 = vadd.f32 0.0, %v5483
    %v5485 = vpop.f32.mrf.mxu0
    %v5486 = vadd.f32 0.0, %v5485
    %5487 = vmatmul.bf16.gmra.mxu0 %v5347
    %v5488 = vpop.f32.mrf.mxu0
    %v5489 = vadd.f32 0.0, %v5488
    %v5490 = vpop.f32.mrf.mxu0
    %v5491 = vadd.f32 0.0, %v5490
    %5492 = vmatmul.bf16.gmra.mxu0 %v5350
    %v5493 = vpop.f32.mrf.mxu0
    %v5494 = vadd.f32 0.0, %v5493
    %v5495 = vpop.f32.mrf.mxu0
    %v5496 = vadd.f32 0.0, %v5495
    %5497 = vmatmul.bf16.gmra.mxu0 %v5353
    %v5498 = vpop.f32.mrf.mxu0
    %v5499 = vadd.f32 0.0, %v5498
    %v5500 = vpop.f32.mrf.mxu0
    %v5501 = vadd.f32 0.0, %v5500
    %5502 = vmatmul.bf16.gmra.mxu0 %v5356
    %v5503 = vpop.f32.mrf.mxu0
    %v5504 = vadd.f32 0.0, %v5503
    %v5505 = vpop.f32.mrf.mxu0
    %v5506 = vadd.f32 0.0, %v5505
    %5507 = vmatmul.bf16.gmra.mxu0 %v5359
    %v5508 = vpop.f32.mrf.mxu0
    %v5509 = vadd.f32 0.0, %v5508
    %v5510 = vpop.f32.mrf.mxu0
    %v5511 = vadd.f32 0.0, %v5510
    %5512 = vmatmul.bf16.gmra.mxu0 %v5362
    %v5513 = vpop.f32.mrf.mxu0
    %v5514 = vadd.f32 0.0, %v5513
    %v5515 = vpop.f32.mrf.mxu0
    %v5516 = vadd.f32 0.0, %v5515
    %5517 = vmatmul.bf16.gmra.mxu0 %v5365
    %v5518 = vpop.f32.mrf.mxu0
    %v5519 = vadd.f32 0.0, %v5518
    %v5520 = vpop.f32.mrf.mxu0
    %v5521 = vadd.f32 0.0, %v5520
    %5522 = vmatmul.bf16.gmra.mxu0 %v5368
    %v5523 = vpop.f32.mrf.mxu0
    %v5524 = vadd.f32 0.0, %v5523
    %v5525 = vpop.f32.mrf.mxu0
    %v5526 = vadd.f32 0.0, %v5525
    %5527 = vmatmul.bf16.gmra.mxu0 %v5371
    %v5528 = vpop.f32.mrf.mxu0
    %v5529 = vadd.f32 0.0, %v5528
    %v5530 = vpop.f32.mrf.mxu0
    %v5531 = vadd.f32 0.0, %v5530
    %5532 = vmatmul.bf16.gmra.mxu0 %v5374
    %v5533 = vpop.f32.mrf.mxu0
    %v5534 = vadd.f32 0.0, %v5533
    %v5535 = vpop.f32.mrf.mxu0
    %v5536 = vadd.f32 0.0, %v5535
    %5537 = vmatmul.bf16.gmra.mxu0 %v5377
    %v5538 = vpop.f32.mrf.mxu0
    %v5539 = vadd.f32 0.0, %v5538
    %v5540 = vpop.f32.mrf.mxu0
    %v5541 = vadd.f32 0.0, %v5540
    %5542 = vmatmul.bf16.gmra.mxu0 %v5380
    %v5543 = vpop.f32.mrf.mxu0
    %v5544 = vadd.f32 0.0, %v5543
    %v5545 = vpop.f32.mrf.mxu0
    %v5546 = vadd.f32 0.0, %v5545
    %5547 = vmatmul.bf16.gmra.mxu0 %v5383
    %v5548 = vpop.f32.mrf.mxu0
    %v5549 = vadd.f32 0.0, %v5548
    %v5550 = vpop.f32.mrf.mxu0
    %v5551 = vadd.f32 0.0, %v5550
    %5552 = vmatmul.bf16.gmra.mxu0 %v5386
    %v5553 = vpop.f32.mrf.mxu0
    %v5554 = vadd.f32 0.0, %v5553
    %v5555 = vpop.f32.mrf.mxu0
    %v5556 = vadd.f32 0.0, %v5555
    %5557 = vmatmul.bf16.gmra.mxu0 %v5389
    %v5558 = vpop.f32.mrf.mxu0
    %v5559 = vadd.f32 0.0, %v5558
    %v5560 = vpop.f32.mrf.mxu0
    %v5561 = vadd.f32 0.0, %v5560
    %5562 = vdwg.mxu0
    %v5563 = vadd.f32 %v5004, %v5404
    %v5564 = vadd.f32 %v5005, %v5406
    %v5565 = vadd.f32 %v5006, %v5409
    %v5566 = vadd.f32 %v5007, %v5411
    %v5567 = vadd.f32 %v5008, %v5414
    %v5568 = vadd.f32 %v5009, %v5416
    %v5569 = vadd.f32 %v5010, %v5419
    %v5570 = vadd.f32 %v5011, %v5421
    %v5571 = vadd.f32 %v5012, %v5424
    %v5572 = vadd.f32 %v5013, %v5426
    %v5573 = vadd.f32 %v5014, %v5429
    %v5574 = vadd.f32 %v5015, %v5431
    %v5575 = vadd.f32 %v5016, %v5434
    %v5576 = vadd.f32 %v5017, %v5436
    %v5577 = vadd.f32 %v5018, %v5439
    %v5578 = vadd.f32 %v5019, %v5441
    %v5579 = vadd.f32 %v5020, %v5444
    %v5580 = vadd.f32 %v5021, %v5446
    %v5581 = vadd.f32 %v5022, %v5449
    %v5582 = vadd.f32 %v5023, %v5451
    %v5583 = vadd.f32 %v5024, %v5454
    %v5584 = vadd.f32 %v5025, %v5456
    %v5585 = vadd.f32 %v5026, %v5459
    %v5586 = vadd.f32 %v5027, %v5461
    %v5587 = vadd.f32 %v5028, %v5464
    %v5588 = vadd.f32 %v5029, %v5466
    %v5589 = vadd.f32 %v5030, %v5469
    %v5590 = vadd.f32 %v5031, %v5471
    %v5591 = vadd.f32 %v5032, %v5474
    %v5592 = vadd.f32 %v5033, %v5476
    %v5593 = vadd.f32 %v5034, %v5479
    %v5594 = vadd.f32 %v5035, %v5481
    %v5595 = vadd.f32 %v5036, %v5484
    %v5596 = vadd.f32 %v5037, %v5486
    %v5597 = vadd.f32 %v5038, %v5489
    %v5598 = vadd.f32 %v5039, %v5491
    %v5599 = vadd.f32 %v5040, %v5494
    %v5600 = vadd.f32 %v5041, %v5496
    %v5601 = vadd.f32 %v5042, %v5499
    %v5602 = vadd.f32 %v5043, %v5501
    %v5603 = vadd.f32 %v5044, %v5504
    %v5604 = vadd.f32 %v5045, %v5506
    %v5605 = vadd.f32 %v5046, %v5509
    %v5606 = vadd.f32 %v5047, %v5511
    %v5607 = vadd.f32 %v5048, %v5514
    %v5608 = vadd.f32 %v5049, %v5516
    %v5609 = vadd.f32 %v5050, %v5519
    %v5610 = vadd.f32 %v5051, %v5521
    %v5611 = vadd.f32 %v5052, %v5524
    %v5612 = vadd.f32 %v5053, %v5526
    %v5613 = vadd.f32 %v5054, %v5529
    %v5614 = vadd.f32 %v5055, %v5531
    %v5615 = vadd.f32 %v5056, %v5534
    %v5616 = vadd.f32 %v5057, %v5536
    %v5617 = vadd.f32 %v5058, %v5539
    %v5618 = vadd.f32 %v5059, %v5541
    %v5619 = vadd.f32 %v5060, %v5544
    %v5620 = vadd.f32 %v5061, %v5546
    %v5621 = vadd.f32 %v5062, %v5549
    %v5622 = vadd.f32 %v5063, %v5551
    %v5623 = vadd.f32 %v5064, %v5554
    %v5624 = vadd.f32 %v5065, %v5556
    %v5625 = vadd.f32 %v5066, %v5559
    %v5626 = vadd.f32 %v5067, %v5561
    %v5627 = vld [vmem:[%s5068] sm:$0xf]
    %v5628 = vld [vmem:[%s5068 + $0x4] sm:$0xf]
    %v5629 = vld [vmem:[%s5068 + $0x8] sm:$0x1]
    %v5630 = vld [vmem:[%s5068 + $0xc] sm:$0xf]
    %v5631 = vld [vmem:[%s5068 + $0x10] sm:$0xf]
    %v5632 = vld [vmem:[%s5068 + $0x14] sm:$0x1]
    %v5633 = vld [vmem:[%s5068 + $0x18] sm:$0xf]
    %v5634 = vld [vmem:[%s5068 + $0x1c] sm:$0xf]
    %v5635 = vld [vmem:[%s5068 + $0x20] sm:$0x1]
    %v5636 = vld [vmem:[%s5068 + $0x24] sm:$0xf]
    %v5637 = vld [vmem:[%s5068 + $0x28] sm:$0xf]
    %v5638 = vld [vmem:[%s5068 + $0x2c] sm:$0x1]
    %v5639 = vld [vmem:[%s5068 + $0x30] sm:$0xf]
    %v5640 = vld [vmem:[%s5068 + $0x34] sm:$0xf]
    %v5641 = vld [vmem:[%s5068 + $0x38] sm:$0x1]
    %v5642 = vld [vmem:[%s5068 + $0x3c] sm:$0xf]
    %v5643 = vld [vmem:[%s5068 + $0x40] sm:$0xf]
    %v5644 = vld [vmem:[%s5068 + $0x44] sm:$0x1]
    %v5645 = vld [vmem:[%s5068 + $0x48] sm:$0xf]
    %v5646 = vld [vmem:[%s5068 + $0x4c] sm:$0xf]
    %v5647 = vld [vmem:[%s5068 + $0x50] sm:$0x1]
    %v5648 = vld [vmem:[%s5068 + $0x54] sm:$0xf]
    %v5649 = vld [vmem:[%s5068 + $0x58] sm:$0xf]
    %v5650 = vld [vmem:[%s5068 + $0x5c] sm:$0x1]
    %v5651 = vld [vmem:[%s5068 + $0x60] sm:$0xf]
    %v5652 = vld [vmem:[%s5068 + $0x64] sm:$0xf]
    %v5653 = vld [vmem:[%s5068 + $0x68] sm:$0x1]
    %v5654 = vld [vmem:[%s5068 + $0x6c] sm:$0xf]
    %v5655 = vld [vmem:[%s5068 + $0x70] sm:$0xf]
    %v5656 = vld [vmem:[%s5068 + $0x74] sm:$0x1]
    %v5657 = vld [vmem:[%s5068 + $0x78] sm:$0xf]
    %v5658 = vld [vmem:[%s5068 + $0x7c] sm:$0xf]
    %v5659 = vld [vmem:[%s5068 + $0x80] sm:$0x1]
    %v5660 = vld [vmem:[%s5068 + $0x84] sm:$0xf]
    %v5661 = vld [vmem:[%s5068 + $0x88] sm:$0xf]
    %v5662 = vld [vmem:[%s5068 + $0x8c] sm:$0x1]
    %v5663 = vld [vmem:[%s5068 + $0x90] sm:$0xf]
    %v5664 = vld [vmem:[%s5068 + $0x94] sm:$0xf]
    %v5665 = vld [vmem:[%s5068 + $0x98] sm:$0x1]
    %v5666 = vld [vmem:[%s5068 + $0x9c] sm:$0xf]
    %v5667 = vld [vmem:[%s5068 + $0xa0] sm:$0xf]
    %v5668 = vld [vmem:[%s5068 + $0xa4] sm:$0x1]
    %v5669 = vld [vmem:[%s5068 + $0xa8] sm:$0xf]
    %v5670 = vld [vmem:[%s5068 + $0xac] sm:$0xf]
    %v5671 = vld [vmem:[%s5068 + $0xb0] sm:$0x1]
    %v5672 = vld [vmem:[%s5068 + $0xb4] sm:$0xf]
    %v5673 = vld [vmem:[%s5068 + $0xb8] sm:$0xf]
    %v5674 = vld [vmem:[%s5068 + $0xbc] sm:$0x1]
    %v5675 = vld [vmem:[%s5068 + $0xd8] sm:$0xf]
    %v5676 = vld [vmem:[%s5068 + $0xdc] sm:$0xf]
    %v5677 = vld [vmem:[%s5068 + $0xe0] sm:$0x1]
    %v5678 = vld [vmem:[%s5068 + $0xe4] sm:$0xf]
    %v5679 = vld [vmem:[%s5068 + $0xe8] sm:$0xf]
    %v5680 = vld [vmem:[%s5068 + $0xec] sm:$0x1]
    %v5681 = vld [vmem:[%s5068 + $0xf0] sm:$0xf]
    %v5682 = vld [vmem:[%s5068 + $0xf4] sm:$0xf]
    %v5683 = vld [vmem:[%s5068 + $0xf8] sm:$0x1]
    %v5684 = vld [vmem:[%s5068 + $0xfc] sm:$0xf]
    %v5685 = vld [vmem:[%s5068 + $0x100] sm:$0xf]
    %v5686 = vld [vmem:[%s5068 + $0x104] sm:$0x1]
    %v5687 = vld [vmem:[%s5068 + $0x108] sm:$0xf]
    %v5688 = vld [vmem:[%s5068 + $0x10c] sm:$0xf]
    %v5689 = vld [vmem:[%s5068 + $0x110] sm:$0x1]
    %v5690 = vld [vmem:[%s5068 + $0x114] sm:$0xf]
    %v5691 = vld [vmem:[%s5068 + $0x118] sm:$0xf]
    %v5692 = vld [vmem:[%s5068 + $0x11c] sm:$0x1]
    %v5693 = vld [vmem:[%s5068 + $0x120] sm:$0xf]
    %v5694 = vld [vmem:[%s5068 + $0x124] sm:$0xf]
    %v5695 = vld [vmem:[%s5068 + $0x128] sm:$0x1]
    %v5696 = vld [vmem:[%s5068 + $0x12c] sm:$0xf]
    %v5697 = vld [vmem:[%s5068 + $0x130] sm:$0xf]
    %v5698 = vld [vmem:[%s5068 + $0x134] sm:$0x1]
    %v5699 = vld [vmem:[%s5068 + $0x138] sm:$0xf]
    %v5700 = vld [vmem:[%s5068 + $0x13c] sm:$0xf]
    %v5701 = vld [vmem:[%s5068 + $0x140] sm:$0x1]
    %v5702 = vld [vmem:[%s5068 + $0x144] sm:$0xf]
    %v5703 = vld [vmem:[%s5068 + $0x148] sm:$0xf]
    %v5704 = vld [vmem:[%s5068 + $0x14c] sm:$0x1]
    %v5705 = vld [vmem:[%s5068 + $0x150] sm:$0xf]
    %v5706 = vld [vmem:[%s5068 + $0x154] sm:$0xf]
    %v5707 = vld [vmem:[%s5068 + $0x158] sm:$0x1]
    %v5708 = vld [vmem:[%s5068 + $0x15c] sm:$0xf]
    %v5709 = vld [vmem:[%s5068 + $0x160] sm:$0xf]
    %v5710 = vld [vmem:[%s5068 + $0x164] sm:$0x1]
    %v5711 = vld [vmem:[%s5068 + $0x168] sm:$0xf]
    %v5712 = vld [vmem:[%s5068 + $0x16c] sm:$0xf]
    %v5713 = vld [vmem:[%s5068 + $0x170] sm:$0x1]
    %v5714 = vld [vmem:[%s5068 + $0x174] sm:$0xf]
    %v5715 = vld [vmem:[%s5068 + $0x178] sm:$0xf]
    %v5716 = vld [vmem:[%s5068 + $0x17c] sm:$0x1]
    %v5717 = vld [vmem:[%s5068 + $0x180] sm:$0xf]
    %v5718 = vld [vmem:[%s5068 + $0x184] sm:$0xf]
    %v5719 = vld [vmem:[%s5068 + $0x188] sm:$0x1]
    %v5720 = vld [vmem:[%s5068 + $0x18c] sm:$0xf]
    %v5721 = vld [vmem:[%s5068 + $0x190] sm:$0xf]
    %v5722 = vld [vmem:[%s5068 + $0x194] sm:$0x1]
    %v5724 = vshrl.u32 %v5627, 16
    %v5726 = vrot.slane %v5724, 4
    %v5727 = vshll.u32 %v5627, 16
    %v5729 = vrot.slane %v5727, 5
    %v5730 = vor.u32 %v5726, %v5729
    %v5731 = vrot.slane %v5730, 4
    %v5733 = vshll.u32 %v5628, 16
    %v5735 = vrot.slane %v5733, 5
    %v5736 = vsel %vm115, %v5731, %v5735
    %v5737 = vshrl.u32 %v5628, 16
    %v5739 = vrot.slane %v5737, 4
    %v5740 = vor.u32 %v5739, %v5735
    %v5741 = vrot.slane %v5740, 4
    %v5743 = vshll.u32 %v5629, 16
    %v5745 = vrot.slane %v5743, 5
    %v5746 = vsel %vm115, %v5741, %v5745
    %v5748 = vshrl.u32 %v5630, 16
    %v5750 = vrot.slane %v5748, 4
    %v5751 = vshll.u32 %v5630, 16
    %v5753 = vrot.slane %v5751, 5
    %v5754 = vor.u32 %v5750, %v5753
    %v5755 = vrot.slane %v5754, 4
    %v5757 = vshll.u32 %v5631, 16
    %v5759 = vrot.slane %v5757, 5
    %v5760 = vsel %vm115, %v5755, %v5759
    %v5761 = vshrl.u32 %v5631, 16
    %v5763 = vrot.slane %v5761, 4
    %v5764 = vor.u32 %v5763, %v5759
    %v5765 = vrot.slane %v5764, 4
    %v5767 = vshll.u32 %v5632, 16
    %v5769 = vrot.slane %v5767, 5
    %v5770 = vsel %vm115, %v5765, %v5769
    %v5772 = vshrl.u32 %v5633, 16
    %v5774 = vrot.slane %v5772, 4
    %v5775 = vshll.u32 %v5633, 16
    %v5777 = vrot.slane %v5775, 5
    %v5778 = vor.u32 %v5774, %v5777
    %v5779 = vrot.slane %v5778, 4
    %v5781 = vshll.u32 %v5634, 16
    %v5783 = vrot.slane %v5781, 5
    %v5784 = vsel %vm115, %v5779, %v5783
    %v5785 = vshrl.u32 %v5634, 16
    %v5787 = vrot.slane %v5785, 4
    %v5788 = vor.u32 %v5787, %v5783
    %v5789 = vrot.slane %v5788, 4
    %v5791 = vshll.u32 %v5635, 16
    %v5793 = vrot.slane %v5791, 5
    %v5794 = vsel %vm115, %v5789, %v5793
    %v5796 = vshrl.u32 %v5636, 16
    %v5798 = vrot.slane %v5796, 4
    %v5799 = vshll.u32 %v5636, 16
    %v5801 = vrot.slane %v5799, 5
    %v5802 = vor.u32 %v5798, %v5801
    %v5803 = vrot.slane %v5802, 4
    %v5805 = vshll.u32 %v5637, 16
    %v5807 = vrot.slane %v5805, 5
    %v5808 = vsel %vm115, %v5803, %v5807
    %v5809 = vshrl.u32 %v5637, 16
    %v5811 = vrot.slane %v5809, 4
    %v5812 = vor.u32 %v5811, %v5807
    %v5813 = vrot.slane %v5812, 4
    %v5815 = vshll.u32 %v5638, 16
    %v5817 = vrot.slane %v5815, 5
    %v5818 = vsel %vm115, %v5813, %v5817
    %v5820 = vshrl.u32 %v5639, 16
    %v5822 = vrot.slane %v5820, 4
    %v5823 = vshll.u32 %v5639, 16
    %v5825 = vrot.slane %v5823, 5
    %v5826 = vor.u32 %v5822, %v5825
    %v5827 = vrot.slane %v5826, 4
    %v5829 = vshll.u32 %v5640, 16
    %v5831 = vrot.slane %v5829, 5
    %v5832 = vsel %vm115, %v5827, %v5831
    %v5833 = vshrl.u32 %v5640, 16
    %v5835 = vrot.slane %v5833, 4
    %v5836 = vor.u32 %v5835, %v5831
    %v5837 = vrot.slane %v5836, 4
    %v5839 = vshll.u32 %v5641, 16
    %v5841 = vrot.slane %v5839, 5
    %v5842 = vsel %vm115, %v5837, %v5841
    %v5844 = vshrl.u32 %v5642, 16
    %v5846 = vrot.slane %v5844, 4
    %v5847 = vshll.u32 %v5642, 16
    %v5849 = vrot.slane %v5847, 5
    %v5850 = vor.u32 %v5846, %v5849
    %v5851 = vrot.slane %v5850, 4
    %v5853 = vshll.u32 %v5643, 16
    %v5855 = vrot.slane %v5853, 5
    %v5856 = vsel %vm115, %v5851, %v5855
    %v5857 = vshrl.u32 %v5643, 16
    %v5859 = vrot.slane %v5857, 4
    %v5860 = vor.u32 %v5859, %v5855
    %v5861 = vrot.slane %v5860, 4
    %v5863 = vshll.u32 %v5644, 16
    %v5865 = vrot.slane %v5863, 5
    %v5866 = vsel %vm115, %v5861, %v5865
    %v5868 = vshrl.u32 %v5645, 16
    %v5870 = vrot.slane %v5868, 4
    %v5871 = vshll.u32 %v5645, 16
    %v5873 = vrot.slane %v5871, 5
    %v5874 = vor.u32 %v5870, %v5873
    %v5875 = vrot.slane %v5874, 4
    %v5877 = vshll.u32 %v5646, 16
    %v5879 = vrot.slane %v5877, 5
    %v5880 = vsel %vm115, %v5875, %v5879
    %v5881 = vshrl.u32 %v5646, 16
    %v5883 = vrot.slane %v5881, 4
    %v5884 = vor.u32 %v5883, %v5879
    %v5885 = vrot.slane %v5884, 4
    %v5887 = vshll.u32 %v5647, 16
    %v5889 = vrot.slane %v5887, 5
    %v5890 = vsel %vm115, %v5885, %v5889
    %v5892 = vshrl.u32 %v5648, 16
    %v5894 = vrot.slane %v5892, 4
    %v5895 = vshll.u32 %v5648, 16
    %v5897 = vrot.slane %v5895, 5
    %v5898 = vor.u32 %v5894, %v5897
    %v5899 = vrot.slane %v5898, 4
    %v5901 = vshll.u32 %v5649, 16
    %v5903 = vrot.slane %v5901, 5
    %v5904 = vsel %vm115, %v5899, %v5903
    %v5905 = vshrl.u32 %v5649, 16
    %v5907 = vrot.slane %v5905, 4
    %v5908 = vor.u32 %v5907, %v5903
    %v5909 = vrot.slane %v5908, 4
    %v5911 = vshll.u32 %v5650, 16
    %v5913 = vrot.slane %v5911, 5
    %v5914 = vsel %vm115, %v5909, %v5913
    %v5916 = vshrl.u32 %v5651, 16
    %v5918 = vrot.slane %v5916, 4
    %v5919 = vshll.u32 %v5651, 16
    %v5921 = vrot.slane %v5919, 5
    %v5922 = vor.u32 %v5918, %v5921
    %v5923 = vrot.slane %v5922, 4
    %v5925 = vshll.u32 %v5652, 16
    %v5927 = vrot.slane %v5925, 5
    %v5928 = vsel %vm115, %v5923, %v5927
    %v5929 = vshrl.u32 %v5652, 16
    %v5931 = vrot.slane %v5929, 4
    %v5932 = vor.u32 %v5931, %v5927
    %v5933 = vrot.slane %v5932, 4
    %v5935 = vshll.u32 %v5653, 16
    %v5937 = vrot.slane %v5935, 5
    %v5938 = vsel %vm115, %v5933, %v5937
    %v5940 = vshrl.u32 %v5654, 16
    %v5942 = vrot.slane %v5940, 4
    %v5943 = vshll.u32 %v5654, 16
    %v5945 = vrot.slane %v5943, 5
    %v5946 = vor.u32 %v5942, %v5945
    %v5947 = vrot.slane %v5946, 4
    %v5949 = vshll.u32 %v5655, 16
    %v5951 = vrot.slane %v5949, 5
    %v5952 = vsel %vm115, %v5947, %v5951
    %v5953 = vshrl.u32 %v5655, 16
    %v5955 = vrot.slane %v5953, 4
    %v5956 = vor.u32 %v5955, %v5951
    %v5957 = vrot.slane %v5956, 4
    %v5959 = vshll.u32 %v5656, 16
    %v5961 = vrot.slane %v5959, 5
    %v5962 = vsel %vm115, %v5957, %v5961
    %v5964 = vshrl.u32 %v5657, 16
    %v5966 = vrot.slane %v5964, 4
    %v5967 = vshll.u32 %v5657, 16
    %v5969 = vrot.slane %v5967, 5
    %v5970 = vor.u32 %v5966, %v5969
    %v5971 = vrot.slane %v5970, 4
    %v5973 = vshll.u32 %v5658, 16
    %v5975 = vrot.slane %v5973, 5
    %v5976 = vsel %vm115, %v5971, %v5975
    %v5977 = vshrl.u32 %v5658, 16
    %v5979 = vrot.slane %v5977, 4
    %v5980 = vor.u32 %v5979, %v5975
    %v5981 = vrot.slane %v5980, 4
    %v5983 = vshll.u32 %v5659, 16
    %v5985 = vrot.slane %v5983, 5
    %v5986 = vsel %vm115, %v5981, %v5985
    %v5988 = vshrl.u32 %v5660, 16
    %v5990 = vrot.slane %v5988, 4
    %v5991 = vshll.u32 %v5660, 16
    %v5993 = vrot.slane %v5991, 5
    %v5994 = vor.u32 %v5990, %v5993
    %v5995 = vrot.slane %v5994, 4
    %v5997 = vshll.u32 %v5661, 16
    %v5999 = vrot.slane %v5997, 5
    %v6000 = vsel %vm115, %v5995, %v5999
    %v6001 = vshrl.u32 %v5661, 16
    %v6003 = vrot.slane %v6001, 4
    %v6004 = vor.u32 %v6003, %v5999
    %v6005 = vrot.slane %v6004, 4
    %v6007 = vshll.u32 %v5662, 16
    %v6009 = vrot.slane %v6007, 5
    %v6010 = vsel %vm115, %v6005, %v6009
    %v6012 = vshrl.u32 %v5663, 16
    %v6014 = vrot.slane %v6012, 4
    %v6015 = vshll.u32 %v5663, 16
    %v6017 = vrot.slane %v6015, 5
    %v6018 = vor.u32 %v6014, %v6017
    %v6019 = vrot.slane %v6018, 4
    %v6021 = vshll.u32 %v5664, 16
    %v6023 = vrot.slane %v6021, 5
    %v6024 = vsel %vm115, %v6019, %v6023
    %v6025 = vshrl.u32 %v5664, 16
    %v6027 = vrot.slane %v6025, 4
    %v6028 = vor.u32 %v6027, %v6023
    %v6029 = vrot.slane %v6028, 4
    %v6031 = vshll.u32 %v5665, 16
    %v6033 = vrot.slane %v6031, 5
    %v6034 = vsel %vm115, %v6029, %v6033
    %v6036 = vshrl.u32 %v5666, 16
    %v6038 = vrot.slane %v6036, 4
    %v6039 = vshll.u32 %v5666, 16
    %v6041 = vrot.slane %v6039, 5
    %v6042 = vor.u32 %v6038, %v6041
    %v6043 = vrot.slane %v6042, 4
    %v6045 = vshll.u32 %v5667, 16
    %v6047 = vrot.slane %v6045, 5
    %v6048 = vsel %vm115, %v6043, %v6047
    %v6049 = vshrl.u32 %v5667, 16
    %v6051 = vrot.slane %v6049, 4
    %v6052 = vor.u32 %v6051, %v6047
    %v6053 = vrot.slane %v6052, 4
    %v6055 = vshll.u32 %v5668, 16
    %v6057 = vrot.slane %v6055, 5
    %v6058 = vsel %vm115, %v6053, %v6057
    %v6060 = vshrl.u32 %v5669, 16
    %v6062 = vrot.slane %v6060, 4
    %v6063 = vshll.u32 %v5669, 16
    %v6065 = vrot.slane %v6063, 5
    %v6066 = vor.u32 %v6062, %v6065
    %v6067 = vrot.slane %v6066, 4
    %v6069 = vshll.u32 %v5670, 16
    %v6071 = vrot.slane %v6069, 5
    %v6072 = vsel %vm115, %v6067, %v6071
    %v6073 = vshrl.u32 %v5670, 16
    %v6075 = vrot.slane %v6073, 4
    %v6076 = vor.u32 %v6075, %v6071
    %v6077 = vrot.slane %v6076, 4
    %v6079 = vshll.u32 %v5671, 16
    %v6081 = vrot.slane %v6079, 5
    %v6082 = vsel %vm115, %v6077, %v6081
    %v6084 = vshrl.u32 %v5672, 16
    %v6086 = vrot.slane %v6084, 4
    %v6087 = vshll.u32 %v5672, 16
    %v6089 = vrot.slane %v6087, 5
    %v6090 = vor.u32 %v6086, %v6089
    %v6091 = vrot.slane %v6090, 4
    %v6093 = vshll.u32 %v5673, 16
    %v6095 = vrot.slane %v6093, 5
    %v6096 = vsel %vm115, %v6091, %v6095
    %v6097 = vshrl.u32 %v5673, 16
    %v6099 = vrot.slane %v6097, 4
    %v6100 = vor.u32 %v6099, %v6095
    %v6101 = vrot.slane %v6100, 4
    %v6103 = vshll.u32 %v5674, 16
    %v6105 = vrot.slane %v6103, 5
    %v6106 = vsel %vm115, %v6101, %v6105
    %v6108 = vshrl.u32 %v5675, 16
    %v6110 = vrot.slane %v6108, 4
    %v6111 = vshll.u32 %v5675, 16
    %v6113 = vrot.slane %v6111, 5
    %v6114 = vor.u32 %v6110, %v6113
    %v6115 = vrot.slane %v6114, 4
    %v6117 = vshll.u32 %v5676, 16
    %v6119 = vrot.slane %v6117, 5
    %v6120 = vsel %vm115, %v6115, %v6119
    %v6121 = vshrl.u32 %v5676, 16
    %v6123 = vrot.slane %v6121, 4
    %v6124 = vor.u32 %v6123, %v6119
    %v6125 = vrot.slane %v6124, 4
    %v6127 = vshll.u32 %v5677, 16
    %v6129 = vrot.slane %v6127, 5
    %v6130 = vsel %vm115, %v6125, %v6129
    %v6132 = vshrl.u32 %v5678, 16
    %v6134 = vrot.slane %v6132, 4
    %v6135 = vshll.u32 %v5678, 16
    %v6137 = vrot.slane %v6135, 5
    %v6138 = vor.u32 %v6134, %v6137
    %v6139 = vrot.slane %v6138, 4
    %v6141 = vshll.u32 %v5679, 16
    %v6143 = vrot.slane %v6141, 5
    %v6144 = vsel %vm115, %v6139, %v6143
    %v6145 = vshrl.u32 %v5679, 16
    %v6147 = vrot.slane %v6145, 4
    %v6148 = vor.u32 %v6147, %v6143
    %v6149 = vrot.slane %v6148, 4
    %v6151 = vshll.u32 %v5680, 16
    %v6153 = vrot.slane %v6151, 5
    %v6154 = vsel %vm115, %v6149, %v6153
    %v6156 = vshrl.u32 %v5681, 16
    %v6158 = vrot.slane %v6156, 4
    %v6159 = vshll.u32 %v5681, 16
    %v6161 = vrot.slane %v6159, 5
    %v6162 = vor.u32 %v6158, %v6161
    %v6163 = vrot.slane %v6162, 4
    %v6165 = vshll.u32 %v5682, 16
    %v6167 = vrot.slane %v6165, 5
    %v6168 = vsel %vm115, %v6163, %v6167
    %v6169 = vshrl.u32 %v5682, 16
    %v6171 = vrot.slane %v6169, 4
    %v6172 = vor.u32 %v6171, %v6167
    %v6173 = vrot.slane %v6172, 4
    %v6175 = vshll.u32 %v5683, 16
    %v6177 = vrot.slane %v6175, 5
    %v6178 = vsel %vm115, %v6173, %v6177
    %v6180 = vshrl.u32 %v5684, 16
    %v6182 = vrot.slane %v6180, 4
    %v6183 = vshll.u32 %v5684, 16
    %v6185 = vrot.slane %v6183, 5
    %v6186 = vor.u32 %v6182, %v6185
    %v6187 = vrot.slane %v6186, 4
    %v6189 = vshll.u32 %v5685, 16
    %v6191 = vrot.slane %v6189, 5
    %v6192 = vsel %vm115, %v6187, %v6191
    %v6193 = vshrl.u32 %v5685, 16
    %v6195 = vrot.slane %v6193, 4
    %v6196 = vor.u32 %v6195, %v6191
    %v6197 = vrot.slane %v6196, 4
    %v6199 = vshll.u32 %v5686, 16
    %v6201 = vrot.slane %v6199, 5
    %v6202 = vsel %vm115, %v6197, %v6201
    %v6204 = vshrl.u32 %v5687, 16
    %v6206 = vrot.slane %v6204, 4
    %v6207 = vshll.u32 %v5687, 16
    %v6209 = vrot.slane %v6207, 5
    %v6210 = vor.u32 %v6206, %v6209
    %v6211 = vrot.slane %v6210, 4
    %v6213 = vshll.u32 %v5688, 16
    %v6215 = vrot.slane %v6213, 5
    %v6216 = vsel %vm115, %v6211, %v6215
    %v6217 = vshrl.u32 %v5688, 16
    %v6219 = vrot.slane %v6217, 4
    %v6220 = vor.u32 %v6219, %v6215
    %v6221 = vrot.slane %v6220, 4
    %v6223 = vshll.u32 %v5689, 16
    %v6225 = vrot.slane %v6223, 5
    %v6226 = vsel %vm115, %v6221, %v6225
    %v6228 = vshrl.u32 %v5690, 16
    %v6230 = vrot.slane %v6228, 4
    %v6231 = vshll.u32 %v5690, 16
    %v6233 = vrot.slane %v6231, 5
    %v6234 = vor.u32 %v6230, %v6233
    %v6235 = vrot.slane %v6234, 4
    %v6237 = vshll.u32 %v5691, 16
    %v6239 = vrot.slane %v6237, 5
    %v6240 = vsel %vm115, %v6235, %v6239
    %v6241 = vshrl.u32 %v5691, 16
    %v6243 = vrot.slane %v6241, 4
    %v6244 = vor.u32 %v6243, %v6239
    %v6245 = vrot.slane %v6244, 4
    %v6247 = vshll.u32 %v5692, 16
    %v6249 = vrot.slane %v6247, 5
    %v6250 = vsel %vm115, %v6245, %v6249
    %v6252 = vshrl.u32 %v5693, 16
    %v6254 = vrot.slane %v6252, 4
    %v6255 = vshll.u32 %v5693, 16
    %v6257 = vrot.slane %v6255, 5
    %v6258 = vor.u32 %v6254, %v6257
    %v6259 = vrot.slane %v6258, 4
    %v6261 = vshll.u32 %v5694, 16
    %v6263 = vrot.slane %v6261, 5
    %v6264 = vsel %vm115, %v6259, %v6263
    %v6265 = vshrl.u32 %v5694, 16
    %v6267 = vrot.slane %v6265, 4
    %v6268 = vor.u32 %v6267, %v6263
    %v6269 = vrot.slane %v6268, 4
    %v6271 = vshll.u32 %v5695, 16
    %v6273 = vrot.slane %v6271, 5
    %v6274 = vsel %vm115, %v6269, %v6273
    %v6276 = vshrl.u32 %v5696, 16
    %v6278 = vrot.slane %v6276, 4
    %v6279 = vshll.u32 %v5696, 16
    %v6281 = vrot.slane %v6279, 5
    %v6282 = vor.u32 %v6278, %v6281
    %v6283 = vrot.slane %v6282, 4
    %v6285 = vshll.u32 %v5697, 16
    %v6287 = vrot.slane %v6285, 5
    %v6288 = vsel %vm115, %v6283, %v6287
    %v6289 = vshrl.u32 %v5697, 16
    %v6291 = vrot.slane %v6289, 4
    %v6292 = vor.u32 %v6291, %v6287
    %v6293 = vrot.slane %v6292, 4
    %v6295 = vshll.u32 %v5698, 16
    %v6297 = vrot.slane %v6295, 5
    %v6298 = vsel %vm115, %v6293, %v6297
    %v6300 = vshrl.u32 %v5699, 16
    %v6302 = vrot.slane %v6300, 4
    %v6303 = vshll.u32 %v5699, 16
    %v6305 = vrot.slane %v6303, 5
    %v6306 = vor.u32 %v6302, %v6305
    %v6307 = vrot.slane %v6306, 4
    %v6309 = vshll.u32 %v5700, 16
    %v6311 = vrot.slane %v6309, 5
    %v6312 = vsel %vm115, %v6307, %v6311
    %v6313 = vshrl.u32 %v5700, 16
    %v6315 = vrot.slane %v6313, 4
    %v6316 = vor.u32 %v6315, %v6311
    %v6317 = vrot.slane %v6316, 4
    %v6319 = vshll.u32 %v5701, 16
    %v6321 = vrot.slane %v6319, 5
    %v6322 = vsel %vm115, %v6317, %v6321
    %v6324 = vshrl.u32 %v5702, 16
    %v6326 = vrot.slane %v6324, 4
    %v6327 = vshll.u32 %v5702, 16
    %v6329 = vrot.slane %v6327, 5
    %v6330 = vor.u32 %v6326, %v6329
    %v6331 = vrot.slane %v6330, 4
    %v6333 = vshll.u32 %v5703, 16
    %v6335 = vrot.slane %v6333, 5
    %v6336 = vsel %vm115, %v6331, %v6335
    %v6337 = vshrl.u32 %v5703, 16
    %v6339 = vrot.slane %v6337, 4
    %v6340 = vor.u32 %v6339, %v6335
    %v6341 = vrot.slane %v6340, 4
    %v6343 = vshll.u32 %v5704, 16
    %v6345 = vrot.slane %v6343, 5
    %v6346 = vsel %vm115, %v6341, %v6345
    %v6348 = vshrl.u32 %v5705, 16
    %v6350 = vrot.slane %v6348, 4
    %v6351 = vshll.u32 %v5705, 16
    %v6353 = vrot.slane %v6351, 5
    %v6354 = vor.u32 %v6350, %v6353
    %v6355 = vrot.slane %v6354, 4
    %v6357 = vshll.u32 %v5706, 16
    %v6359 = vrot.slane %v6357, 5
    %v6360 = vsel %vm115, %v6355, %v6359
    %v6361 = vshrl.u32 %v5706, 16
    %v6363 = vrot.slane %v6361, 4
    %v6364 = vor.u32 %v6363, %v6359
    %v6365 = vrot.slane %v6364, 4
    %v6367 = vshll.u32 %v5707, 16
    %v6369 = vrot.slane %v6367, 5
    %v6370 = vsel %vm115, %v6365, %v6369
    %v6372 = vshrl.u32 %v5708, 16
    %v6374 = vrot.slane %v6372, 4
    %v6375 = vshll.u32 %v5708, 16
    %v6377 = vrot.slane %v6375, 5
    %v6378 = vor.u32 %v6374, %v6377
    %v6379 = vrot.slane %v6378, 4
    %v6381 = vshll.u32 %v5709, 16
    %v6383 = vrot.slane %v6381, 5
    %v6384 = vsel %vm115, %v6379, %v6383
    %v6385 = vshrl.u32 %v5709, 16
    %v6387 = vrot.slane %v6385, 4
    %v6388 = vor.u32 %v6387, %v6383
    %v6389 = vrot.slane %v6388, 4
    %v6391 = vshll.u32 %v5710, 16
    %v6393 = vrot.slane %v6391, 5
    %v6394 = vsel %vm115, %v6389, %v6393
    %v6396 = vshrl.u32 %v5711, 16
    %v6398 = vrot.slane %v6396, 4
    %v6399 = vshll.u32 %v5711, 16
    %v6401 = vrot.slane %v6399, 5
    %v6402 = vor.u32 %v6398, %v6401
    %v6403 = vrot.slane %v6402, 4
    %v6405 = vshll.u32 %v5712, 16
    %v6407 = vrot.slane %v6405, 5
    %v6408 = vsel %vm115, %v6403, %v6407
    %v6409 = vshrl.u32 %v5712, 16
    %v6411 = vrot.slane %v6409, 4
    %v6412 = vor.u32 %v6411, %v6407
    %v6413 = vrot.slane %v6412, 4
    %v6415 = vshll.u32 %v5713, 16
    %v6417 = vrot.slane %v6415, 5
    %v6418 = vsel %vm115, %v6413, %v6417
    %v6420 = vshrl.u32 %v5714, 16
    %v6422 = vrot.slane %v6420, 4
    %v6423 = vshll.u32 %v5714, 16
    %v6425 = vrot.slane %v6423, 5
    %v6426 = vor.u32 %v6422, %v6425
    %v6427 = vrot.slane %v6426, 4
    %v6429 = vshll.u32 %v5715, 16
    %v6431 = vrot.slane %v6429, 5
    %v6432 = vsel %vm115, %v6427, %v6431
    %v6433 = vshrl.u32 %v5715, 16
    %v6435 = vrot.slane %v6433, 4
    %v6436 = vor.u32 %v6435, %v6431
    %v6437 = vrot.slane %v6436, 4
    %v6439 = vshll.u32 %v5716, 16
    %v6441 = vrot.slane %v6439, 5
    %v6442 = vsel %vm115, %v6437, %v6441
    %v6444 = vshrl.u32 %v5717, 16
    %v6446 = vrot.slane %v6444, 4
    %v6447 = vshll.u32 %v5717, 16
    %v6449 = vrot.slane %v6447, 5
    %v6450 = vor.u32 %v6446, %v6449
    %v6451 = vrot.slane %v6450, 4
    %v6453 = vshll.u32 %v5718, 16
    %v6455 = vrot.slane %v6453, 5
    %v6456 = vsel %vm115, %v6451, %v6455
    %v6457 = vshrl.u32 %v5718, 16
    %v6459 = vrot.slane %v6457, 4
    %v6460 = vor.u32 %v6459, %v6455
    %v6461 = vrot.slane %v6460, 4
    %v6463 = vshll.u32 %v5719, 16
    %v6465 = vrot.slane %v6463, 5
    %v6466 = vsel %vm115, %v6461, %v6465
    %v6468 = vshrl.u32 %v5720, 16
    %v6470 = vrot.slane %v6468, 4
    %v6471 = vshll.u32 %v5720, 16
    %v6473 = vrot.slane %v6471, 5
    %v6474 = vor.u32 %v6470, %v6473
    %v6475 = vrot.slane %v6474, 4
    %v6477 = vshll.u32 %v5721, 16
    %v6479 = vrot.slane %v6477, 5
    %v6480 = vsel %vm115, %v6475, %v6479
    %v6481 = vshrl.u32 %v5721, 16
    %v6483 = vrot.slane %v6481, 4
    %v6484 = vor.u32 %v6483, %v6479
    %v6485 = vrot.slane %v6484, 4
    %v6487 = vshll.u32 %v5722, 16
    %v6489 = vrot.slane %v6487, 5
    %v6490 = vsel %vm115, %v6485, %v6489
    %s6491 = scalar_lea.vmem %s1, 14
    %v6492 = vld [vmem:[%s6491] sm:$0x3]
    %v6493 = vunpack.c.l.b16 %v5736
    %v6494 = vunpack.c.l.b16 %v5746
    %v6495 = vunpack.c.l.b16 %v5760
    %v6496 = vunpack.c.l.b16 %v5770
    %v6497 = vunpack.c.l.b16 %v5784
    %v6498 = vunpack.c.l.b16 %v5794
    %v6499 = vunpack.c.l.b16 %v5808
    %v6500 = vunpack.c.l.b16 %v5818
    %v6501 = vunpack.c.l.b16 %v5832
    %v6502 = vunpack.c.l.b16 %v5842
    %v6503 = vunpack.c.l.b16 %v5856
    %v6504 = vunpack.c.l.b16 %v5866
    %v6505 = vunpack.c.l.b16 %v5880
    %v6506 = vunpack.c.l.b16 %v5890
    %v6507 = vunpack.c.l.b16 %v5904
    %v6508 = vunpack.c.l.b16 %v5914
    %v6509 = vunpack.c.l.b16 %v5928
    %v6510 = vunpack.c.l.b16 %v5938
    %v6511 = vunpack.c.l.b16 %v5952
    %v6512 = vunpack.c.l.b16 %v5962
    %v6513 = vunpack.c.l.b16 %v5976
    %v6514 = vunpack.c.l.b16 %v5986
    %v6515 = vunpack.c.l.b16 %v6000
    %v6516 = vunpack.c.l.b16 %v6010
    %v6517 = vunpack.c.l.b16 %v6024
    %v6518 = vunpack.c.l.b16 %v6034
    %v6519 = vunpack.c.l.b16 %v6048
    %v6520 = vunpack.c.l.b16 %v6058
    %v6521 = vunpack.c.l.b16 %v6072
    %v6522 = vunpack.c.l.b16 %v6082
    %v6523 = vunpack.c.l.b16 %v6096
    %v6524 = vunpack.c.l.b16 %v6106
    %v6525 = vunpack.c.l.b16 %v6120
    %v6526 = vunpack.c.l.b16 %v6130
    %v6527 = vunpack.c.l.b16 %v6144
    %v6528 = vunpack.c.l.b16 %v6154
    %v6529 = vunpack.c.l.b16 %v6168
    %v6530 = vunpack.c.l.b16 %v6178
    %v6531 = vunpack.c.l.b16 %v6192
    %v6532 = vunpack.c.l.b16 %v6202
    %v6533 = vunpack.c.l.b16 %v6216
    %v6534 = vunpack.c.l.b16 %v6226
    %v6535 = vunpack.c.l.b16 %v6240
    %v6536 = vunpack.c.l.b16 %v6250
    %v6537 = vunpack.c.l.b16 %v6264
    %v6538 = vunpack.c.l.b16 %v6274
    %v6539 = vunpack.c.l.b16 %v6288
    %v6540 = vunpack.c.l.b16 %v6298
    %v6541 = vunpack.c.l.b16 %v6312
    %v6542 = vunpack.c.l.b16 %v6322
    %v6543 = vunpack.c.l.b16 %v6336
    %v6544 = vunpack.c.l.b16 %v6346
    %v6545 = vunpack.c.l.b16 %v6360
    %v6546 = vunpack.c.l.b16 %v6370
    %v6547 = vunpack.c.l.b16 %v6384
    %v6548 = vunpack.c.l.b16 %v6394
    %v6549 = vunpack.c.l.b16 %v6408
    %v6550 = vunpack.c.l.b16 %v6418
    %v6551 = vunpack.c.l.b16 %v6432
    %v6552 = vunpack.c.l.b16 %v6442
    %v6553 = vunpack.c.l.b16 %v6456
    %v6554 = vunpack.c.l.b16 %v6466
    %v6555 = vunpack.c.l.b16 %v6480
    %v6556 = vunpack.c.l.b16 %v6490
    %v6557 = vpack.c.b16 %v6494, %v6493
    %v6558 = vpack.c.b16 %v6496, %v6495
    %v6559 = vpack.c.b16 %v6498, %v6497
    %v6560 = vpack.c.b16 %v6500, %v6499
    %v6561 = vpack.c.b16 %v6502, %v6501
    %v6562 = vpack.c.b16 %v6504, %v6503
    %v6563 = vpack.c.b16 %v6506, %v6505
    %v6564 = vpack.c.b16 %v6508, %v6507
    %v6565 = vpack.c.b16 %v6510, %v6509
    %v6566 = vpack.c.b16 %v6512, %v6511
    %v6567 = vpack.c.b16 %v6514, %v6513
    %v6568 = vpack.c.b16 %v6516, %v6515
    %v6569 = vpack.c.b16 %v6518, %v6517
    %v6570 = vpack.c.b16 %v6520, %v6519
    %v6571 = vpack.c.b16 %v6522, %v6521
    %v6572 = vpack.c.b16 %v6524, %v6523
    %v6573 = vpack.c.b16 %v6526, %v6525
    %v6574 = vpack.c.b16 %v6528, %v6527
    %v6575 = vpack.c.b16 %v6530, %v6529
    %v6576 = vpack.c.b16 %v6532, %v6531
    %v6577 = vpack.c.b16 %v6534, %v6533
    %v6578 = vpack.c.b16 %v6536, %v6535
    %v6579 = vpack.c.b16 %v6538, %v6537
    %v6580 = vpack.c.b16 %v6540, %v6539
    %v6581 = vpack.c.b16 %v6542, %v6541
    %v6582 = vpack.c.b16 %v6544, %v6543
    %v6583 = vpack.c.b16 %v6546, %v6545
    %v6584 = vpack.c.b16 %v6548, %v6547
    %v6585 = vpack.c.b16 %v6550, %v6549
    %v6586 = vpack.c.b16 %v6552, %v6551
    %v6587 = vpack.c.b16 %v6554, %v6553
    %v6588 = vpack.c.b16 %v6556, %v6555
    %v6590 = vsel %vm982, %v6557, 0
    %v6593 = vsel %vm982, %v6558, 0
    %v6596 = vsel %vm982, %v6559, 0
    %v6599 = vsel %vm982, %v6560, 0
    %v6602 = vsel %vm982, %v6561, 0
    %v6605 = vsel %vm982, %v6562, 0
    %v6608 = vsel %vm982, %v6563, 0
    %v6611 = vsel %vm982, %v6564, 0
    %v6614 = vsel %vm982, %v6565, 0
    %v6617 = vsel %vm982, %v6566, 0
    %v6620 = vsel %vm982, %v6567, 0
    %v6623 = vsel %vm982, %v6568, 0
    %v6626 = vsel %vm982, %v6569, 0
    %v6629 = vsel %vm982, %v6570, 0
    %v6632 = vsel %vm982, %v6571, 0
    %v6635 = vsel %vm982, %v6572, 0
    %v6638 = vsel %vm982, %v6573, 0
    %v6641 = vsel %vm982, %v6574, 0
    %v6644 = vsel %vm982, %v6575, 0
    %v6647 = vsel %vm982, %v6576, 0
    %v6650 = vsel %vm982, %v6577, 0
    %v6653 = vsel %vm982, %v6578, 0
    %v6656 = vsel %vm982, %v6579, 0
    %v6659 = vsel %vm982, %v6580, 0
    %v6662 = vsel %vm982, %v6581, 0
    %v6665 = vsel %vm982, %v6582, 0
    %v6668 = vsel %vm982, %v6583, 0
    %v6671 = vsel %vm982, %v6584, 0
    %v6674 = vsel %vm982, %v6585, 0
    %v6677 = vsel %vm982, %v6586, 0
    %v6680 = vsel %vm982, %v6587, 0
    %v6683 = vsel %vm982, %v6588, 0
    %v6686 = vsel %vm1079, %v6492, 0
    %6688 = vmatpush.bf16.msra.mxu0 0
    %6689 = vmatpush.bf16.msra.mxu0 0
    %6690 = vmatpush.bf16.msra.mxu0 0
    %6691 = vmatpush.bf16.msra.mxu0 0
    %6692 = vmatpush.bf16.msra.mxu0 0
    %6693 = vmatpush.bf16.msra.mxu0 0
    %6694 = vmatpush.bf16.msra.mxu0 0
    %6695 = vmatpush.bf16.msra.mxu0 %v6686
    %6696 = vmatmul.bf16.gmra.mxu0 %v6590
    %v6697 = vpop.f32.mrf.mxu0
    %v6698 = vadd.f32 0.0, %v6697
    %v6699 = vpop.f32.mrf.mxu0
    %v6700 = vadd.f32 0.0, %v6699
    %6701 = vmatmul.bf16.gmra.mxu0 %v6593
    %v6702 = vpop.f32.mrf.mxu0
    %v6703 = vadd.f32 0.0, %v6702
    %v6704 = vpop.f32.mrf.mxu0
    %v6705 = vadd.f32 0.0, %v6704
    %6706 = vmatmul.bf16.gmra.mxu0 %v6596
    %v6707 = vpop.f32.mrf.mxu0
    %v6708 = vadd.f32 0.0, %v6707
    %v6709 = vpop.f32.mrf.mxu0
    %v6710 = vadd.f32 0.0, %v6709
    %6711 = vmatmul.bf16.gmra.mxu0 %v6599
    %v6712 = vpop.f32.mrf.mxu0
    %v6713 = vadd.f32 0.0, %v6712
    %v6714 = vpop.f32.mrf.mxu0
    %v6715 = vadd.f32 0.0, %v6714
    %6716 = vmatmul.bf16.gmra.mxu0 %v6602
    %v6717 = vpop.f32.mrf.mxu0
    %v6718 = vadd.f32 0.0, %v6717
    %v6719 = vpop.f32.mrf.mxu0
    %v6720 = vadd.f32 0.0, %v6719
    %6721 = vmatmul.bf16.gmra.mxu0 %v6605
    %v6722 = vpop.f32.mrf.mxu0
    %v6723 = vadd.f32 0.0, %v6722
    %v6724 = vpop.f32.mrf.mxu0
    %v6725 = vadd.f32 0.0, %v6724
    %6726 = vmatmul.bf16.gmra.mxu0 %v6608
    %v6727 = vpop.f32.mrf.mxu0
    %v6728 = vadd.f32 0.0, %v6727
    %v6729 = vpop.f32.mrf.mxu0
    %v6730 = vadd.f32 0.0, %v6729
    %6731 = vmatmul.bf16.gmra.mxu0 %v6611
    %v6732 = vpop.f32.mrf.mxu0
    %v6733 = vadd.f32 0.0, %v6732
    %v6734 = vpop.f32.mrf.mxu0
    %v6735 = vadd.f32 0.0, %v6734
    %6736 = vmatmul.bf16.gmra.mxu0 %v6614
    %v6737 = vpop.f32.mrf.mxu0
    %v6738 = vadd.f32 0.0, %v6737
    %v6739 = vpop.f32.mrf.mxu0
    %v6740 = vadd.f32 0.0, %v6739
    %6741 = vmatmul.bf16.gmra.mxu0 %v6617
    %v6742 = vpop.f32.mrf.mxu0
    %v6743 = vadd.f32 0.0, %v6742
    %v6744 = vpop.f32.mrf.mxu0
    %v6745 = vadd.f32 0.0, %v6744
    %6746 = vmatmul.bf16.gmra.mxu0 %v6620
    %v6747 = vpop.f32.mrf.mxu0
    %v6748 = vadd.f32 0.0, %v6747
    %v6749 = vpop.f32.mrf.mxu0
    %v6750 = vadd.f32 0.0, %v6749
    %6751 = vmatmul.bf16.gmra.mxu0 %v6623
    %v6752 = vpop.f32.mrf.mxu0
    %v6753 = vadd.f32 0.0, %v6752
    %v6754 = vpop.f32.mrf.mxu0
    %v6755 = vadd.f32 0.0, %v6754
    %6756 = vmatmul.bf16.gmra.mxu0 %v6626
    %v6757 = vpop.f32.mrf.mxu0
    %v6758 = vadd.f32 0.0, %v6757
    %v6759 = vpop.f32.mrf.mxu0
    %v6760 = vadd.f32 0.0, %v6759
    %6761 = vmatmul.bf16.gmra.mxu0 %v6629
    %v6762 = vpop.f32.mrf.mxu0
    %v6763 = vadd.f32 0.0, %v6762
    %v6764 = vpop.f32.mrf.mxu0
    %v6765 = vadd.f32 0.0, %v6764
    %6766 = vmatmul.bf16.gmra.mxu0 %v6632
    %v6767 = vpop.f32.mrf.mxu0
    %v6768 = vadd.f32 0.0, %v6767
    %v6769 = vpop.f32.mrf.mxu0
    %v6770 = vadd.f32 0.0, %v6769
    %6771 = vmatmul.bf16.gmra.mxu0 %v6635
    %v6772 = vpop.f32.mrf.mxu0
    %v6773 = vadd.f32 0.0, %v6772
    %v6774 = vpop.f32.mrf.mxu0
    %v6775 = vadd.f32 0.0, %v6774
    %6776 = vmatmul.bf16.gmra.mxu0 %v6638
    %v6777 = vpop.f32.mrf.mxu0
    %v6778 = vadd.f32 0.0, %v6777
    %v6779 = vpop.f32.mrf.mxu0
    %v6780 = vadd.f32 0.0, %v6779
    %6781 = vmatmul.bf16.gmra.mxu0 %v6641
    %v6782 = vpop.f32.mrf.mxu0
    %v6783 = vadd.f32 0.0, %v6782
    %v6784 = vpop.f32.mrf.mxu0
    %v6785 = vadd.f32 0.0, %v6784
    %6786 = vmatmul.bf16.gmra.mxu0 %v6644
    %v6787 = vpop.f32.mrf.mxu0
    %v6788 = vadd.f32 0.0, %v6787
    %v6789 = vpop.f32.mrf.mxu0
    %v6790 = vadd.f32 0.0, %v6789
    %6791 = vmatmul.bf16.gmra.mxu0 %v6647
    %v6792 = vpop.f32.mrf.mxu0
    %v6793 = vadd.f32 0.0, %v6792
    %v6794 = vpop.f32.mrf.mxu0
    %v6795 = vadd.f32 0.0, %v6794
    %6796 = vmatmul.bf16.gmra.mxu0 %v6650
    %v6797 = vpop.f32.mrf.mxu0
    %v6798 = vadd.f32 0.0, %v6797
    %v6799 = vpop.f32.mrf.mxu0
    %v6800 = vadd.f32 0.0, %v6799
    %6801 = vmatmul.bf16.gmra.mxu0 %v6653
    %v6802 = vpop.f32.mrf.mxu0
    %v6803 = vadd.f32 0.0, %v6802
    %v6804 = vpop.f32.mrf.mxu0
    %v6805 = vadd.f32 0.0, %v6804
    %6806 = vmatmul.bf16.gmra.mxu0 %v6656
    %v6807 = vpop.f32.mrf.mxu0
    %v6808 = vadd.f32 0.0, %v6807
    %v6809 = vpop.f32.mrf.mxu0
    %v6810 = vadd.f32 0.0, %v6809
    %6811 = vmatmul.bf16.gmra.mxu0 %v6659
    %v6812 = vpop.f32.mrf.mxu0
    %v6813 = vadd.f32 0.0, %v6812
    %v6814 = vpop.f32.mrf.mxu0
    %v6815 = vadd.f32 0.0, %v6814
    %6816 = vmatmul.bf16.gmra.mxu0 %v6662
    %v6817 = vpop.f32.mrf.mxu0
    %v6818 = vadd.f32 0.0, %v6817
    %v6819 = vpop.f32.mrf.mxu0
    %v6820 = vadd.f32 0.0, %v6819
    %6821 = vmatmul.bf16.gmra.mxu0 %v6665
    %v6822 = vpop.f32.mrf.mxu0
    %v6823 = vadd.f32 0.0, %v6822
    %v6824 = vpop.f32.mrf.mxu0
    %v6825 = vadd.f32 0.0, %v6824
    %6826 = vmatmul.bf16.gmra.mxu0 %v6668
    %v6827 = vpop.f32.mrf.mxu0
    %v6828 = vadd.f32 0.0, %v6827
    %v6829 = vpop.f32.mrf.mxu0
    %v6830 = vadd.f32 0.0, %v6829
    %6831 = vmatmul.bf16.gmra.mxu0 %v6671
    %v6832 = vpop.f32.mrf.mxu0
    %v6833 = vadd.f32 0.0, %v6832
    %v6834 = vpop.f32.mrf.mxu0
    %v6835 = vadd.f32 0.0, %v6834
    %6836 = vmatmul.bf16.gmra.mxu0 %v6674
    %v6837 = vpop.f32.mrf.mxu0
    %v6838 = vadd.f32 0.0, %v6837
    %v6839 = vpop.f32.mrf.mxu0
    %v6840 = vadd.f32 0.0, %v6839
    %6841 = vmatmul.bf16.gmra.mxu0 %v6677
    %v6842 = vpop.f32.mrf.mxu0
    %v6843 = vadd.f32 0.0, %v6842
    %v6844 = vpop.f32.mrf.mxu0
    %v6845 = vadd.f32 0.0, %v6844
    %6846 = vmatmul.bf16.gmra.mxu0 %v6680
    %v6847 = vpop.f32.mrf.mxu0
    %v6848 = vadd.f32 0.0, %v6847
    %v6849 = vpop.f32.mrf.mxu0
    %v6850 = vadd.f32 0.0, %v6849
    %6851 = vmatmul.bf16.gmra.mxu0 %v6683
    %v6852 = vpop.f32.mrf.mxu0
    %v6853 = vadd.f32 0.0, %v6852
    %v6854 = vpop.f32.mrf.mxu0
    %v6855 = vadd.f32 0.0, %v6854
    %6856 = vdwg.mxu0
    %v6857 = vadd.f32 %v5563, %v6698
    %v6858 = vadd.f32 %v5564, %v6700
    %v6859 = vadd.f32 %v5565, %v6703
    %v6860 = vadd.f32 %v5566, %v6705
    %v6861 = vadd.f32 %v5567, %v6708
    %v6862 = vadd.f32 %v5568, %v6710
    %v6863 = vadd.f32 %v5569, %v6713
    %v6864 = vadd.f32 %v5570, %v6715
    %v6865 = vadd.f32 %v5571, %v6718
    %v6866 = vadd.f32 %v5572, %v6720
    %v6867 = vadd.f32 %v5573, %v6723
    %v6868 = vadd.f32 %v5574, %v6725
    %v6869 = vadd.f32 %v5575, %v6728
    %v6870 = vadd.f32 %v5576, %v6730
    %v6871 = vadd.f32 %v5577, %v6733
    %v6872 = vadd.f32 %v5578, %v6735
    %v6873 = vadd.f32 %v5579, %v6738
    %v6874 = vadd.f32 %v5580, %v6740
    %v6875 = vadd.f32 %v5581, %v6743
    %v6876 = vadd.f32 %v5582, %v6745
    %v6877 = vadd.f32 %v5583, %v6748
    %v6878 = vadd.f32 %v5584, %v6750
    %v6879 = vadd.f32 %v5585, %v6753
    %v6880 = vadd.f32 %v5586, %v6755
    %v6881 = vadd.f32 %v5587, %v6758
    %v6882 = vadd.f32 %v5588, %v6760
    %v6883 = vadd.f32 %v5589, %v6763
    %v6884 = vadd.f32 %v5590, %v6765
    %v6885 = vadd.f32 %v5591, %v6768
    %v6886 = vadd.f32 %v5592, %v6770
    %v6887 = vadd.f32 %v5593, %v6773
    %v6888 = vadd.f32 %v5594, %v6775
    %v6889 = vadd.f32 %v5595, %v6778
    %v6890 = vadd.f32 %v5596, %v6780
    %v6891 = vadd.f32 %v5597, %v6783
    %v6892 = vadd.f32 %v5598, %v6785
    %v6893 = vadd.f32 %v5599, %v6788
    %v6894 = vadd.f32 %v5600, %v6790
    %v6895 = vadd.f32 %v5601, %v6793
    %v6896 = vadd.f32 %v5602, %v6795
    %v6897 = vadd.f32 %v5603, %v6798
    %v6898 = vadd.f32 %v5604, %v6800
    %v6899 = vadd.f32 %v5605, %v6803
    %v6900 = vadd.f32 %v5606, %v6805
    %v6901 = vadd.f32 %v5607, %v6808
    %v6902 = vadd.f32 %v5608, %v6810
    %v6903 = vadd.f32 %v5609, %v6813
    %v6904 = vadd.f32 %v5610, %v6815
    %v6905 = vadd.f32 %v5611, %v6818
    %v6906 = vadd.f32 %v5612, %v6820
    %v6907 = vadd.f32 %v5613, %v6823
    %v6908 = vadd.f32 %v5614, %v6825
    %v6909 = vadd.f32 %v5615, %v6828
    %v6910 = vadd.f32 %v5616, %v6830
    %v6911 = vadd.f32 %v5617, %v6833
    %v6912 = vadd.f32 %v5618, %v6835
    %v6913 = vadd.f32 %v5619, %v6838
    %v6914 = vadd.f32 %v5620, %v6840
    %v6915 = vadd.f32 %v5621, %v6843
    %v6916 = vadd.f32 %v5622, %v6845
    %v6917 = vadd.f32 %v5623, %v6848
    %v6918 = vadd.f32 %v5624, %v6850
    %v6919 = vadd.f32 %v5625, %v6853
    %v6920 = vadd.f32 %v5626, %v6855
    %v6921 = vld [vmem:[%s5068] sm:$0xe]
    %v6922 = vld [vmem:[%s5068 + $0xc] sm:$0xe]
    %v6923 = vld [vmem:[%s5068 + $0x18] sm:$0xe]
    %v6924 = vld [vmem:[%s5068 + $0x24] sm:$0xe]
    %v6925 = vld [vmem:[%s5068 + $0x30] sm:$0xe]
    %v6926 = vld [vmem:[%s5068 + $0x3c] sm:$0xe]
    %v6927 = vld [vmem:[%s5068 + $0x48] sm:$0xe]
    %v6928 = vld [vmem:[%s5068 + $0x54] sm:$0xe]
    %v6929 = vld [vmem:[%s5068 + $0x60] sm:$0xe]
    %v6930 = vld [vmem:[%s5068 + $0x6c] sm:$0xe]
    %v6931 = vld [vmem:[%s5068 + $0x78] sm:$0xe]
    %v6932 = vld [vmem:[%s5068 + $0x84] sm:$0xe]
    %v6933 = vld [vmem:[%s5068 + $0x90] sm:$0xe]
    %v6934 = vld [vmem:[%s5068 + $0x9c] sm:$0xe]
    %v6935 = vld [vmem:[%s5068 + $0xa8] sm:$0xe]
    %v6936 = vld [vmem:[%s5068 + $0xb4] sm:$0xe]
    %v6937 = vld [vmem:[%s5068 + $0xd8] sm:$0xe]
    %v6938 = vld [vmem:[%s5068 + $0xe4] sm:$0xe]
    %v6939 = vld [vmem:[%s5068 + $0xf0] sm:$0xe]
    %v6940 = vld [vmem:[%s5068 + $0xfc] sm:$0xe]
    %v6941 = vld [vmem:[%s5068 + $0x108] sm:$0xe]
    %v6942 = vld [vmem:[%s5068 + $0x114] sm:$0xe]
    %v6943 = vld [vmem:[%s5068 + $0x120] sm:$0xe]
    %v6944 = vld [vmem:[%s5068 + $0x12c] sm:$0xe]
    %v6945 = vld [vmem:[%s5068 + $0x138] sm:$0xe]
    %v6946 = vld [vmem:[%s5068 + $0x144] sm:$0xe]
    %v6947 = vld [vmem:[%s5068 + $0x150] sm:$0xe]
    %v6948 = vld [vmem:[%s5068 + $0x15c] sm:$0xe]
    %v6949 = vld [vmem:[%s5068 + $0x168] sm:$0xe]
    %v6950 = vld [vmem:[%s5068 + $0x174] sm:$0xe]
    %v6951 = vld [vmem:[%s5068 + $0x180] sm:$0xe]
    %v6952 = vld [vmem:[%s5068 + $0x18c] sm:$0xe]
    %v7049 = vrot.slane %v6921, 5
    %v7050 = vrot.slane %v7049, 4
    %v7051 = vrot.slane %v5628, 5
    %v7052 = vsel %vm1778, %v7050, %v7051
    %v7053 = vrot.slane %v7051, 4
    %v7054 = vrot.slane %v5629, 5
    %v7055 = vsel %vm1778, %v7053, %v7054
    %v7056 = vrot.slane %v6922, 5
    %v7057 = vrot.slane %v7056, 4
    %v7058 = vrot.slane %v5631, 5
    %v7059 = vsel %vm1778, %v7057, %v7058
    %v7060 = vrot.slane %v7058, 4
    %v7061 = vrot.slane %v5632, 5
    %v7062 = vsel %vm1778, %v7060, %v7061
    %v7063 = vrot.slane %v6923, 5
    %v7064 = vrot.slane %v7063, 4
    %v7065 = vrot.slane %v5634, 5
    %v7066 = vsel %vm1778, %v7064, %v7065
    %v7067 = vrot.slane %v7065, 4
    %v7068 = vrot.slane %v5635, 5
    %v7069 = vsel %vm1778, %v7067, %v7068
    %v7070 = vrot.slane %v6924, 5
    %v7071 = vrot.slane %v7070, 4
    %v7072 = vrot.slane %v5637, 5
    %v7073 = vsel %vm1778, %v7071, %v7072
    %v7074 = vrot.slane %v7072, 4
    %v7075 = vrot.slane %v5638, 5
    %v7076 = vsel %vm1778, %v7074, %v7075
    %v7077 = vrot.slane %v6925, 5
    %v7078 = vrot.slane %v7077, 4
    %v7079 = vrot.slane %v5640, 5
    %v7080 = vsel %vm1778, %v7078, %v7079
    %v7081 = vrot.slane %v7079, 4
    %v7082 = vrot.slane %v5641, 5
    %v7083 = vsel %vm1778, %v7081, %v7082
    %v7084 = vrot.slane %v6926, 5
    %v7085 = vrot.slane %v7084, 4
    %v7086 = vrot.slane %v5643, 5
    %v7087 = vsel %vm1778, %v7085, %v7086
    %v7088 = vrot.slane %v7086, 4
    %v7089 = vrot.slane %v5644, 5
    %v7090 = vsel %vm1778, %v7088, %v7089
    %v7091 = vrot.slane %v6927, 5
    %v7092 = vrot.slane %v7091, 4
    %v7093 = vrot.slane %v5646, 5
    %v7094 = vsel %vm1778, %v7092, %v7093
    %v7095 = vrot.slane %v7093, 4
    %v7096 = vrot.slane %v5647, 5
    %v7097 = vsel %vm1778, %v7095, %v7096
    %v7098 = vrot.slane %v6928, 5
    %v7099 = vrot.slane %v7098, 4
    %v7100 = vrot.slane %v5649, 5
    %v7101 = vsel %vm1778, %v7099, %v7100
    %v7102 = vrot.slane %v7100, 4
    %v7103 = vrot.slane %v5650, 5
    %v7104 = vsel %vm1778, %v7102, %v7103
    %v7105 = vrot.slane %v6929, 5
    %v7106 = vrot.slane %v7105, 4
    %v7107 = vrot.slane %v5652, 5
    %v7108 = vsel %vm1778, %v7106, %v7107
    %v7109 = vrot.slane %v7107, 4
    %v7110 = vrot.slane %v5653, 5
    %v7111 = vsel %vm1778, %v7109, %v7110
    %v7112 = vrot.slane %v6930, 5
    %v7113 = vrot.slane %v7112, 4
    %v7114 = vrot.slane %v5655, 5
    %v7115 = vsel %vm1778, %v7113, %v7114
    %v7116 = vrot.slane %v7114, 4
    %v7117 = vrot.slane %v5656, 5
    %v7118 = vsel %vm1778, %v7116, %v7117
    %v7119 = vrot.slane %v6931, 5
    %v7120 = vrot.slane %v7119, 4
    %v7121 = vrot.slane %v5658, 5
    %v7122 = vsel %vm1778, %v7120, %v7121
    %v7123 = vrot.slane %v7121, 4
    %v7124 = vrot.slane %v5659, 5
    %v7125 = vsel %vm1778, %v7123, %v7124
    %v7126 = vrot.slane %v6932, 5
    %v7127 = vrot.slane %v7126, 4
    %v7128 = vrot.slane %v5661, 5
    %v7129 = vsel %vm1778, %v7127, %v7128
    %v7130 = vrot.slane %v7128, 4
    %v7131 = vrot.slane %v5662, 5
    %v7132 = vsel %vm1778, %v7130, %v7131
    %v7133 = vrot.slane %v6933, 5
    %v7134 = vrot.slane %v7133, 4
    %v7135 = vrot.slane %v5664, 5
    %v7136 = vsel %vm1778, %v7134, %v7135
    %v7137 = vrot.slane %v7135, 4
    %v7138 = vrot.slane %v5665, 5
    %v7139 = vsel %vm1778, %v7137, %v7138
    %v7140 = vrot.slane %v6934, 5
    %v7141 = vrot.slane %v7140, 4
    %v7142 = vrot.slane %v5667, 5
    %v7143 = vsel %vm1778, %v7141, %v7142
    %v7144 = vrot.slane %v7142, 4
    %v7145 = vrot.slane %v5668, 5
    %v7146 = vsel %vm1778, %v7144, %v7145
    %v7147 = vrot.slane %v6935, 5
    %v7148 = vrot.slane %v7147, 4
    %v7149 = vrot.slane %v5670, 5
    %v7150 = vsel %vm1778, %v7148, %v7149
    %v7151 = vrot.slane %v7149, 4
    %v7152 = vrot.slane %v5671, 5
    %v7153 = vsel %vm1778, %v7151, %v7152
    %v7154 = vrot.slane %v6936, 5
    %v7155 = vrot.slane %v7154, 4
    %v7156 = vrot.slane %v5673, 5
    %v7157 = vsel %vm1778, %v7155, %v7156
    %v7158 = vrot.slane %v7156, 4
    %v7159 = vrot.slane %v5674, 5
    %v7160 = vsel %vm1778, %v7158, %v7159
    %v7161 = vrot.slane %v6937, 5
    %v7162 = vrot.slane %v7161, 4
    %v7163 = vrot.slane %v5676, 5
    %v7164 = vsel %vm1778, %v7162, %v7163
    %v7165 = vrot.slane %v7163, 4
    %v7166 = vrot.slane %v5677, 5
    %v7167 = vsel %vm1778, %v7165, %v7166
    %v7168 = vrot.slane %v6938, 5
    %v7169 = vrot.slane %v7168, 4
    %v7170 = vrot.slane %v5679, 5
    %v7171 = vsel %vm1778, %v7169, %v7170
    %v7172 = vrot.slane %v7170, 4
    %v7173 = vrot.slane %v5680, 5
    %v7174 = vsel %vm1778, %v7172, %v7173
    %v7175 = vrot.slane %v6939, 5
    %v7176 = vrot.slane %v7175, 4
    %v7177 = vrot.slane %v5682, 5
    %v7178 = vsel %vm1778, %v7176, %v7177
    %v7179 = vrot.slane %v7177, 4
    %v7180 = vrot.slane %v5683, 5
    %v7181 = vsel %vm1778, %v7179, %v7180
    %v7182 = vrot.slane %v6940, 5
    %v7183 = vrot.slane %v7182, 4
    %v7184 = vrot.slane %v5685, 5
    %v7185 = vsel %vm1778, %v7183, %v7184
    %v7186 = vrot.slane %v7184, 4
    %v7187 = vrot.slane %v5686, 5
    %v7188 = vsel %vm1778, %v7186, %v7187
    %v7189 = vrot.slane %v6941, 5
    %v7190 = vrot.slane %v7189, 4
    %v7191 = vrot.slane %v5688, 5
    %v7192 = vsel %vm1778, %v7190, %v7191
    %v7193 = vrot.slane %v7191, 4
    %v7194 = vrot.slane %v5689, 5
    %v7195 = vsel %vm1778, %v7193, %v7194
    %v7196 = vrot.slane %v6942, 5
    %v7197 = vrot.slane %v7196, 4
    %v7198 = vrot.slane %v5691, 5
    %v7199 = vsel %vm1778, %v7197, %v7198
    %v7200 = vrot.slane %v7198, 4
    %v7201 = vrot.slane %v5692, 5
    %v7202 = vsel %vm1778, %v7200, %v7201
    %v7203 = vrot.slane %v6943, 5
    %v7204 = vrot.slane %v7203, 4
    %v7205 = vrot.slane %v5694, 5
    %v7206 = vsel %vm1778, %v7204, %v7205
    %v7207 = vrot.slane %v7205, 4
    %v7208 = vrot.slane %v5695, 5
    %v7209 = vsel %vm1778, %v7207, %v7208
    %v7210 = vrot.slane %v6944, 5
    %v7211 = vrot.slane %v7210, 4
    %v7212 = vrot.slane %v5697, 5
    %v7213 = vsel %vm1778, %v7211, %v7212
    %v7214 = vrot.slane %v7212, 4
    %v7215 = vrot.slane %v5698, 5
    %v7216 = vsel %vm1778, %v7214, %v7215
    %v7217 = vrot.slane %v6945, 5
    %v7218 = vrot.slane %v7217, 4
    %v7219 = vrot.slane %v5700, 5
    %v7220 = vsel %vm1778, %v7218, %v7219
    %v7221 = vrot.slane %v7219, 4
    %v7222 = vrot.slane %v5701, 5
    %v7223 = vsel %vm1778, %v7221, %v7222
    %v7224 = vrot.slane %v6946, 5
    %v7225 = vrot.slane %v7224, 4
    %v7226 = vrot.slane %v5703, 5
    %v7227 = vsel %vm1778, %v7225, %v7226
    %v7228 = vrot.slane %v7226, 4
    %v7229 = vrot.slane %v5704, 5
    %v7230 = vsel %vm1778, %v7228, %v7229
    %v7231 = vrot.slane %v6947, 5
    %v7232 = vrot.slane %v7231, 4
    %v7233 = vrot.slane %v5706, 5
    %v7234 = vsel %vm1778, %v7232, %v7233
    %v7235 = vrot.slane %v7233, 4
    %v7236 = vrot.slane %v5707, 5
    %v7237 = vsel %vm1778, %v7235, %v7236
    %v7238 = vrot.slane %v6948, 5
    %v7239 = vrot.slane %v7238, 4
    %v7240 = vrot.slane %v5709, 5
    %v7241 = vsel %vm1778, %v7239, %v7240
    %v7242 = vrot.slane %v7240, 4
    %v7243 = vrot.slane %v5710, 5
    %v7244 = vsel %vm1778, %v7242, %v7243
    %v7245 = vrot.slane %v6949, 5
    %v7246 = vrot.slane %v7245, 4
    %v7247 = vrot.slane %v5712, 5
    %v7248 = vsel %vm1778, %v7246, %v7247
    %v7249 = vrot.slane %v7247, 4
    %v7250 = vrot.slane %v5713, 5
    %v7251 = vsel %vm1778, %v7249, %v7250
    %v7252 = vrot.slane %v6950, 5
    %v7253 = vrot.slane %v7252, 4
    %v7254 = vrot.slane %v5715, 5
    %v7255 = vsel %vm1778, %v7253, %v7254
    %v7256 = vrot.slane %v7254, 4
    %v7257 = vrot.slane %v5716, 5
    %v7258 = vsel %vm1778, %v7256, %v7257
    %v7259 = vrot.slane %v6951, 5
    %v7260 = vrot.slane %v7259, 4
    %v7261 = vrot.slane %v5718, 5
    %v7262 = vsel %vm1778, %v7260, %v7261
    %v7263 = vrot.slane %v7261, 4
    %v7264 = vrot.slane %v5719, 5
    %v7265 = vsel %vm1778, %v7263, %v7264
    %v7266 = vrot.slane %v6952, 5
    %v7267 = vrot.slane %v7266, 4
    %v7268 = vrot.slane %v5721, 5
    %v7269 = vsel %vm1778, %v7267, %v7268
    %v7270 = vrot.slane %v7268, 4
    %v7271 = vrot.slane %v5722, 5
    %v7272 = vsel %vm1778, %v7270, %v7271
    %s7273 = scalar_lea.vmem %s1, 16
    %v7274 = vld [vmem:[%s7273] sm:$0x3]
    %v7275 = vunpack.c.l.b16 %v7052
    %v7276 = vunpack.c.l.b16 %v7055
    %v7277 = vunpack.c.l.b16 %v7059
    %v7278 = vunpack.c.l.b16 %v7062
    %v7279 = vunpack.c.l.b16 %v7066
    %v7280 = vunpack.c.l.b16 %v7069
    %v7281 = vunpack.c.l.b16 %v7073
    %v7282 = vunpack.c.l.b16 %v7076
    %v7283 = vunpack.c.l.b16 %v7080
    %v7284 = vunpack.c.l.b16 %v7083
    %v7285 = vunpack.c.l.b16 %v7087
    %v7286 = vunpack.c.l.b16 %v7090
    %v7287 = vunpack.c.l.b16 %v7094
    %v7288 = vunpack.c.l.b16 %v7097
    %v7289 = vunpack.c.l.b16 %v7101
    %v7290 = vunpack.c.l.b16 %v7104
    %v7291 = vunpack.c.l.b16 %v7108
    %v7292 = vunpack.c.l.b16 %v7111
    %v7293 = vunpack.c.l.b16 %v7115
    %v7294 = vunpack.c.l.b16 %v7118
    %v7295 = vunpack.c.l.b16 %v7122
    %v7296 = vunpack.c.l.b16 %v7125
    %v7297 = vunpack.c.l.b16 %v7129
    %v7298 = vunpack.c.l.b16 %v7132
    %v7299 = vunpack.c.l.b16 %v7136
    %v7300 = vunpack.c.l.b16 %v7139
    %v7301 = vunpack.c.l.b16 %v7143
    %v7302 = vunpack.c.l.b16 %v7146
    %v7303 = vunpack.c.l.b16 %v7150
    %v7304 = vunpack.c.l.b16 %v7153
    %v7305 = vunpack.c.l.b16 %v7157
    %v7306 = vunpack.c.l.b16 %v7160
    %v7307 = vunpack.c.l.b16 %v7164
    %v7308 = vunpack.c.l.b16 %v7167
    %v7309 = vunpack.c.l.b16 %v7171
    %v7310 = vunpack.c.l.b16 %v7174
    %v7311 = vunpack.c.l.b16 %v7178
    %v7312 = vunpack.c.l.b16 %v7181
    %v7313 = vunpack.c.l.b16 %v7185
    %v7314 = vunpack.c.l.b16 %v7188
    %v7315 = vunpack.c.l.b16 %v7192
    %v7316 = vunpack.c.l.b16 %v7195
    %v7317 = vunpack.c.l.b16 %v7199
    %v7318 = vunpack.c.l.b16 %v7202
    %v7319 = vunpack.c.l.b16 %v7206
    %v7320 = vunpack.c.l.b16 %v7209
    %v7321 = vunpack.c.l.b16 %v7213
    %v7322 = vunpack.c.l.b16 %v7216
    %v7323 = vunpack.c.l.b16 %v7220
    %v7324 = vunpack.c.l.b16 %v7223
    %v7325 = vunpack.c.l.b16 %v7227
    %v7326 = vunpack.c.l.b16 %v7230
    %v7327 = vunpack.c.l.b16 %v7234
    %v7328 = vunpack.c.l.b16 %v7237
    %v7329 = vunpack.c.l.b16 %v7241
    %v7330 = vunpack.c.l.b16 %v7244
    %v7331 = vunpack.c.l.b16 %v7248
    %v7332 = vunpack.c.l.b16 %v7251
    %v7333 = vunpack.c.l.b16 %v7255
    %v7334 = vunpack.c.l.b16 %v7258
    %v7335 = vunpack.c.l.b16 %v7262
    %v7336 = vunpack.c.l.b16 %v7265
    %v7337 = vunpack.c.l.b16 %v7269
    %v7338 = vunpack.c.l.b16 %v7272
    %v7339 = vpack.c.b16 %v7276, %v7275
    %v7340 = vpack.c.b16 %v7278, %v7277
    %v7341 = vpack.c.b16 %v7280, %v7279
    %v7342 = vpack.c.b16 %v7282, %v7281
    %v7343 = vpack.c.b16 %v7284, %v7283
    %v7344 = vpack.c.b16 %v7286, %v7285
    %v7345 = vpack.c.b16 %v7288, %v7287
    %v7346 = vpack.c.b16 %v7290, %v7289
    %v7347 = vpack.c.b16 %v7292, %v7291
    %v7348 = vpack.c.b16 %v7294, %v7293
    %v7349 = vpack.c.b16 %v7296, %v7295
    %v7350 = vpack.c.b16 %v7298, %v7297
    %v7351 = vpack.c.b16 %v7300, %v7299
    %v7352 = vpack.c.b16 %v7302, %v7301
    %v7353 = vpack.c.b16 %v7304, %v7303
    %v7354 = vpack.c.b16 %v7306, %v7305
    %v7355 = vpack.c.b16 %v7308, %v7307
    %v7356 = vpack.c.b16 %v7310, %v7309
    %v7357 = vpack.c.b16 %v7312, %v7311
    %v7358 = vpack.c.b16 %v7314, %v7313
    %v7359 = vpack.c.b16 %v7316, %v7315
    %v7360 = vpack.c.b16 %v7318, %v7317
    %v7361 = vpack.c.b16 %v7320, %v7319
    %v7362 = vpack.c.b16 %v7322, %v7321
    %v7363 = vpack.c.b16 %v7324, %v7323
    %v7364 = vpack.c.b16 %v7326, %v7325
    %v7365 = vpack.c.b16 %v7328, %v7327
    %v7366 = vpack.c.b16 %v7330, %v7329
    %v7367 = vpack.c.b16 %v7332, %v7331
    %v7368 = vpack.c.b16 %v7334, %v7333
    %v7369 = vpack.c.b16 %v7336, %v7335
    %v7370 = vpack.c.b16 %v7338, %v7337
    %v7372 = vsel %vm982, %v7339, 0
    %v7375 = vsel %vm982, %v7340, 0
    %v7378 = vsel %vm982, %v7341, 0
    %v7381 = vsel %vm982, %v7342, 0
    %v7384 = vsel %vm982, %v7343, 0
    %v7387 = vsel %vm982, %v7344, 0
    %v7390 = vsel %vm982, %v7345, 0
    %v7393 = vsel %vm982, %v7346, 0
    %v7396 = vsel %vm982, %v7347, 0
    %v7399 = vsel %vm982, %v7348, 0
    %v7402 = vsel %vm982, %v7349, 0
    %v7405 = vsel %vm982, %v7350, 0
    %v7408 = vsel %vm982, %v7351, 0
    %v7411 = vsel %vm982, %v7352, 0
    %v7414 = vsel %vm982, %v7353, 0
    %v7417 = vsel %vm982, %v7354, 0
    %v7420 = vsel %vm982, %v7355, 0
    %v7423 = vsel %vm982, %v7356, 0
    %v7426 = vsel %vm982, %v7357, 0
    %v7429 = vsel %vm982, %v7358, 0
    %v7432 = vsel %vm982, %v7359, 0
    %v7435 = vsel %vm982, %v7360, 0
    %v7438 = vsel %vm982, %v7361, 0
    %v7441 = vsel %vm982, %v7362, 0
    %v7444 = vsel %vm982, %v7363, 0
    %v7447 = vsel %vm982, %v7364, 0
    %v7450 = vsel %vm982, %v7365, 0
    %v7453 = vsel %vm982, %v7366, 0
    %v7456 = vsel %vm982, %v7367, 0
    %v7459 = vsel %vm982, %v7368, 0
    %v7462 = vsel %vm982, %v7369, 0
    %v7465 = vsel %vm982, %v7370, 0
    %v7468 = vsel %vm1079, %v7274, 0
    %7470 = vmatpush.bf16.msra.mxu0 0
    %7471 = vmatpush.bf16.msra.mxu0 0
    %7472 = vmatpush.bf16.msra.mxu0 0
    %7473 = vmatpush.bf16.msra.mxu0 0
    %7474 = vmatpush.bf16.msra.mxu0 0
    %7475 = vmatpush.bf16.msra.mxu0 0
    %7476 = vmatpush.bf16.msra.mxu0 0
    %7477 = vmatpush.bf16.msra.mxu0 %v7468
    %7478 = vmatmul.bf16.gmra.mxu0 %v7372
    %v7479 = vpop.f32.mrf.mxu0
    %v7480 = vadd.f32 0.0, %v7479
    %v7481 = vpop.f32.mrf.mxu0
    %v7482 = vadd.f32 0.0, %v7481
    %7483 = vmatmul.bf16.gmra.mxu0 %v7375
    %v7484 = vpop.f32.mrf.mxu0
    %v7485 = vadd.f32 0.0, %v7484
    %v7486 = vpop.f32.mrf.mxu0
    %v7487 = vadd.f32 0.0, %v7486
    %7488 = vmatmul.bf16.gmra.mxu0 %v7378
    %v7489 = vpop.f32.mrf.mxu0
    %v7490 = vadd.f32 0.0, %v7489
    %v7491 = vpop.f32.mrf.mxu0
    %v7492 = vadd.f32 0.0, %v7491
    %7493 = vmatmul.bf16.gmra.mxu0 %v7381
    %v7494 = vpop.f32.mrf.mxu0
    %v7495 = vadd.f32 0.0, %v7494
    %v7496 = vpop.f32.mrf.mxu0
    %v7497 = vadd.f32 0.0, %v7496
    %7498 = vmatmul.bf16.gmra.mxu0 %v7384
    %v7499 = vpop.f32.mrf.mxu0
    %v7500 = vadd.f32 0.0, %v7499
    %v7501 = vpop.f32.mrf.mxu0
    %v7502 = vadd.f32 0.0, %v7501
    %7503 = vmatmul.bf16.gmra.mxu0 %v7387
    %v7504 = vpop.f32.mrf.mxu0
    %v7505 = vadd.f32 0.0, %v7504
    %v7506 = vpop.f32.mrf.mxu0
    %v7507 = vadd.f32 0.0, %v7506
    %7508 = vmatmul.bf16.gmra.mxu0 %v7390
    %v7509 = vpop.f32.mrf.mxu0
    %v7510 = vadd.f32 0.0, %v7509
    %v7511 = vpop.f32.mrf.mxu0
    %v7512 = vadd.f32 0.0, %v7511
    %7513 = vmatmul.bf16.gmra.mxu0 %v7393
    %v7514 = vpop.f32.mrf.mxu0
    %v7515 = vadd.f32 0.0, %v7514
    %v7516 = vpop.f32.mrf.mxu0
    %v7517 = vadd.f32 0.0, %v7516
    %7518 = vmatmul.bf16.gmra.mxu0 %v7396
    %v7519 = vpop.f32.mrf.mxu0
    %v7520 = vadd.f32 0.0, %v7519
    %v7521 = vpop.f32.mrf.mxu0
    %v7522 = vadd.f32 0.0, %v7521
    %7523 = vmatmul.bf16.gmra.mxu0 %v7399
    %v7524 = vpop.f32.mrf.mxu0
    %v7525 = vadd.f32 0.0, %v7524
    %v7526 = vpop.f32.mrf.mxu0
    %v7527 = vadd.f32 0.0, %v7526
    %7528 = vmatmul.bf16.gmra.mxu0 %v7402
    %v7529 = vpop.f32.mrf.mxu0
    %v7530 = vadd.f32 0.0, %v7529
    %v7531 = vpop.f32.mrf.mxu0
    %v7532 = vadd.f32 0.0, %v7531
    %7533 = vmatmul.bf16.gmra.mxu0 %v7405
    %v7534 = vpop.f32.mrf.mxu0
    %v7535 = vadd.f32 0.0, %v7534
    %v7536 = vpop.f32.mrf.mxu0
    %v7537 = vadd.f32 0.0, %v7536
    %7538 = vmatmul.bf16.gmra.mxu0 %v7408
    %v7539 = vpop.f32.mrf.mxu0
    %v7540 = vadd.f32 0.0, %v7539
    %v7541 = vpop.f32.mrf.mxu0
    %v7542 = vadd.f32 0.0, %v7541
    %7543 = vmatmul.bf16.gmra.mxu0 %v7411
    %v7544 = vpop.f32.mrf.mxu0
    %v7545 = vadd.f32 0.0, %v7544
    %v7546 = vpop.f32.mrf.mxu0
    %v7547 = vadd.f32 0.0, %v7546
    %7548 = vmatmul.bf16.gmra.mxu0 %v7414
    %v7549 = vpop.f32.mrf.mxu0
    %v7550 = vadd.f32 0.0, %v7549
    %v7551 = vpop.f32.mrf.mxu0
    %v7552 = vadd.f32 0.0, %v7551
    %7553 = vmatmul.bf16.gmra.mxu0 %v7417
    %v7554 = vpop.f32.mrf.mxu0
    %v7555 = vadd.f32 0.0, %v7554
    %v7556 = vpop.f32.mrf.mxu0
    %v7557 = vadd.f32 0.0, %v7556
    %7558 = vmatmul.bf16.gmra.mxu0 %v7420
    %v7559 = vpop.f32.mrf.mxu0
    %v7560 = vadd.f32 0.0, %v7559
    %v7561 = vpop.f32.mrf.mxu0
    %v7562 = vadd.f32 0.0, %v7561
    %7563 = vmatmul.bf16.gmra.mxu0 %v7423
    %v7564 = vpop.f32.mrf.mxu0
    %v7565 = vadd.f32 0.0, %v7564
    %v7566 = vpop.f32.mrf.mxu0
    %v7567 = vadd.f32 0.0, %v7566
    %7568 = vmatmul.bf16.gmra.mxu0 %v7426
    %v7569 = vpop.f32.mrf.mxu0
    %v7570 = vadd.f32 0.0, %v7569
    %v7571 = vpop.f32.mrf.mxu0
    %v7572 = vadd.f32 0.0, %v7571
    %7573 = vmatmul.bf16.gmra.mxu0 %v7429
    %v7574 = vpop.f32.mrf.mxu0
    %v7575 = vadd.f32 0.0, %v7574
    %v7576 = vpop.f32.mrf.mxu0
    %v7577 = vadd.f32 0.0, %v7576
    %7578 = vmatmul.bf16.gmra.mxu0 %v7432
    %v7579 = vpop.f32.mrf.mxu0
    %v7580 = vadd.f32 0.0, %v7579
    %v7581 = vpop.f32.mrf.mxu0
    %v7582 = vadd.f32 0.0, %v7581
    %7583 = vmatmul.bf16.gmra.mxu0 %v7435
    %v7584 = vpop.f32.mrf.mxu0
    %v7585 = vadd.f32 0.0, %v7584
    %v7586 = vpop.f32.mrf.mxu0
    %v7587 = vadd.f32 0.0, %v7586
    %7588 = vmatmul.bf16.gmra.mxu0 %v7438
    %v7589 = vpop.f32.mrf.mxu0
    %v7590 = vadd.f32 0.0, %v7589
    %v7591 = vpop.f32.mrf.mxu0
    %v7592 = vadd.f32 0.0, %v7591
    %7593 = vmatmul.bf16.gmra.mxu0 %v7441
    %v7594 = vpop.f32.mrf.mxu0
    %v7595 = vadd.f32 0.0, %v7594
    %v7596 = vpop.f32.mrf.mxu0
    %v7597 = vadd.f32 0.0, %v7596
    %7598 = vmatmul.bf16.gmra.mxu0 %v7444
    %v7599 = vpop.f32.mrf.mxu0
    %v7600 = vadd.f32 0.0, %v7599
    %v7601 = vpop.f32.mrf.mxu0
    %v7602 = vadd.f32 0.0, %v7601
    %7603 = vmatmul.bf16.gmra.mxu0 %v7447
    %v7604 = vpop.f32.mrf.mxu0
    %v7605 = vadd.f32 0.0, %v7604
    %v7606 = vpop.f32.mrf.mxu0
    %v7607 = vadd.f32 0.0, %v7606
    %7608 = vmatmul.bf16.gmra.mxu0 %v7450
    %v7609 = vpop.f32.mrf.mxu0
    %v7610 = vadd.f32 0.0, %v7609
    %v7611 = vpop.f32.mrf.mxu0
    %v7612 = vadd.f32 0.0, %v7611
    %7613 = vmatmul.bf16.gmra.mxu0 %v7453
    %v7614 = vpop.f32.mrf.mxu0
    %v7615 = vadd.f32 0.0, %v7614
    %v7616 = vpop.f32.mrf.mxu0
    %v7617 = vadd.f32 0.0, %v7616
    %7618 = vmatmul.bf16.gmra.mxu0 %v7456
    %v7619 = vpop.f32.mrf.mxu0
    %v7620 = vadd.f32 0.0, %v7619
    %v7621 = vpop.f32.mrf.mxu0
    %v7622 = vadd.f32 0.0, %v7621
    %7623 = vmatmul.bf16.gmra.mxu0 %v7459
    %v7624 = vpop.f32.mrf.mxu0
    %v7625 = vadd.f32 0.0, %v7624
    %v7626 = vpop.f32.mrf.mxu0
    %v7627 = vadd.f32 0.0, %v7626
    %7628 = vmatmul.bf16.gmra.mxu0 %v7462
    %v7629 = vpop.f32.mrf.mxu0
    %v7630 = vadd.f32 0.0, %v7629
    %v7631 = vpop.f32.mrf.mxu0
    %v7632 = vadd.f32 0.0, %v7631
    %7633 = vmatmul.bf16.gmra.mxu0 %v7465
    %v7634 = vpop.f32.mrf.mxu0
    %v7635 = vadd.f32 0.0, %v7634
    %v7636 = vpop.f32.mrf.mxu0
    %v7637 = vadd.f32 0.0, %v7636
    %7638 = vdwg.mxu0
    %v7639 = vadd.f32 %v6857, %v7480
    %v7640 = vadd.f32 %v6858, %v7482
    %v7641 = vadd.f32 %v6859, %v7485
    %v7642 = vadd.f32 %v6860, %v7487
    %v7643 = vadd.f32 %v6861, %v7490
    %v7644 = vadd.f32 %v6862, %v7492
    %v7645 = vadd.f32 %v6863, %v7495
    %v7646 = vadd.f32 %v6864, %v7497
    %v7647 = vadd.f32 %v6865, %v7500
    %v7648 = vadd.f32 %v6866, %v7502
    %v7649 = vadd.f32 %v6867, %v7505
    %v7650 = vadd.f32 %v6868, %v7507
    %v7651 = vadd.f32 %v6869, %v7510
    %v7652 = vadd.f32 %v6870, %v7512
    %v7653 = vadd.f32 %v6871, %v7515
    %v7654 = vadd.f32 %v6872, %v7517
    %v7655 = vadd.f32 %v6873, %v7520
    %v7656 = vadd.f32 %v6874, %v7522
    %v7657 = vadd.f32 %v6875, %v7525
    %v7658 = vadd.f32 %v6876, %v7527
    %v7659 = vadd.f32 %v6877, %v7530
    %v7660 = vadd.f32 %v6878, %v7532
    %v7661 = vadd.f32 %v6879, %v7535
    %v7662 = vadd.f32 %v6880, %v7537
    %v7663 = vadd.f32 %v6881, %v7540
    %v7664 = vadd.f32 %v6882, %v7542
    %v7665 = vadd.f32 %v6883, %v7545
    %v7666 = vadd.f32 %v6884, %v7547
    %v7667 = vadd.f32 %v6885, %v7550
    %v7668 = vadd.f32 %v6886, %v7552
    %v7669 = vadd.f32 %v6887, %v7555
    %v7670 = vadd.f32 %v6888, %v7557
    %v7671 = vadd.f32 %v6889, %v7560
    %v7672 = vadd.f32 %v6890, %v7562
    %v7673 = vadd.f32 %v6891, %v7565
    %v7674 = vadd.f32 %v6892, %v7567
    %v7675 = vadd.f32 %v6893, %v7570
    %v7676 = vadd.f32 %v6894, %v7572
    %v7677 = vadd.f32 %v6895, %v7575
    %v7678 = vadd.f32 %v6896, %v7577
    %v7679 = vadd.f32 %v6897, %v7580
    %v7680 = vadd.f32 %v6898, %v7582
    %v7681 = vadd.f32 %v6899, %v7585
    %v7682 = vadd.f32 %v6900, %v7587
    %v7683 = vadd.f32 %v6901, %v7590
    %v7684 = vadd.f32 %v6902, %v7592
    %v7685 = vadd.f32 %v6903, %v7595
    %v7686 = vadd.f32 %v6904, %v7597
    %v7687 = vadd.f32 %v6905, %v7600
    %v7688 = vadd.f32 %v6906, %v7602
    %v7689 = vadd.f32 %v6907, %v7605
    %v7690 = vadd.f32 %v6908, %v7607
    %v7691 = vadd.f32 %v6909, %v7610
    %v7692 = vadd.f32 %v6910, %v7612
    %v7693 = vadd.f32 %v6911, %v7615
    %v7694 = vadd.f32 %v6912, %v7617
    %v7695 = vadd.f32 %v6913, %v7620
    %v7696 = vadd.f32 %v6914, %v7622
    %v7697 = vadd.f32 %v6915, %v7625
    %v7698 = vadd.f32 %v6916, %v7627
    %v7699 = vadd.f32 %v6917, %v7630
    %v7700 = vadd.f32 %v6918, %v7632
    %v7701 = vadd.f32 %v6919, %v7635
    %v7702 = vadd.f32 %v6920, %v7637
    %v7703 = vld [vmem:[%s2] sm:$0x1]
    %v7704 = vld [vmem:[%s2 + $0x1] sm:$0x1]
    %v7705 = vld [vmem:[%s2 + $0x2] sm:$0x1]
    %v7706 = vld [vmem:[%s2 + $0x3] sm:$0x1]
    %v7707 = vperm.slane %v7703, 0
    %v7708 = vmul.f32 %v7639, %v7707
    %v7709 = vmul.f32 %v7640, %v7707
    %v7710 = vmul.f32 %v7641, %v7707
    %v7711 = vmul.f32 %v7642, %v7707
    %v7712 = vmul.f32 %v7643, %v7707
    %v7713 = vmul.f32 %v7644, %v7707
    %v7714 = vmul.f32 %v7645, %v7707
    %v7715 = vmul.f32 %v7646, %v7707
    %v7716 = vmul.f32 %v7647, %v7707
    %v7717 = vmul.f32 %v7648, %v7707
    %v7718 = vmul.f32 %v7649, %v7707
    %v7719 = vmul.f32 %v7650, %v7707
    %v7720 = vmul.f32 %v7651, %v7707
    %v7721 = vmul.f32 %v7652, %v7707
    %v7722 = vmul.f32 %v7653, %v7707
    %v7723 = vmul.f32 %v7654, %v7707
    %v7724 = vmul.f32 %v7655, %v7707
    %v7725 = vmul.f32 %v7656, %v7707
    %v7726 = vmul.f32 %v7657, %v7707
    %v7727 = vmul.f32 %v7658, %v7707
    %v7728 = vmul.f32 %v7659, %v7707
    %v7729 = vmul.f32 %v7660, %v7707
    %v7730 = vmul.f32 %v7661, %v7707
    %v7731 = vmul.f32 %v7662, %v7707
    %v7732 = vmul.f32 %v7663, %v7707
    %v7733 = vmul.f32 %v7664, %v7707
    %v7734 = vmul.f32 %v7665, %v7707
    %v7735 = vmul.f32 %v7666, %v7707
    %v7736 = vmul.f32 %v7667, %v7707
    %v7737 = vmul.f32 %v7668, %v7707
    %v7738 = vmul.f32 %v7669, %v7707
    %v7739 = vmul.f32 %v7670, %v7707
    %v7740 = vmul.f32 %v7671, %v7707
    %v7741 = vmul.f32 %v7672, %v7707
    %v7742 = vmul.f32 %v7673, %v7707
    %v7743 = vmul.f32 %v7674, %v7707
    %v7744 = vmul.f32 %v7675, %v7707
    %v7745 = vmul.f32 %v7676, %v7707
    %v7746 = vmul.f32 %v7677, %v7707
    %v7747 = vmul.f32 %v7678, %v7707
    %v7748 = vmul.f32 %v7679, %v7707
    %v7749 = vmul.f32 %v7680, %v7707
    %v7750 = vmul.f32 %v7681, %v7707
    %v7751 = vmul.f32 %v7682, %v7707
    %v7752 = vmul.f32 %v7683, %v7707
    %v7753 = vmul.f32 %v7684, %v7707
    %v7754 = vmul.f32 %v7685, %v7707
    %v7755 = vmul.f32 %v7686, %v7707
    %v7756 = vmul.f32 %v7687, %v7707
    %v7757 = vmul.f32 %v7688, %v7707
    %v7758 = vmul.f32 %v7689, %v7707
    %v7759 = vmul.f32 %v7690, %v7707
    %v7760 = vmul.f32 %v7691, %v7707
    %v7761 = vmul.f32 %v7692, %v7707
    %v7762 = vmul.f32 %v7693, %v7707
    %v7763 = vmul.f32 %v7694, %v7707
    %v7764 = vmul.f32 %v7695, %v7707
    %v7765 = vmul.f32 %v7696, %v7707
    %v7766 = vmul.f32 %v7697, %v7707
    %v7767 = vmul.f32 %v7698, %v7707
    %v7768 = vmul.f32 %v7699, %v7707
    %v7769 = vmul.f32 %v7700, %v7707
    %v7770 = vmul.f32 %v7701, %v7707
    %v7771 = vmul.f32 %v7702, %v7707
    %v7772 = vperm.slane %v7704, 0
    %v7773 = vadd.f32 %v7708, %v7772
    %v7774 = vadd.f32 %v7709, %v7772
    %v7775 = vadd.f32 %v7710, %v7772
    %v7776 = vadd.f32 %v7711, %v7772
    %v7777 = vadd.f32 %v7712, %v7772
    %v7778 = vadd.f32 %v7713, %v7772
    %v7779 = vadd.f32 %v7714, %v7772
    %v7780 = vadd.f32 %v7715, %v7772
    %v7781 = vadd.f32 %v7716, %v7772
    %v7782 = vadd.f32 %v7717, %v7772
    %v7783 = vadd.f32 %v7718, %v7772
    %v7784 = vadd.f32 %v7719, %v7772
    %v7785 = vadd.f32 %v7720, %v7772
    %v7786 = vadd.f32 %v7721, %v7772
    %v7787 = vadd.f32 %v7722, %v7772
    %v7788 = vadd.f32 %v7723, %v7772
    %v7789 = vadd.f32 %v7724, %v7772
    %v7790 = vadd.f32 %v7725, %v7772
    %v7791 = vadd.f32 %v7726, %v7772
    %v7792 = vadd.f32 %v7727, %v7772
    %v7793 = vadd.f32 %v7728, %v7772
    %v7794 = vadd.f32 %v7729, %v7772
    %v7795 = vadd.f32 %v7730, %v7772
    %v7796 = vadd.f32 %v7731, %v7772
    %v7797 = vadd.f32 %v7732, %v7772
    %v7798 = vadd.f32 %v7733, %v7772
    %v7799 = vadd.f32 %v7734, %v7772
    %v7800 = vadd.f32 %v7735, %v7772
    %v7801 = vadd.f32 %v7736, %v7772
    %v7802 = vadd.f32 %v7737, %v7772
    %v7803 = vadd.f32 %v7738, %v7772
    %v7804 = vadd.f32 %v7739, %v7772
    %v7805 = vadd.f32 %v7740, %v7772
    %v7806 = vadd.f32 %v7741, %v7772
    %v7807 = vadd.f32 %v7742, %v7772
    %v7808 = vadd.f32 %v7743, %v7772
    %v7809 = vadd.f32 %v7744, %v7772
    %v7810 = vadd.f32 %v7745, %v7772
    %v7811 = vadd.f32 %v7746, %v7772
    %v7812 = vadd.f32 %v7747, %v7772
    %v7813 = vadd.f32 %v7748, %v7772
    %v7814 = vadd.f32 %v7749, %v7772
    %v7815 = vadd.f32 %v7750, %v7772
    %v7816 = vadd.f32 %v7751, %v7772
    %v7817 = vadd.f32 %v7752, %v7772
    %v7818 = vadd.f32 %v7753, %v7772
    %v7819 = vadd.f32 %v7754, %v7772
    %v7820 = vadd.f32 %v7755, %v7772
    %v7821 = vadd.f32 %v7756, %v7772
    %v7822 = vadd.f32 %v7757, %v7772
    %v7823 = vadd.f32 %v7758, %v7772
    %v7824 = vadd.f32 %v7759, %v7772
    %v7825 = vadd.f32 %v7760, %v7772
    %v7826 = vadd.f32 %v7761, %v7772
    %v7827 = vadd.f32 %v7762, %v7772
    %v7828 = vadd.f32 %v7763, %v7772
    %v7829 = vadd.f32 %v7764, %v7772
    %v7830 = vadd.f32 %v7765, %v7772
    %v7831 = vadd.f32 %v7766, %v7772
    %v7832 = vadd.f32 %v7767, %v7772
    %v7833 = vadd.f32 %v7768, %v7772
    %v7834 = vadd.f32 %v7769, %v7772
    %v7835 = vadd.f32 %v7770, %v7772
    %v7836 = vadd.f32 %v7771, %v7772
    %v7837 = vmax.f32 %v7773, 0.0
    %v7838 = vmax.f32 %v7774, 0.0
    %v7839 = vmax.f32 %v7775, 0.0
    %v7840 = vmax.f32 %v7776, 0.0
    %v7841 = vmax.f32 %v7777, 0.0
    %v7842 = vmax.f32 %v7778, 0.0
    %v7843 = vmax.f32 %v7779, 0.0
    %v7844 = vmax.f32 %v7780, 0.0
    %v7845 = vmax.f32 %v7781, 0.0
    %v7846 = vmax.f32 %v7782, 0.0
    %v7847 = vmax.f32 %v7783, 0.0
    %v7848 = vmax.f32 %v7784, 0.0
    %v7849 = vmax.f32 %v7785, 0.0
    %v7850 = vmax.f32 %v7786, 0.0
    %v7851 = vmax.f32 %v7787, 0.0
    %v7852 = vmax.f32 %v7788, 0.0
    %v7853 = vmax.f32 %v7789, 0.0
    %v7854 = vmax.f32 %v7790, 0.0
    %v7855 = vmax.f32 %v7791, 0.0
    %v7856 = vmax.f32 %v7792, 0.0
    %v7857 = vmax.f32 %v7793, 0.0
    %v7858 = vmax.f32 %v7794, 0.0
    %v7859 = vmax.f32 %v7795, 0.0
    %v7860 = vmax.f32 %v7796, 0.0
    %v7861 = vmax.f32 %v7797, 0.0
    %v7862 = vmax.f32 %v7798, 0.0
    %v7863 = vmax.f32 %v7799, 0.0
    %v7864 = vmax.f32 %v7800, 0.0
    %v7865 = vmax.f32 %v7801, 0.0
    %v7866 = vmax.f32 %v7802, 0.0
    %v7867 = vmax.f32 %v7803, 0.0
    %v7868 = vmax.f32 %v7804, 0.0
    %v7869 = vmax.f32 %v7805, 0.0
    %v7870 = vmax.f32 %v7806, 0.0
    %v7871 = vmax.f32 %v7807, 0.0
    %v7872 = vmax.f32 %v7808, 0.0
    %v7873 = vmax.f32 %v7809, 0.0
    %v7874 = vmax.f32 %v7810, 0.0
    %v7875 = vmax.f32 %v7811, 0.0
    %v7876 = vmax.f32 %v7812, 0.0
    %v7877 = vmax.f32 %v7813, 0.0
    %v7878 = vmax.f32 %v7814, 0.0
    %v7879 = vmax.f32 %v7815, 0.0
    %v7880 = vmax.f32 %v7816, 0.0
    %v7881 = vmax.f32 %v7817, 0.0
    %v7882 = vmax.f32 %v7818, 0.0
    %v7883 = vmax.f32 %v7819, 0.0
    %v7884 = vmax.f32 %v7820, 0.0
    %v7885 = vmax.f32 %v7821, 0.0
    %v7886 = vmax.f32 %v7822, 0.0
    %v7887 = vmax.f32 %v7823, 0.0
    %v7888 = vmax.f32 %v7824, 0.0
    %v7889 = vmax.f32 %v7825, 0.0
    %v7890 = vmax.f32 %v7826, 0.0
    %v7891 = vmax.f32 %v7827, 0.0
    %v7892 = vmax.f32 %v7828, 0.0
    %v7893 = vmax.f32 %v7829, 0.0
    %v7894 = vmax.f32 %v7830, 0.0
    %v7895 = vmax.f32 %v7831, 0.0
    %v7896 = vmax.f32 %v7832, 0.0
    %v7897 = vmax.f32 %v7833, 0.0
    %v7898 = vmax.f32 %v7834, 0.0
    %v7899 = vmax.f32 %v7835, 0.0
    %v7900 = vmax.f32 %v7836, 0.0
    %vm7901 = vcmask 261120
    %v7902 = vsel %vm7901, %v7837, 0.0
    %v7903 = vsel %vm7901, %v7838, 0.0
    %v7904 = vadd.f32 %v7902, %v7903
    %v7905 = vsel %vm7901, %v7839, 0.0
    %v7906 = vadd.f32 %v7904, %v7905
    %v7907 = vsel %vm7901, %v7840, 0.0
    %v7908 = vadd.f32 %v7906, %v7907
    %v7909 = vsel %vm7901, %v7841, 0.0
    %v7910 = vadd.f32 %v7908, %v7909
    %v7911 = vsel %vm7901, %v7842, 0.0
    %v7912 = vadd.f32 %v7910, %v7911
    %v7913 = vsel %vm7901, %v7843, 0.0
    %v7914 = vadd.f32 %v7912, %v7913
    %v7915 = vsel %vm7901, %v7844, 0.0
    %v7916 = vadd.f32 %v7914, %v7915
    %v7917 = vsel %vm7901, %v7845, 0.0
    %v7918 = vadd.f32 %v7916, %v7917
    %v7919 = vsel %vm7901, %v7846, 0.0
    %v7920 = vadd.f32 %v7918, %v7919
    %v7921 = vsel %vm7901, %v7847, 0.0
    %v7922 = vadd.f32 %v7920, %v7921
    %v7923 = vsel %vm7901, %v7848, 0.0
    %v7924 = vadd.f32 %v7922, %v7923
    %v7925 = vsel %vm7901, %v7849, 0.0
    %v7926 = vadd.f32 %v7924, %v7925
    %v7927 = vsel %vm7901, %v7850, 0.0
    %v7928 = vadd.f32 %v7926, %v7927
    %v7929 = vsel %vm7901, %v7851, 0.0
    %v7930 = vadd.f32 %v7928, %v7929
    %v7931 = vsel %vm7901, %v7852, 0.0
    %v7932 = vadd.f32 %v7930, %v7931
    %v7933 = vsel %vm7901, %v7853, 0.0
    %v7934 = vadd.f32 %v7932, %v7933
    %v7935 = vsel %vm7901, %v7854, 0.0
    %v7936 = vadd.f32 %v7934, %v7935
    %v7937 = vsel %vm7901, %v7855, 0.0
    %v7938 = vadd.f32 %v7936, %v7937
    %v7939 = vsel %vm7901, %v7856, 0.0
    %v7940 = vadd.f32 %v7938, %v7939
    %v7941 = vsel %vm7901, %v7857, 0.0
    %v7942 = vadd.f32 %v7940, %v7941
    %v7943 = vsel %vm7901, %v7858, 0.0
    %v7944 = vadd.f32 %v7942, %v7943
    %v7945 = vsel %vm7901, %v7859, 0.0
    %v7946 = vadd.f32 %v7944, %v7945
    %v7947 = vsel %vm7901, %v7860, 0.0
    %v7948 = vadd.f32 %v7946, %v7947
    %v7949 = vsel %vm7901, %v7861, 0.0
    %v7950 = vadd.f32 %v7948, %v7949
    %v7951 = vsel %vm7901, %v7862, 0.0
    %v7952 = vadd.f32 %v7950, %v7951
    %v7953 = vsel %vm7901, %v7863, 0.0
    %v7954 = vadd.f32 %v7952, %v7953
    %v7955 = vsel %vm7901, %v7864, 0.0
    %v7956 = vadd.f32 %v7954, %v7955
    %v7957 = vsel %vm7901, %v7865, 0.0
    %v7958 = vadd.f32 %v7956, %v7957
    %v7959 = vsel %vm7901, %v7866, 0.0
    %v7960 = vadd.f32 %v7958, %v7959
    %v7961 = vsel %vm7901, %v7867, 0.0
    %v7962 = vadd.f32 %v7960, %v7961
    %v7963 = vsel %vm7901, %v7868, 0.0
    %v7964 = vadd.f32 %v7962, %v7963
    %v7965 = vrot.slane %v7964, 4
    %v7966 = vadd.f32 %v7964, %v7965
    %v7967 = vrot.slane %v7966, 2
    %v7968 = vadd.f32 %v7966, %v7967
    %v7969 = vrot.slane %v7968, 1
    %v7970 = vadd.f32 %v7968, %v7969
    %v7971 = vsel %vm7901, %v7869, 0.0
    %v7972 = vsel %vm7901, %v7870, 0.0
    %v7973 = vadd.f32 %v7971, %v7972
    %v7974 = vsel %vm7901, %v7871, 0.0
    %v7975 = vadd.f32 %v7973, %v7974
    %v7976 = vsel %vm7901, %v7872, 0.0
    %v7977 = vadd.f32 %v7975, %v7976
    %v7978 = vsel %vm7901, %v7873, 0.0
    %v7979 = vadd.f32 %v7977, %v7978
    %v7980 = vsel %vm7901, %v7874, 0.0
    %v7981 = vadd.f32 %v7979, %v7980
    %v7982 = vsel %vm7901, %v7875, 0.0
    %v7983 = vadd.f32 %v7981, %v7982
    %v7984 = vsel %vm7901, %v7876, 0.0
    %v7985 = vadd.f32 %v7983, %v7984
    %v7986 = vsel %vm7901, %v7877, 0.0
    %v7987 = vadd.f32 %v7985, %v7986
    %v7988 = vsel %vm7901, %v7878, 0.0
    %v7989 = vadd.f32 %v7987, %v7988
    %v7990 = vsel %vm7901, %v7879, 0.0
    %v7991 = vadd.f32 %v7989, %v7990
    %v7992 = vsel %vm7901, %v7880, 0.0
    %v7993 = vadd.f32 %v7991, %v7992
    %v7994 = vsel %vm7901, %v7881, 0.0
    %v7995 = vadd.f32 %v7993, %v7994
    %v7996 = vsel %vm7901, %v7882, 0.0
    %v7997 = vadd.f32 %v7995, %v7996
    %v7998 = vsel %vm7901, %v7883, 0.0
    %v7999 = vadd.f32 %v7997, %v7998
    %v8000 = vsel %vm7901, %v7884, 0.0
    %v8001 = vadd.f32 %v7999, %v8000
    %v8002 = vsel %vm7901, %v7885, 0.0
    %v8003 = vadd.f32 %v8001, %v8002
    %v8004 = vsel %vm7901, %v7886, 0.0
    %v8005 = vadd.f32 %v8003, %v8004
    %v8006 = vsel %vm7901, %v7887, 0.0
    %v8007 = vadd.f32 %v8005, %v8006
    %v8008 = vsel %vm7901, %v7888, 0.0
    %v8009 = vadd.f32 %v8007, %v8008
    %v8010 = vsel %vm7901, %v7889, 0.0
    %v8011 = vadd.f32 %v8009, %v8010
    %v8012 = vsel %vm7901, %v7890, 0.0
    %v8013 = vadd.f32 %v8011, %v8012
    %v8014 = vsel %vm7901, %v7891, 0.0
    %v8015 = vadd.f32 %v8013, %v8014
    %v8016 = vsel %vm7901, %v7892, 0.0
    %v8017 = vadd.f32 %v8015, %v8016
    %v8018 = vsel %vm7901, %v7893, 0.0
    %v8019 = vadd.f32 %v8017, %v8018
    %v8020 = vsel %vm7901, %v7894, 0.0
    %v8021 = vadd.f32 %v8019, %v8020
    %v8022 = vsel %vm7901, %v7895, 0.0
    %v8023 = vadd.f32 %v8021, %v8022
    %v8024 = vsel %vm7901, %v7896, 0.0
    %v8025 = vadd.f32 %v8023, %v8024
    %v8026 = vsel %vm7901, %v7897, 0.0
    %v8027 = vadd.f32 %v8025, %v8026
    %v8028 = vsel %vm7901, %v7898, 0.0
    %v8029 = vadd.f32 %v8027, %v8028
    %v8030 = vsel %vm7901, %v7899, 0.0
    %v8031 = vadd.f32 %v8029, %v8030
    %v8032 = vsel %vm7901, %v7900, 0.0
    %v8033 = vadd.f32 %v8031, %v8032
    %v8034 = vrot.slane %v8033, 4
    %v8035 = vadd.f32 %v8033, %v8034
    %v8036 = vrot.slane %v8035, 2
    %v8037 = vadd.f32 %v8035, %v8036
    %v8038 = vrot.slane %v8037, 1
    %v8039 = vadd.f32 %v8037, %v8038
    %v8040 = vmul.f32 %v7970, 0.00390625
    %v8041 = vmul.f32 %v8039, 0.00390625
    %v8042 = vperm.slane %v7705, 0
    %v8043 = vmul.f32 %v8040, %v8042
    %v8044 = vmul.f32 %v8041, %v8042
    %v8045 = vperm.slane %v7706, 0
    %v8046 = vadd.f32 %v8043, %v8045
    %v8047 = vadd.f32 %v8044, %v8045
    %v8050 = vrot.slane %v8047, 7
    %vm8051 = vcmask 1041409
    %v8052 = vsel %vm8051, %v8050, %v8046
    %vm8054 = vcmask 254976
    %8055 = vst.msk [vmem:[#allocation2] sm:$0x3] %vm8054, %v8052
    // Predicated region
    $region14: #{tpu_custom_call.1} parent=1 // pred_check
      _
    $region15: #{tpu_custom_call.1} parent=1 // pred_check_branch
      %8057 = sbr.rel (0) target = $region17
    $region16: #{tpu_custom_call.1} parent=1 // pred_region
      %8059 = vsyncadd [#allocation3], 0
      %s8061 = sshll.u32 [#allocation2], 4
      %s8062 = int_to_ptr.vmem [resolvable:$true] %s8061
      %s8063 = sshll.u32 %s3, 4
      %s8064 = int_to_ptr.hbm [resolvable:$true] %s8063
      %8066 = dma.vmem_to_hbm [thread:$0]  %s8062, 32, %s8064, [#allocation3]
    $region17: #{tpu_custom_call.1} parent=1 // pred_fallthru
      _
    // Predicated region
    $region18: #{tpu_custom_call.1} parent=1 // pred_check
      _
    $region19: #{tpu_custom_call.1} parent=1 // pred_check_branch
      %8068 = sbr.rel (0) target = $region21
    $region20: #{tpu_custom_call.1} parent=1 // pred_region
      %8070 = dma.done [#allocation3], 32
    $region21: #{tpu_custom_call.1} parent=1 // pred_fallthru
      _
    %8071 = vsyncpa [#allocation3], 1

</llo_original>
